<compile_context>
chip_gen: v7x
topology: tpu7x:2x2x1
jax: 0.10.0
libtpu: 0.0.40
codegen_flags: <defaults>
</compile_context>

<pallas_src>
import functools

import jax
import jax.numpy as jnp
from jax.experimental import pallas as pl
from jax.experimental.pallas import tpu as pltpu


_VMEM = pl.BlockSpec(memory_space=pltpu.MemorySpace.VMEM)


# ----------------------------------------------------------------------------
# Pallas kernels
# ----------------------------------------------------------------------------

def _matmul_bias_act_kernel(x_ref, w_ref, b_ref, o_ref, *, act):
    """o = act(x @ w + b).  MXU operands bf16, f32 accumulate + f32 epilogue."""
    acc = jnp.dot(x_ref[...].astype(jnp.bfloat16), w_ref[...],
                  preferred_element_type=jnp.float32)
    acc = acc + b_ref[...]                      # b is (1, N) -> broadcast
    if act == "relu":
        acc = jnp.maximum(acc, 0.0)
    elif act == "sigmoid":
        acc = jax.nn.sigmoid(acc)
    o_ref[...] = acc.astype(o_ref.dtype)


def matmul_bias_act(x, w, b_row, act="none"):
    """y = act(x @ w + b).  x:(M,K) f32, w:(K,N) bf16, b_row:(1,N) f32."""
    M = x.shape[0]
    N = w.shape[1]
    return pl.pallas_call(
        functools.partial(_matmul_bias_act_kernel, act=act),
        out_shape=jax.ShapeDtypeStruct((M, N), jnp.float32),
        in_specs=[_VMEM, _VMEM, _VMEM],
        out_specs=_VMEM,
    )(x, w, b_row)


def _dense_chain_kernel(h0_ref, eps_ref, dw_ref, db_ref, g_ref, bb_ref,
                        fc12w_ref, fc12b_ref, fc3w_ref, fc3b_ref,
                        dlw_ref, dlb_ref, dt1w_ref, dt1b_ref,
                        mu_ref, lv_ref, d1_ref, *, z_dim, bn_eps):
    """Fused: dense -> BatchNorm1d(train stats)+ReLU -> fc1|fc2 -> reparam ->
    fc3 -> dec_lin+ReLU -> dt1(1x1 ConvTranspose == matmul)+ReLU."""
    f32, bf16 = jnp.float32, jnp.bfloat16

    # dense
    h = jnp.dot(h0_ref[...].astype(bf16), dw_ref[...],
                preferred_element_type=f32) + db_ref[...]
    # BatchNorm1d, training mode (batch statistics, biased variance) + ReLU
    mean = jnp.mean(h, axis=0, keepdims=True)
    var = jnp.mean((h - mean) * (h - mean), axis=0, keepdims=True)
    h = (h - mean) * jax.lax.rsqrt(var + bn_eps) * g_ref[...] + bb_ref[...]
    h = jnp.maximum(h, 0.0)

    # fc1 / fc2 merged into one matmul (columns [0:z) = mu, [z:2z) = log_var)
    mulv = jnp.dot(h.astype(bf16), fc12w_ref[...],
                   preferred_element_type=f32) + fc12b_ref[...]
    mu = mulv[:, :z_dim]
    lv = mulv[:, z_dim:]

    # reparameterize: z = mu + exp(0.5 * log_var) * eps
    z = mu + jnp.exp(0.5 * lv) * eps_ref[...]

    # fc3 (no activation), decoder Linear + ReLU
    d = jnp.dot(z.astype(bf16), fc3w_ref[...],
                preferred_element_type=f32) + fc3b_ref[...]
    d = jnp.dot(d.astype(bf16), dlw_ref[...],
                preferred_element_type=f32) + dlb_ref[...]
    d = jnp.maximum(d, 0.0)

    # dt1: ConvTranspose2d(128->64, k=4, s=2) on a 1x1 input == plain matmul
    d1 = jnp.dot(d.astype(bf16), dt1w_ref[...],
                 preferred_element_type=f32) + dt1b_ref[...]
    d1 = jnp.maximum(d1, 0.0)

    mu_ref[...] = mu
    lv_ref[...] = lv
    d1_ref[...] = d1


def dense_chain(h0, eps_noise, pp, bn_eps=1e-5):
    B = h0.shape[0]
    z_dim = eps_noise.shape[1]
    d1_cols = pp["dt1_w"].shape[1]
    return pl.pallas_call(
        functools.partial(_dense_chain_kernel, z_dim=z_dim, bn_eps=bn_eps),
        out_shape=(jax.ShapeDtypeStruct((B, z_dim), jnp.float32),
                   jax.ShapeDtypeStruct((B, z_dim), jnp.float32),
                   jax.ShapeDtypeStruct((B, d1_cols), jnp.float32)),
        in_specs=[_VMEM] * 14,
        out_specs=(_VMEM, _VMEM, _VMEM),
    )(h0, eps_noise,
      pp["dense_w"], pp["dense_b"], pp["bn_g"], pp["bn_b"],
      pp["fc12_w"], pp["fc12_b"], pp["fc3_w"], pp["fc3_b"],
      pp["declin_w"], pp["declin_b"], pp["dt1_w"], pp["dt1_b"])


# ----------------------------------------------------------------------------
# Conv glue (NHWC im2col / padding / depth-to-space in XLA; matmuls in Pallas)
# ----------------------------------------------------------------------------

def im2col_nhwc(x, kh, kw, stride):
    """x: (N,H,W,C) -> (N*OH*OW, KH*KW*C) with column order (ky, kx, ci)."""
    n, h, w, c = x.shape
    oh = (h - kh) // stride + 1
    ow = (w - kw) // stride + 1
    cols = [x[:, i:i + stride * oh:stride, j:j + stride * ow:stride, :]
            for i in range(kh) for j in range(kw)]
    cols = jnp.concatenate(cols, axis=-1)            # (n, oh, ow, kh*kw*c)
    return cols.reshape(n * oh * ow, kh * kw * c), oh, ow


def conv2d_nhwc(x, wmat, b_row, kh, kw, stride, act):
    """PyTorch Conv2d (no padding), NHWC activations, pre-reshaped weights."""
    n = x.shape[0]
    cols, oh, ow = im2col_nhwc(x, kh, kw, stride)
    y = matmul_bias_act(cols, wmat, b_row, act)      # (n*oh*ow, Cout)
    return y.reshape(n, oh, ow, wmat.shape[1])


def conv_transpose2d_subpixel(x, wmat, b_row, s, act):
    """stride-s ConvTranspose2d (K % s == 0, no padding) via the subpixel
    decomposition: one stride-1 im2col over the (K//s - 1)-padded input, one
    matmul against the s*s parity sub-kernels at once, then depth-to-space."""
    n, h, w, ci = x.shape
    km = int(round((wmat.shape[0] // ci) ** 0.5))    # sub-kernel size K // s
    cout = wmat.shape[1] // (s * s)
    xp = jnp.pad(x, ((0, 0), (km - 1, km - 1), (km - 1, km - 1), (0, 0)))
    cols, qh, qw = im2col_nhwc(xp, km, km, 1)
    y = matmul_bias_act(cols, wmat, b_row, act)      # (n*qh*qw, s*s*cout)
    y = y.reshape(n, qh, qw, s, s, cout)
    y = jnp.transpose(y, (0, 1, 3, 2, 4, 5)).reshape(n, s * qh, s * qw, cout)
    return y


# ----------------------------------------------------------------------------
# Parameters: synthetic PyTorch-layout init + one-time kernel-layout prep
# ----------------------------------------------------------------------------

def init_params(key, in_ch=1, z_dim=2, input_size=128):
    ks = iter(jax.random.split(key, 32))

    def wn(shape, fan_in):
        return (jax.random.normal(next(ks), shape, jnp.float32)
                / jnp.sqrt(jnp.float32(fan_in)))

    def bn(shape):
        return jax.random.normal(next(ks), shape, jnp.float32) * 0.01

    p = {}
    # encoder convs (PyTorch Conv2d layout: (Cout, Cin, KH, KW))
    p["ec1_w"], p["ec1_b"] = wn((32, in_ch, 4, 4), in_ch * 16), bn((32,))
    p["ec2_w"], p["ec2_b"] = wn((64, 32, 4, 4), 32 * 16), bn((64,))
    p["ec3_w"], p["ec3_b"] = wn((128, 64, 4, 4), 64 * 16), bn((128,))
    # dense + batchnorm (PyTorch Linear layout: (out, in))
    p["dense_w"], p["dense_b"] = wn((128, input_size), input_size), bn((128,))
    p["bn_g"], p["bn_b"] = jnp.ones((128,), jnp.float32), jnp.zeros((128,), jnp.float32)
    # bottleneck
    p["fc1_w"], p["fc1_b"] = wn((z_dim, 128), 128), bn((z_dim,))
    p["fc2_w"], p["fc2_b"] = wn((z_dim, 128), 128), bn((z_dim,))
    p["fc3_w"], p["fc3_b"] = wn((128, z_dim), z_dim), bn((128,))
    # decoder (ConvTranspose2d layout: (Cin, Cout, KH, KW))
    p["dec_lin_w"], p["dec_lin_b"] = wn((input_size, 128), 128), bn((input_size,))
    p["dt1_w"], p["dt1_b"] = wn((input_size, 64, 4, 4), input_size * 16), bn((64,))
    p["dt2_w"], p["dt2_b"] = wn((64, 32, 6, 6), 64 * 36), bn((32,))
    p["dt3_w"], p["dt3_b"] = wn((32, in_ch, 6, 6), 32 * 36), bn((in_ch,))
    return p


def prepare_params(p, s=2):
    """One-time hoist of all weight reshapes/transposes/dtype casts out of the
    forward path; weights become (K, N) matmul operands in bf16, biases (1, N) f32."""
    bf16, f32 = jnp.bfloat16, jnp.float32

    def row(b):
        return b.astype(f32).reshape(1, -1)

    def conv_wmat(w):                    # (Cout,Cin,KH,KW) -> (KH*KW*Cin, Cout)
        co, ci, kh, kw = w.shape
        return jnp.transpose(w, (2, 3, 1, 0)).reshape(kh * kw * ci, co).astype(bf16)

    def subpix_wmat(w):                  # (Cin,Cout,K,K) -> (Km*Km*Cin, s*s*Cout)
        ci, co, K, _ = w.shape
        km = K // s
        w6 = w.reshape(ci, co, km, s, km, s)        # (ci, co, my, ry, mx, rx)
        w6 = w6[:, :, ::-1, :, ::-1, :]             # flip taps: ay = km-1-my
        w6 = jnp.transpose(w6, (2, 4, 0, 3, 5, 1))  # (ay, ax, ci, ry, rx, co)
        return w6.reshape(km * km * ci, s * s * co).astype(bf16)

    pp = {}
    for n in ("ec1", "ec2", "ec3"):
        pp[n + "_w"], pp[n + "_b"] = conv_wmat(p[n + "_w"]), row(p[n + "_b"])

    pp["dense_w"], pp["dense_b"] = p["dense_w"].T.astype(bf16), row(p["dense_b"])
    pp["bn_g"], pp["bn_b"] = row(p["bn_g"]), row(p["bn_b"])
    pp["fc12_w"] = jnp.concatenate([p["fc1_w"].T, p["fc2_w"].T], axis=1).astype(bf16)
    pp["fc12_b"] = row(jnp.concatenate([p["fc1_b"], p["fc2_b"]]))
    pp["fc3_w"], pp["fc3_b"] = p["fc3_w"].T.astype(bf16), row(p["fc3_b"])
    pp["declin_w"], pp["declin_b"] = p["dec_lin_w"].T.astype(bf16), row(p["dec_lin_b"])

    # dt1 acts on a 1x1 spatial input -> plain matmul, NHWC-flat output columns
    ci, co, kh, kw = p["dt1_w"].shape
    pp["dt1_w"] = (jnp.transpose(p["dt1_w"], (0, 2, 3, 1))
                   .reshape(ci, kh * kw * co).astype(bf16))
    pp["dt1_b"] = row(jnp.tile(p["dt1_b"], kh * kw))

    pp["dt2_w"], pp["dt2_b"] = subpix_wmat(p["dt2_w"]), row(jnp.tile(p["dt2_b"], s * s))
    pp["dt3_w"], pp["dt3_b"] = subpix_wmat(p["dt3_w"]), row(jnp.tile(p["dt3_b"], s * s))
    return pp


# ----------------------------------------------------------------------------
# VAE forward
# ----------------------------------------------------------------------------

def vae_forward(pp, x, noise):
    B = x.shape[0]
    xh = jnp.transpose(x, (0, 2, 3, 1))                              # NCHW -> NHWC

    # ---- encoder (NHWC, stride-2 convs, bias+ReLU fused into the matmul) ----
    h = conv2d_nhwc(xh, pp["ec1_w"], pp["ec1_b"], 4, 4, 2, "relu")   # (B,13,13,32)
    h = conv2d_nhwc(h, pp["ec2_w"], pp["ec2_b"], 4, 4, 2, "relu")    # (B,5,5,64)
    h = conv2d_nhwc(h, pp["ec3_w"], pp["ec3_b"], 4, 4, 2, "relu")    # (B,1,1,128)
    h = h.reshape(B, -1)                                             # Flatten -> (B,128)

    # ---- fused dense chain: dense -> BN+ReLU -> fc1/fc2 -> reparam -> fc3
    #      -> dec_lin+ReLU -> dt1+ReLU, all in one pallas_call ----
    mu, log_var, d1 = dense_chain(h, noise, pp)
    d = d1.reshape(B, 4, 4, 64)                                      # dt1 output, NHWC

    # ---- decoder transposed convs via subpixel decomposition ----
    d = conv_transpose2d_subpixel(d, pp["dt2_w"], pp["dt2_b"], 2, "relu")     # (B,12,12,32)
    d = conv_transpose2d_subpixel(d, pp["dt3_w"], pp["dt3_b"], 2, "sigmoid")  # (B,28,28,1)

    recon = jnp.transpose(d, (0, 3, 1, 2))                           # NHWC -> NCHW
    return recon, mu, log_var


# ----------------------------------------------------------------------------
# main
# ----------------------------------------------------------------------------

if __name__ == "__main__":
    key = jax.random.PRNGKey(0)
    k_param, k_input, k_noise = jax.random.split(key, 3)

    B, C, H, W = 2, 1, 28, 28          # default input_shape=(1,28,28)
    z_dim = 2
    input_size = 128                   # 128 * 1 * 1 after the encoder convs

    params = init_params(k_param, in_ch=C, z_dim=z_dim, input_size=input_size)
    pp = prepare_params(params)        # one-time layout/dtype prep (hoisted)

    x = jax.random.normal(k_input, (B, C, H, W), jnp.float32)
    noise = jax.random.normal(k_noise, (B, z_dim), jnp.float32)  # torch.randn analog

    recon, mu, log_var = jax.jit(vae_forward)(pp, x, noise)
    jax.block_until_ready((recon, mu, log_var))

    assert recon.shape == (B, C, H, W)
    assert mu.shape == (B, z_dim) and log_var.shape == (B, z_dim)
    assert jnp.all(recon >= 0.0) and jnp.all(recon <= 1.0)
    assert jnp.all(jnp.isfinite(recon)) and jnp.all(jnp.isfinite(mu))
    print("KERNEL_OK")
</pallas_src>

<mosaic_0001>
module attributes {stable_mosaic.version = 11 : i64} {
  func.func @_matmul_bias_act_kernel(%arg0: memref<338x16xf32, #tpu.memory_space<vmem>>, %arg1: memref<16x32xbf16, #tpu.memory_space<vmem>>, %arg2: memref<1x32xf32, #tpu.memory_space<vmem>>, %arg3: memref<338x32xf32, #tpu.memory_space<vmem>>) attributes {dimension_semantics = [], scalar_prefetch = 0 : i64, scratch_operands = 0 : i64, tpu.core_type = #tpu.core_type<tc>} {
    %c0 = arith.constant 0 : index
    %c0_0 = arith.constant 0 : index
    %0 = vector.load %arg0[%c0, %c0_0] : memref<338x16xf32, #tpu.memory_space<vmem>>, vector<338x16xf32>
    %1 = arith.truncf %0 : vector<338x16xf32> to vector<338x16xbf16>
    %c0_1 = arith.constant 0 : index
    %c0_2 = arith.constant 0 : index
    %2 = vector.load %arg1[%c0_1, %c0_2] : memref<16x32xbf16, #tpu.memory_space<vmem>>, vector<16x32xbf16>
    %cst = arith.constant dense<0.000000e+00> : vector<338x32xf32>
    %3 = tpu.matmul %1, %2, %cst {dimension_numbers = #tpu.dot_dimension_numbers<[1], [0], [0], [1], [0, 0, 1, 1], [], []>} : vector<338x16xbf16>, vector<16x32xbf16>, vector<338x32xf32> -> vector<338x32xf32>
    %c0_3 = arith.constant 0 : index
    %c0_4 = arith.constant 0 : index
    %4 = vector.load %arg2[%c0_3, %c0_4] : memref<1x32xf32, #tpu.memory_space<vmem>>, vector<1x32xf32>
    %5 = vector.broadcast %4 : vector<1x32xf32> to vector<338x32xf32>
    %6 = arith.addf %3, %5 : vector<338x32xf32>
    %cst_5 = arith.constant 0.000000e+00 : f32
    %7 = vector.broadcast %cst_5 : f32 to vector<338x32xf32>
    %8 = arith.maximumf %6, %7 : vector<338x32xf32>
    %c0_6 = arith.constant 0 : index
    %c0_7 = arith.constant 0 : index
    %9 = vector.load %arg3[%c0_6, %c0_7] : memref<338x32xf32, #tpu.memory_space<vmem>>, vector<338x32xf32>
    tpu.vector_store %arg3[%c0_6, %c0_7], %8 {strides = array<i32>} : memref<338x32xf32, #tpu.memory_space<vmem>>, vector<338x32xf32>,
    return
  }
}

module attributes {stable_mosaic.version = 11 : i64} {
  func.func @_matmul_bias_act_kernel(%arg0: memref<50x512xf32, #tpu.memory_space<vmem>>, %arg1: memref<512x64xbf16, #tpu.memory_space<vmem>>, %arg2: memref<1x64xf32, #tpu.memory_space<vmem>>, %arg3: memref<50x64xf32, #tpu.memory_space<vmem>>) attributes {dimension_semantics = [], scalar_prefetch = 0 : i64, scratch_operands = 0 : i64, tpu.core_type = #tpu.core_type<tc>} {
    %c0 = arith.constant 0 : index
    %c0_0 = arith.constant 0 : index
    %0 = vector.load %arg0[%c0, %c0_0] : memref<50x512xf32, #tpu.memory_space<vmem>>, vector<50x512xf32>
    %1 = arith.truncf %0 : vector<50x512xf32> to vector<50x512xbf16>
    %c0_1 = arith.constant 0 : index
    %c0_2 = arith.constant 0 : index
    %2 = vector.load %arg1[%c0_1, %c0_2] : memref<512x64xbf16, #tpu.memory_space<vmem>>, vector<512x64xbf16>
    %cst = arith.constant dense<0.000000e+00> : vector<50x64xf32>
    %3 = tpu.matmul %1, %2, %cst {dimension_numbers = #tpu.dot_dimension_numbers<[1], [0], [0], [1], [0, 0, 1, 1], [], []>} : vector<50x512xbf16>, vector<512x64xbf16>, vector<50x64xf32> -> vector<50x64xf32>
    %c0_3 = arith.constant 0 : index
    %c0_4 = arith.constant 0 : index
    %4 = vector.load %arg2[%c0_3, %c0_4] : memref<1x64xf32, #tpu.memory_space<vmem>>, vector<1x64xf32>
    %5 = vector.broadcast %4 : vector<1x64xf32> to vector<50x64xf32>
    %6 = arith.addf %3, %5 : vector<50x64xf32>
    %cst_5 = arith.constant 0.000000e+00 : f32
    %7 = vector.broadcast %cst_5 : f32 to vector<50x64xf32>
    %8 = arith.maximumf %6, %7 : vector<50x64xf32>
    %c0_6 = arith.constant 0 : index
    %c0_7 = arith.constant 0 : index
    %9 = vector.load %arg3[%c0_6, %c0_7] : memref<50x64xf32, #tpu.memory_space<vmem>>, vector<50x64xf32>
    tpu.vector_store %arg3[%c0_6, %c0_7], %8 {strides = array<i32>} : memref<50x64xf32, #tpu.memory_space<vmem>>, vector<50x64xf32>,
    return
  }
}

module attributes {stable_mosaic.version = 11 : i64} {
  func.func @_matmul_bias_act_kernel(%arg0: memref<2x1024xf32, #tpu.memory_space<vmem>>, %arg1: memref<1024x128xbf16, #tpu.memory_space<vmem>>, %arg2: memref<1x128xf32, #tpu.memory_space<vmem>>, %arg3: memref<2x128xf32, #tpu.memory_space<vmem>>) attributes {dimension_semantics = [], scalar_prefetch = 0 : i64, scratch_operands = 0 : i64, tpu.core_type = #tpu.core_type<tc>} {
    %c0 = arith.constant 0 : index
    %c0_0 = arith.constant 0 : index
    %0 = vector.load %arg0[%c0, %c0_0] : memref<2x1024xf32, #tpu.memory_space<vmem>>, vector<2x1024xf32>
    %1 = arith.truncf %0 : vector<2x1024xf32> to vector<2x1024xbf16>
    %c0_1 = arith.constant 0 : index
    %c0_2 = arith.constant 0 : index
    %2 = vector.load %arg1[%c0_1, %c0_2] : memref<1024x128xbf16, #tpu.memory_space<vmem>>, vector<1024x128xbf16>
    %cst = arith.constant dense<0.000000e+00> : vector<2x128xf32>
    %3 = tpu.matmul %1, %2, %cst {dimension_numbers = #tpu.dot_dimension_numbers<[1], [0], [0], [1], [0, 0, 1, 1], [], []>} : vector<2x1024xbf16>, vector<1024x128xbf16>, vector<2x128xf32> -> vector<2x128xf32>
    %c0_3 = arith.constant 0 : index
    %c0_4 = arith.constant 0 : index
    %4 = vector.load %arg2[%c0_3, %c0_4] : memref<1x128xf32, #tpu.memory_space<vmem>>, vector<1x128xf32>
    %5 = vector.broadcast %4 : vector<1x128xf32> to vector<2x128xf32>
    %6 = arith.addf %3, %5 : vector<2x128xf32>
    %cst_5 = arith.constant 0.000000e+00 : f32
    %7 = vector.broadcast %cst_5 : f32 to vector<2x128xf32>
    %8 = arith.maximumf %6, %7 : vector<2x128xf32>
    %c0_6 = arith.constant 0 : index
    %c0_7 = arith.constant 0 : index
    %9 = vector.load %arg3[%c0_6, %c0_7] : memref<2x128xf32, #tpu.memory_space<vmem>>, vector<2x128xf32>
    tpu.vector_store %arg3[%c0_6, %c0_7], %8 {strides = array<i32>} : memref<2x128xf32, #tpu.memory_space<vmem>>, vector<2x128xf32>,
    return
  }
}

module attributes {stable_mosaic.version = 11 : i64} {
  func.func @_dense_chain_kernel(%arg0: memref<2x128xf32, #tpu.memory_space<vmem>>, %arg1: memref<2x2xf32, #tpu.memory_space<vmem>>, %arg2: memref<128x128xbf16, #tpu.memory_space<vmem>>, %arg3: memref<1x128xf32, #tpu.memory_space<vmem>>, %arg4: memref<1x128xf32, #tpu.memory_space<vmem>>, %arg5: memref<1x128xf32, #tpu.memory_space<vmem>>, %arg6: memref<128x4xbf16, #tpu.memory_space<vmem>>, %arg7: memref<1x4xf32, #tpu.memory_space<vmem>>, %arg8: memref<2x128xbf16, #tpu.memory_space<vmem>>, %arg9: memref<1x128xf32, #tpu.memory_space<vmem>>, %arg10: memref<128x128xbf16, #tpu.memory_space<vmem>>, %arg11: memref<1x128xf32, #tpu.memory_space<vmem>>, %arg12: memref<128x1024xbf16, #tpu.memory_space<vmem>>, %arg13: memref<1x1024xf32, #tpu.memory_space<vmem>>, %arg14: memref<2x2xf32, #tpu.memory_space<vmem>>, %arg15: memref<2x2xf32, #tpu.memory_space<vmem>>, %arg16: memref<2x1024xf32, #tpu.memory_space<vmem>>) attributes {dimension_semantics = [], scalar_prefetch = 0 : i64, scratch_operands = 0 : i64, tpu.core_type = #tpu.core_type<tc>} {
    %c0 = arith.constant 0 : index
    %c0_0 = arith.constant 0 : index
    %0 = vector.load %arg0[%c0, %c0_0] : memref<2x128xf32, #tpu.memory_space<vmem>>, vector<2x128xf32>
    %1 = arith.truncf %0 : vector<2x128xf32> to vector<2x128xbf16>
    %c0_1 = arith.constant 0 : index
    %c0_2 = arith.constant 0 : index
    %2 = vector.load %arg2[%c0_1, %c0_2] : memref<128x128xbf16, #tpu.memory_space<vmem>>, vector<128x128xbf16>
    %cst = arith.constant dense<0.000000e+00> : vector<2x128xf32>
    %3 = tpu.matmul %1, %2, %cst {dimension_numbers = #tpu.dot_dimension_numbers<[1], [0], [0], [1], [0, 0, 1, 1], [], []>} : vector<2x128xbf16>, vector<128x128xbf16>, vector<2x128xf32> -> vector<2x128xf32>
    %c0_3 = arith.constant 0 : index
    %c0_4 = arith.constant 0 : index
    %4 = vector.load %arg3[%c0_3, %c0_4] : memref<1x128xf32, #tpu.memory_space<vmem>>, vector<1x128xf32>
    %5 = vector.broadcast %4 : vector<1x128xf32> to vector<2x128xf32>
    %6 = arith.addf %3, %5 : vector<2x128xf32>
    %cst_5 = arith.constant dense<0.000000e+00> : vector<128xf32>
    %7 = vector.multi_reduction <add>, %6, %cst_5 [0] : vector<2x128xf32> to vector<128xf32>
    %8 = vector.shape_cast %7 : vector<128xf32> to vector<1x128xf32>
    %cst_6 = arith.constant 2.000000e+00 : f32
    %9 = vector.broadcast %cst_6 : f32 to vector<1x128xf32>
    %10 = arith.divf %8, %9 : vector<1x128xf32>
    %11 = vector.broadcast %10 : vector<1x128xf32> to vector<2x128xf32>
    %12 = arith.subf %6, %11 : vector<2x128xf32>
    %13 = vector.broadcast %10 : vector<1x128xf32> to vector<2x128xf32>
    %14 = arith.subf %6, %13 : vector<2x128xf32>
    %15 = arith.mulf %12, %14 : vector<2x128xf32>
    %cst_7 = arith.constant dense<0.000000e+00> : vector<128xf32>
    %16 = vector.multi_reduction <add>, %15, %cst_7 [0] : vector<2x128xf32> to vector<128xf32>
    %17 = vector.shape_cast %16 : vector<128xf32> to vector<1x128xf32>
    %cst_8 = arith.constant 2.000000e+00 : f32
    %18 = vector.broadcast %cst_8 : f32 to vector<1x128xf32>
    %19 = arith.divf %17, %18 : vector<1x128xf32>
    %20 = vector.broadcast %10 : vector<1x128xf32> to vector<2x128xf32>
    %21 = arith.subf %6, %20 : vector<2x128xf32>
    %cst_9 = arith.constant 9.99999974E-6 : f32
    %22 = vector.broadcast %cst_9 : f32 to vector<1x128xf32>
    %23 = arith.addf %19, %22 : vector<1x128xf32>
    %24 = math.rsqrt %23 : vector<1x128xf32>
    %25 = vector.broadcast %24 : vector<1x128xf32> to vector<2x128xf32>
    %26 = arith.mulf %21, %25 : vector<2x128xf32>
    %c0_10 = arith.constant 0 : index
    %c0_11 = arith.constant 0 : index
    %27 = vector.load %arg4[%c0_10, %c0_11] : memref<1x128xf32, #tpu.memory_space<vmem>>, vector<1x128xf32>
    %28 = vector.broadcast %27 : vector<1x128xf32> to vector<2x128xf32>
    %29 = arith.mulf %26, %28 : vector<2x128xf32>
    %c0_12 = arith.constant 0 : index
    %c0_13 = arith.constant 0 : index
    %30 = vector.load %arg5[%c0_12, %c0_13] : memref<1x128xf32, #tpu.memory_space<vmem>>, vector<1x128xf32>
    %31 = vector.broadcast %30 : vector<1x128xf32> to vector<2x128xf32>
    %32 = arith.addf %29, %31 : vector<2x128xf32>
    %cst_14 = arith.constant 0.000000e+00 : f32
    %33 = vector.broadcast %cst_14 : f32 to vector<2x128xf32>
    %34 = arith.maximumf %32, %33 : vector<2x128xf32>
    %35 = arith.truncf %34 : vector<2x128xf32> to vector<2x128xbf16>
    %c0_15 = arith.constant 0 : index
    %c0_16 = arith.constant 0 : index
    %36 = vector.load %arg6[%c0_15, %c0_16] : memref<128x4xbf16, #tpu.memory_space<vmem>>, vector<128x4xbf16>
    %cst_17 = arith.constant dense<0.000000e+00> : vector<2x4xf32>
    %37 = tpu.matmul %35, %36, %cst_17 {dimension_numbers = #tpu.dot_dimension_numbers<[1], [0], [0], [1], [0, 0, 1, 1], [], []>} : vector<2x128xbf16>, vector<128x4xbf16>, vector<2x4xf32> -> vector<2x4xf32>
    %c0_18 = arith.constant 0 : index
    %c0_19 = arith.constant 0 : index
    %38 = vector.load %arg7[%c0_18, %c0_19] : memref<1x4xf32, #tpu.memory_space<vmem>>, vector<1x4xf32>
    %39 = vector.broadcast %38 : vector<1x4xf32> to vector<2x4xf32>
    %40 = arith.addf %37, %39 : vector<2x4xf32>
    %41 = vector.extract_strided_slice %40 {offsets = [0, 0], sizes = [2, 2], strides = [1, 1]} : vector<2x4xf32> to vector<2x2xf32>
    %42 = vector.extract_strided_slice %40 {offsets = [0, 2], sizes = [2, 2], strides = [1, 1]} : vector<2x4xf32> to vector<2x2xf32>
    %cst_20 = arith.constant 5.000000e-01 : f32
    %43 = vector.broadcast %cst_20 : f32 to vector<2x2xf32>
    %44 = arith.mulf %43, %42 : vector<2x2xf32>
    %45 = math.exp %44 : vector<2x2xf32>
    %c0_21 = arith.constant 0 : index
    %c0_22 = arith.constant 0 : index
    %46 = vector.load %arg1[%c0_21, %c0_22] : memref<2x2xf32, #tpu.memory_space<vmem>>, vector<2x2xf32>
    %47 = arith.mulf %45, %46 : vector<2x2xf32>
    %48 = arith.addf %41, %47 : vector<2x2xf32>
    %49 = arith.truncf %48 : vector<2x2xf32> to vector<2x2xbf16>
    %c0_23 = arith.constant 0 : index
    %c0_24 = arith.constant 0 : index
    %50 = vector.load %arg8[%c0_23, %c0_24] : memref<2x128xbf16, #tpu.memory_space<vmem>>, vector<2x128xbf16>
    %cst_25 = arith.constant dense<0.000000e+00> : vector<2x128xf32>
    %51 = tpu.matmul %49, %50, %cst_25 {dimension_numbers = #tpu.dot_dimension_numbers<[1], [0], [0], [1], [0, 0, 1, 1], [], []>} : vector<2x2xbf16>, vector<2x128xbf16>, vector<2x128xf32> -> vector<2x128xf32>
    %c0_26 = arith.constant 0 : index
    %c0_27 = arith.constant 0 : index
    %52 = vector.load %arg9[%c0_26, %c0_27] : memref<1x128xf32, #tpu.memory_space<vmem>>, vector<1x128xf32>
    %53 = vector.broadcast %52 : vector<1x128xf32> to vector<2x128xf32>
    %54 = arith.addf %51, %53 : vector<2x128xf32>
    %55 = arith.truncf %54 : vector<2x128xf32> to vector<2x128xbf16>
    %c0_28 = arith.constant 0 : index
    %c0_29 = arith.constant 0 : index
    %56 = vector.load %arg10[%c0_28, %c0_29] : memref<128x128xbf16, #tpu.memory_space<vmem>>, vector<128x128xbf16>
    %cst_30 = arith.constant dense<0.000000e+00> : vector<2x128xf32>
    %57 = tpu.matmul %55, %56, %cst_30 {dimension_numbers = #tpu.dot_dimension_numbers<[1], [0], [0], [1], [0, 0, 1, 1], [], []>} : vector<2x128xbf16>, vector<128x128xbf16>, vector<2x128xf32> -> vector<2x128xf32>
    %c0_31 = arith.constant 0 : index
    %c0_32 = arith.constant 0 : index
    %58 = vector.load %arg11[%c0_31, %c0_32] : memref<1x128xf32, #tpu.memory_space<vmem>>, vector<1x128xf32>
    %59 = vector.broadcast %58 : vector<1x128xf32> to vector<2x128xf32>
    %60 = arith.addf %57, %59 : vector<2x128xf32>
    %cst_33 = arith.constant 0.000000e+00 : f32
    %61 = vector.broadcast %cst_33 : f32 to vector<2x128xf32>
    %62 = arith.maximumf %60, %61 : vector<2x128xf32>
    %63 = arith.truncf %62 : vector<2x128xf32> to vector<2x128xbf16>
    %c0_34 = arith.constant 0 : index
    %c0_35 = arith.constant 0 : index
    %64 = vector.load %arg12[%c0_34, %c0_35] : memref<128x1024xbf16, #tpu.memory_space<vmem>>, vector<128x1024xbf16>
    %cst_36 = arith.constant dense<0.000000e+00> : vector<2x1024xf32>
    %65 = tpu.matmul %63, %64, %cst_36 {dimension_numbers = #tpu.dot_dimension_numbers<[1], [0], [0], [1], [0, 0, 1, 1], [], []>} : vector<2x128xbf16>, vector<128x1024xbf16>, vector<2x1024xf32> -> vector<2x1024xf32>
    %c0_37 = arith.constant 0 : index
    %c0_38 = arith.constant 0 : index
    %66 = vector.load %arg13[%c0_37, %c0_38] : memref<1x1024xf32, #tpu.memory_space<vmem>>, vector<1x1024xf32>
    %67 = vector.broadcast %66 : vector<1x1024xf32> to vector<2x1024xf32>
    %68 = arith.addf %65, %67 : vector<2x1024xf32>
    %cst_39 = arith.constant 0.000000e+00 : f32
    %69 = vector.broadcast %cst_39 : f32 to vector<2x1024xf32>
    %70 = arith.maximumf %68, %69 : vector<2x1024xf32>
    %c0_40 = arith.constant 0 : index
    %c0_41 = arith.constant 0 : index
    %71 = vector.load %arg14[%c0_40, %c0_41] : memref<2x2xf32, #tpu.memory_space<vmem>>, vector<2x2xf32>
    tpu.vector_store %arg14[%c0_40, %c0_41], %41 {strides = array<i32>} : memref<2x2xf32, #tpu.memory_space<vmem>>, vector<2x2xf32>,
    %c0_42 = arith.constant 0 : index
    %c0_43 = arith.constant 0 : index
    %72 = vector.load %arg15[%c0_42, %c0_43] : memref<2x2xf32, #tpu.memory_space<vmem>>, vector<2x2xf32>
    tpu.vector_store %arg15[%c0_42, %c0_43], %42 {strides = array<i32>} : memref<2x2xf32, #tpu.memory_space<vmem>>, vector<2x2xf32>,
    %c0_44 = arith.constant 0 : index
    %c0_45 = arith.constant 0 : index
    %73 = vector.load %arg16[%c0_44, %c0_45] : memref<2x1024xf32, #tpu.memory_space<vmem>>, vector<2x1024xf32>
    tpu.vector_store %arg16[%c0_44, %c0_45], %70 {strides = array<i32>} : memref<2x1024xf32, #tpu.memory_space<vmem>>, vector<2x1024xf32>,
    return
  }
}

module attributes {stable_mosaic.version = 11 : i64} {
  func.func @_matmul_bias_act_kernel(%arg0: memref<72x576xf32, #tpu.memory_space<vmem>>, %arg1: memref<576x128xbf16, #tpu.memory_space<vmem>>, %arg2: memref<1x128xf32, #tpu.memory_space<vmem>>, %arg3: memref<72x128xf32, #tpu.memory_space<vmem>>) attributes {dimension_semantics = [], scalar_prefetch = 0 : i64, scratch_operands = 0 : i64, tpu.core_type = #tpu.core_type<tc>} {
    %c0 = arith.constant 0 : index
    %c0_0 = arith.constant 0 : index
    %0 = vector.load %arg0[%c0, %c0_0] : memref<72x576xf32, #tpu.memory_space<vmem>>, vector<72x576xf32>
    %1 = arith.truncf %0 : vector<72x576xf32> to vector<72x576xbf16>
    %c0_1 = arith.constant 0 : index
    %c0_2 = arith.constant 0 : index
    %2 = vector.load %arg1[%c0_1, %c0_2] : memref<576x128xbf16, #tpu.memory_space<vmem>>, vector<576x128xbf16>
    %cst = arith.constant dense<0.000000e+00> : vector<72x128xf32>
    %3 = tpu.matmul %1, %2, %cst {dimension_numbers = #tpu.dot_dimension_numbers<[1], [0], [0], [1], [0, 0, 1, 1], [], []>} : vector<72x576xbf16>, vector<576x128xbf16>, vector<72x128xf32> -> vector<72x128xf32>
    %c0_3 = arith.constant 0 : index
    %c0_4 = arith.constant 0 : index
    %4 = vector.load %arg2[%c0_3, %c0_4] : memref<1x128xf32, #tpu.memory_space<vmem>>, vector<1x128xf32>
    %5 = vector.broadcast %4 : vector<1x128xf32> to vector<72x128xf32>
    %6 = arith.addf %3, %5 : vector<72x128xf32>
    %cst_5 = arith.constant 0.000000e+00 : f32
    %7 = vector.broadcast %cst_5 : f32 to vector<72x128xf32>
    %8 = arith.maximumf %6, %7 : vector<72x128xf32>
    %c0_6 = arith.constant 0 : index
    %c0_7 = arith.constant 0 : index
    %9 = vector.load %arg3[%c0_6, %c0_7] : memref<72x128xf32, #tpu.memory_space<vmem>>, vector<72x128xf32>
    tpu.vector_store %arg3[%c0_6, %c0_7], %8 {strides = array<i32>} : memref<72x128xf32, #tpu.memory_space<vmem>>, vector<72x128xf32>,
    return
  }
}

module attributes {stable_mosaic.version = 11 : i64} {
  func.func @_matmul_bias_act_kernel(%arg0: memref<392x288xf32, #tpu.memory_space<vmem>>, %arg1: memref<288x4xbf16, #tpu.memory_space<vmem>>, %arg2: memref<1x4xf32, #tpu.memory_space<vmem>>, %arg3: memref<392x4xf32, #tpu.memory_space<vmem>>) attributes {dimension_semantics = [], scalar_prefetch = 0 : i64, scratch_operands = 0 : i64, tpu.core_type = #tpu.core_type<tc>} {
    %c0 = arith.constant 0 : index
    %c0_0 = arith.constant 0 : index
    %0 = vector.load %arg0[%c0, %c0_0] : memref<392x288xf32, #tpu.memory_space<vmem>>, vector<392x288xf32>
    %1 = arith.truncf %0 : vector<392x288xf32> to vector<392x288xbf16>
    %c0_1 = arith.constant 0 : index
    %c0_2 = arith.constant 0 : index
    %2 = vector.load %arg1[%c0_1, %c0_2] : memref<288x4xbf16, #tpu.memory_space<vmem>>, vector<288x4xbf16>
    %cst = arith.constant dense<0.000000e+00> : vector<392x4xf32>
    %3 = tpu.matmul %1, %2, %cst {dimension_numbers = #tpu.dot_dimension_numbers<[1], [0], [0], [1], [0, 0, 1, 1], [], []>} : vector<392x288xbf16>, vector<288x4xbf16>, vector<392x4xf32> -> vector<392x4xf32>
    %c0_3 = arith.constant 0 : index
    %c0_4 = arith.constant 0 : index
    %4 = vector.load %arg2[%c0_3, %c0_4] : memref<1x4xf32, #tpu.memory_space<vmem>>, vector<1x4xf32>
    %5 = vector.broadcast %4 : vector<1x4xf32> to vector<392x4xf32>
    %6 = arith.addf %3, %5 : vector<392x4xf32>
    %7 = arith.negf %6 : vector<392x4xf32>
    %8 = math.exp %7 : vector<392x4xf32>
    %cst_5 = arith.constant 1.000000e+00 : f32
    %9 = vector.broadcast %cst_5 : f32 to vector<392x4xf32>
    %10 = arith.addf %9, %8 : vector<392x4xf32>
    %11 = arith.divf %9, %10 : vector<392x4xf32>
    %c0_6 = arith.constant 0 : index
    %c0_7 = arith.constant 0 : index
    %12 = vector.load %arg3[%c0_6, %c0_7] : memref<392x4xf32, #tpu.memory_space<vmem>>, vector<392x4xf32>
    tpu.vector_store %arg3[%c0_6, %c0_7], %11 {strides = array<i32>} : memref<392x4xf32, #tpu.memory_space<vmem>>, vector<392x4xf32>,
    return
  }
}

</mosaic_0001>

<llo_original>
// kernel: vae_forward.6
$region0: #{vae_forward.6}
  #allocation0 [shape = 'u32[]', space=smem, size = 0x4, offset = 0x4, fixed_abs, tag = 'smem constant byte address 0x4 - core index']
  #allocation1 [shape = 'u32[144,128]{1,0:T(1,128)}', space=vmem, size = 0x12000, scoped, tag = 'internal scratch']
  %s0 = inlined_call_operand.vmem [shape: f32[338,16], index: 0, kind: input, shape index: {}]
  %s1 = inlined_call_operand.vmem [shape: bf16[16,32], index: 1, kind: input, shape index: {}]
  %s2 = inlined_call_operand.vmem [shape: f32[1,32], index: 2, kind: input, shape index: {}]
  %s3 = inlined_call_operand.vmem [shape: f32[338,32], index: 3, kind: output, shape index: {}]
  %s4 = sld [smem:[#allocation0]]
  $region22: #{vae_forward.6} parent=0
    _
  %s6 = ssub.s32 1, %s4
  %s7 = scalar_select 0, %s6, %s4
  // Predicated region
  $region2: #{vae_forward.6} parent=0 // pred_check
    _
  $region3: #{vae_forward.6} parent=0 // pred_check_branch
    %9 = sbr.rel (0) target = $region5
  $region4: #{vae_forward.6} parent=0 // pred_region
    _
  $region5: #{vae_forward.6} parent=0 // pred_fallthru
    _
  // Predicated region
  $region6: #{vae_forward.6} parent=0 // pred_check
    _
  $region7: #{vae_forward.6} parent=0 // pred_check_branch
    %11 = sbr.rel (0) target = $region9
  $region8: #{vae_forward.6} parent=0 // pred_region
    _
  $region9: #{vae_forward.6} parent=0 // pred_fallthru
    _
  // Predicated region
  $region10: #{vae_forward.6} parent=0 // pred_check
    _
  $region11: #{vae_forward.6} parent=0 // pred_check_branch
    %13 = sbr.rel (0) target = $region13
  $region12: #{vae_forward.6} parent=0 // pred_region
    _
  $region13: #{vae_forward.6} parent=0 // pred_fallthru
    _
  %v15 = vld [vmem:[%s0] sm:$0xff]
  %v16 = vld [vmem:[%s0 + $0x8] sm:$0xff]
  %v17 = vld [vmem:[%s0 + $0x10] sm:$0xff]
  %v18 = vld [vmem:[%s0 + $0x18] sm:$0xff]
  %v19 = vld [vmem:[%s0 + $0x20] sm:$0xff]
  %v20 = vld [vmem:[%s0 + $0x28] sm:$0xff]
  %v21 = vld [vmem:[%s0 + $0x30] sm:$0xff]
  %v22 = vld [vmem:[%s0 + $0x38] sm:$0xff]
  %v23 = vld [vmem:[%s0 + $0x40] sm:$0xff]
  %v24 = vld [vmem:[%s0 + $0x48] sm:$0xff]
  %v25 = vld [vmem:[%s0 + $0x50] sm:$0xff]
  %v26 = vld [vmem:[%s0 + $0x58] sm:$0xff]
  %v27 = vld [vmem:[%s0 + $0x60] sm:$0xff]
  %v28 = vld [vmem:[%s0 + $0x68] sm:$0xff]
  %v29 = vld [vmem:[%s0 + $0x70] sm:$0xff]
  %v30 = vld [vmem:[%s0 + $0x78] sm:$0xff]
  %v31 = vld [vmem:[%s0 + $0x80] sm:$0xff]
  %v32 = vld [vmem:[%s0 + $0x88] sm:$0xff]
  %v33 = vld [vmem:[%s0 + $0x90] sm:$0xff]
  %v34 = vld [vmem:[%s0 + $0x98] sm:$0xff]
  %v35 = vld [vmem:[%s0 + $0xa0] sm:$0xff]
  %v36 = vld [vmem:[%s0 + $0xa8] sm:$0xff]
  %v37 = vld [vmem:[%s0 + $0xb0] sm:$0xff]
  %v38 = vld [vmem:[%s0 + $0xb8] sm:$0xff]
  %v39 = vld [vmem:[%s0 + $0xc0] sm:$0xff]
  %v40 = vld [vmem:[%s0 + $0xc8] sm:$0xff]
  %v41 = vld [vmem:[%s0 + $0xd0] sm:$0xff]
  %v42 = vld [vmem:[%s0 + $0xd8] sm:$0xff]
  %v43 = vld [vmem:[%s0 + $0xe0] sm:$0xff]
  %v44 = vld [vmem:[%s0 + $0xe8] sm:$0xff]
  %v45 = vld [vmem:[%s0 + $0xf0] sm:$0xff]
  %v46 = vld [vmem:[%s0 + $0xf8] sm:$0xff]
  %v47 = vld [vmem:[%s0 + $0x100] sm:$0xff]
  %v48 = vld [vmem:[%s0 + $0x108] sm:$0xff]
  %v49 = vld [vmem:[%s0 + $0x110] sm:$0xff]
  %v50 = vld [vmem:[%s0 + $0x118] sm:$0xff]
  %v51 = vld [vmem:[%s0 + $0x120] sm:$0xff]
  %v52 = vld [vmem:[%s0 + $0x128] sm:$0xff]
  %v53 = vld [vmem:[%s0 + $0x130] sm:$0xff]
  %v54 = vld [vmem:[%s0 + $0x138] sm:$0xff]
  %v55 = vld [vmem:[%s0 + $0x140] sm:$0xff]
  %v56 = vld [vmem:[%s0 + $0x148] sm:$0xff]
  %v57 = vld [vmem:[%s0 + $0x150] sm:$0x3]
  %v58 = vpack.c.bf16 %v16, %v15
  %v59 = vpack.c.bf16 %v18, %v17
  %v60 = vpack.c.bf16 %v20, %v19
  %v61 = vpack.c.bf16 %v22, %v21
  %v62 = vpack.c.bf16 %v24, %v23
  %v63 = vpack.c.bf16 %v26, %v25
  %v64 = vpack.c.bf16 %v28, %v27
  %v65 = vpack.c.bf16 %v30, %v29
  %v66 = vpack.c.bf16 %v32, %v31
  %v67 = vpack.c.bf16 %v34, %v33
  %v68 = vpack.c.bf16 %v36, %v35
  %v69 = vpack.c.bf16 %v38, %v37
  %v70 = vpack.c.bf16 %v40, %v39
  %v71 = vpack.c.bf16 %v42, %v41
  %v72 = vpack.c.bf16 %v44, %v43
  %v73 = vpack.c.bf16 %v46, %v45
  %v74 = vpack.c.bf16 %v48, %v47
  %v75 = vpack.c.bf16 %v50, %v49
  %v76 = vpack.c.bf16 %v52, %v51
  %v77 = vpack.c.bf16 %v54, %v53
  %v78 = vpack.c.bf16 %v56, %v55
  %v79 = vpack.c.bf16 %v57, %v57
  %v80 = vld [vmem:[%s1] sm:$0xf]
  %v81 = vld [vmem:[%s1 + $0x4] sm:$0xf]
  %v82 = vld [vmem:[%s2] sm:$0x1]
  %v84 = vlaneseq
  %v85 = vshrl.u32 %v84, 7
  %v86 = vsub.s32 0, %v85
  %v87 = vrot.slane %v82, %v86
  %v91 = vunpack.c.l.b16 %v80
  %v92 = vunpack.c.l.b16 %v81
  %v93 = vpack.c.b16 %v92, %v91
  %vm95 = vcmask 130048
  %v97 = vsel %vm95, %v58, 0
  %v100 = vsel %vm95, %v59, 0
  %v103 = vsel %vm95, %v60, 0
  %v106 = vsel %vm95, %v61, 0
  %v109 = vsel %vm95, %v62, 0
  %v112 = vsel %vm95, %v63, 0
  %v115 = vsel %vm95, %v64, 0
  %v118 = vsel %vm95, %v65, 0
  %v121 = vsel %vm95, %v66, 0
  %v124 = vsel %vm95, %v67, 0
  %v127 = vsel %vm95, %v68, 0
  %v130 = vsel %vm95, %v69, 0
  %v133 = vsel %vm95, %v70, 0
  %v136 = vsel %vm95, %v71, 0
  %v139 = vsel %vm95, %v72, 0
  %v142 = vsel %vm95, %v73, 0
  %v145 = vsel %vm95, %v74, 0
  %v148 = vsel %vm95, %v75, 0
  %v151 = vsel %vm95, %v76, 0
  %v154 = vsel %vm95, %v77, 0
  %v157 = vsel %vm95, %v78, 0
  %v160 = vsel %vm95, %v79, 0
  %162 = vmatprep.subr.bf16.mxu0 0
  %163 = vmatpush1.bf16.msra.mxu0 %v93
  %164 = vmatprep.subr.bf16.mxu0 0
  %165 = vmatpush1.bf16.msra.mxu0 0
  %166 = vmatprep.subr.bf16.mxu0 0
  %167 = vmatpush1.bf16.msra.mxu0 0
  %168 = vmatprep.subr.bf16.mxu0 0
  %169 = vmatpush1.bf16.msra.mxu0 0
  %170 = vmatprep.subr.bf16.mxu0 0
  %171 = vmatpush1.bf16.msra.mxu0 0
  %172 = vmatprep.subr.bf16.mxu0 0
  %173 = vmatpush1.bf16.msra.mxu0 0
  %174 = vmatprep.subr.bf16.mxu0 0
  %175 = vmatpush1.bf16.msra.mxu0 0
  %176 = vmatprep.subr.bf16.mxu0 0
  %177 = vmatpush1.bf16.msra.mxu0 0
  %178 = vmatprep.subr.bf16.mxu0 0
  %179 = vmatpush1.bf16.msra.mxu0 0
  %180 = vmatprep.subr.bf16.mxu0 0
  %181 = vmatpush1.bf16.msra.mxu0 0
  %182 = vmatprep.subr.bf16.mxu0 0
  %183 = vmatpush1.bf16.msra.mxu0 0
  %184 = vmatprep.subr.bf16.mxu0 0
  %185 = vmatpush1.bf16.msra.mxu0 0
  %186 = vmatprep.subr.bf16.mxu0 0
  %187 = vmatpush1.bf16.msra.mxu0 0
  %188 = vmatprep.subr.bf16.mxu0 0
  %189 = vmatpush1.bf16.msra.mxu0 0
  %190 = vmatprep.subr.bf16.mxu0 0
  %191 = vmatpush1.bf16.msra.mxu0 0
  %192 = vmatprep.subr.bf16.mxu0 0
  %193 = vmatpush1.bf16.msra.mxu0 0
  %194 = vmatprep.mubr.bf16.mxu0 0
  %195 = vmatmul.mubr.bf16.gmra.mrb[0].mxu0 %v97
  %v196 = vpop.f32.mrb[0].mxu0
  %v197 = vadd.f32 %v87, %v196
  %v198 = vpop.f32.mrb[0].mxu0
  %v199 = vpop.f32.mrb[0].mxu0
  %v200 = vadd.f32 %v87, %v199
  %v201 = vpop.f32.mrb[0].mxu0
  %202 = vmatprep.mubr.bf16.mxu0 0
  %203 = vmatmul.mubr.bf16.gmra.mrb[0].mxu0 %v100
  %v204 = vpop.f32.mrb[0].mxu0
  %v205 = vadd.f32 %v87, %v204
  %v206 = vpop.f32.mrb[0].mxu0
  %v207 = vpop.f32.mrb[0].mxu0
  %v208 = vadd.f32 %v87, %v207
  %v209 = vpop.f32.mrb[0].mxu0
  %210 = vmatprep.mubr.bf16.mxu0 0
  %211 = vmatmul.mubr.bf16.gmra.mrb[0].mxu0 %v103
  %v212 = vpop.f32.mrb[0].mxu0
  %v213 = vadd.f32 %v87, %v212
  %v214 = vpop.f32.mrb[0].mxu0
  %v215 = vpop.f32.mrb[0].mxu0
  %v216 = vadd.f32 %v87, %v215
  %v217 = vpop.f32.mrb[0].mxu0
  %218 = vmatprep.mubr.bf16.mxu0 0
  %219 = vmatmul.mubr.bf16.gmra.mrb[0].mxu0 %v106
  %v220 = vpop.f32.mrb[0].mxu0
  %v221 = vadd.f32 %v87, %v220
  %v222 = vpop.f32.mrb[0].mxu0
  %v223 = vpop.f32.mrb[0].mxu0
  %v224 = vadd.f32 %v87, %v223
  %v225 = vpop.f32.mrb[0].mxu0
  %226 = vmatprep.mubr.bf16.mxu0 0
  %227 = vmatmul.mubr.bf16.gmra.mrb[0].mxu0 %v109
  %v228 = vpop.f32.mrb[0].mxu0
  %v229 = vadd.f32 %v87, %v228
  %v230 = vpop.f32.mrb[0].mxu0
  %v231 = vpop.f32.mrb[0].mxu0
  %v232 = vadd.f32 %v87, %v231
  %v233 = vpop.f32.mrb[0].mxu0
  %234 = vmatprep.mubr.bf16.mxu0 0
  %235 = vmatmul.mubr.bf16.gmra.mrb[0].mxu0 %v112
  %v236 = vpop.f32.mrb[0].mxu0
  %v237 = vadd.f32 %v87, %v236
  %v238 = vpop.f32.mrb[0].mxu0
  %v239 = vpop.f32.mrb[0].mxu0
  %v240 = vadd.f32 %v87, %v239
  %v241 = vpop.f32.mrb[0].mxu0
  %242 = vmatprep.mubr.bf16.mxu0 0
  %243 = vmatmul.mubr.bf16.gmra.mrb[0].mxu0 %v115
  %v244 = vpop.f32.mrb[0].mxu0
  %v245 = vadd.f32 %v87, %v244
  %v246 = vpop.f32.mrb[0].mxu0
  %v247 = vpop.f32.mrb[0].mxu0
  %v248 = vadd.f32 %v87, %v247
  %v249 = vpop.f32.mrb[0].mxu0
  %250 = vmatprep.mubr.bf16.mxu0 0
  %251 = vmatmul.mubr.bf16.gmra.mrb[0].mxu0 %v118
  %v252 = vpop.f32.mrb[0].mxu0
  %v253 = vadd.f32 %v87, %v252
  %v254 = vpop.f32.mrb[0].mxu0
  %v255 = vpop.f32.mrb[0].mxu0
  %v256 = vadd.f32 %v87, %v255
  %v257 = vpop.f32.mrb[0].mxu0
  %258 = vmatprep.mubr.bf16.mxu0 0
  %259 = vmatmul.mubr.bf16.gmra.mrb[0].mxu0 %v121
  %v260 = vpop.f32.mrb[0].mxu0
  %v261 = vadd.f32 %v87, %v260
  %v262 = vpop.f32.mrb[0].mxu0
  %v263 = vpop.f32.mrb[0].mxu0
  %v264 = vadd.f32 %v87, %v263
  %v265 = vpop.f32.mrb[0].mxu0
  %266 = vmatprep.mubr.bf16.mxu0 0
  %267 = vmatmul.mubr.bf16.gmra.mrb[0].mxu0 %v124
  %v268 = vpop.f32.mrb[0].mxu0
  %v269 = vadd.f32 %v87, %v268
  %v270 = vpop.f32.mrb[0].mxu0
  %v271 = vpop.f32.mrb[0].mxu0
  %v272 = vadd.f32 %v87, %v271
  %v273 = vpop.f32.mrb[0].mxu0
  %274 = vmatprep.mubr.bf16.mxu0 0
  %275 = vmatmul.mubr.bf16.gmra.mrb[0].mxu0 %v127
  %v276 = vpop.f32.mrb[0].mxu0
  %v277 = vadd.f32 %v87, %v276
  %v278 = vpop.f32.mrb[0].mxu0
  %v279 = vpop.f32.mrb[0].mxu0
  %v280 = vadd.f32 %v87, %v279
  %v281 = vpop.f32.mrb[0].mxu0
  %282 = vmatprep.mubr.bf16.mxu0 0
  %283 = vmatmul.mubr.bf16.gmra.mrb[0].mxu0 %v130
  %v284 = vpop.f32.mrb[0].mxu0
  %v285 = vadd.f32 %v87, %v284
  %v286 = vpop.f32.mrb[0].mxu0
  %v287 = vpop.f32.mrb[0].mxu0
  %v288 = vadd.f32 %v87, %v287
  %v289 = vpop.f32.mrb[0].mxu0
  %290 = vmatprep.mubr.bf16.mxu0 0
  %291 = vmatmul.mubr.bf16.gmra.mrb[0].mxu0 %v133
  %v292 = vpop.f32.mrb[0].mxu0
  %v293 = vadd.f32 %v87, %v292
  %v294 = vpop.f32.mrb[0].mxu0
  %v295 = vpop.f32.mrb[0].mxu0
  %v296 = vadd.f32 %v87, %v295
  %v297 = vpop.f32.mrb[0].mxu0
  %298 = vmatprep.mubr.bf16.mxu0 0
  %299 = vmatmul.mubr.bf16.gmra.mrb[0].mxu0 %v136
  %v300 = vpop.f32.mrb[0].mxu0
  %v301 = vadd.f32 %v87, %v300
  %v302 = vpop.f32.mrb[0].mxu0
  %v303 = vpop.f32.mrb[0].mxu0
  %v304 = vadd.f32 %v87, %v303
  %v305 = vpop.f32.mrb[0].mxu0
  %306 = vmatprep.mubr.bf16.mxu0 0
  %307 = vmatmul.mubr.bf16.gmra.mrb[0].mxu0 %v139
  %v308 = vpop.f32.mrb[0].mxu0
  %v309 = vadd.f32 %v87, %v308
  %v310 = vpop.f32.mrb[0].mxu0
  %v311 = vpop.f32.mrb[0].mxu0
  %v312 = vadd.f32 %v87, %v311
  %v313 = vpop.f32.mrb[0].mxu0
  %314 = vmatprep.mubr.bf16.mxu0 0
  %315 = vmatmul.mubr.bf16.gmra.mrb[0].mxu0 %v142
  %v316 = vpop.f32.mrb[0].mxu0
  %v317 = vadd.f32 %v87, %v316
  %v318 = vpop.f32.mrb[0].mxu0
  %v319 = vpop.f32.mrb[0].mxu0
  %v320 = vadd.f32 %v87, %v319
  %v321 = vpop.f32.mrb[0].mxu0
  %322 = vmatprep.mubr.bf16.mxu0 0
  %323 = vmatmul.mubr.bf16.gmra.mrb[0].mxu0 %v145
  %v324 = vpop.f32.mrb[0].mxu0
  %v325 = vadd.f32 %v87, %v324
  %v326 = vpop.f32.mrb[0].mxu0
  %v327 = vpop.f32.mrb[0].mxu0
  %v328 = vadd.f32 %v87, %v327
  %v329 = vpop.f32.mrb[0].mxu0
  %330 = vmatprep.mubr.bf16.mxu0 0
  %331 = vmatmul.mubr.bf16.gmra.mrb[0].mxu0 %v148
  %v332 = vpop.f32.mrb[0].mxu0
  %v333 = vadd.f32 %v87, %v332
  %v334 = vpop.f32.mrb[0].mxu0
  %v335 = vpop.f32.mrb[0].mxu0
  %v336 = vadd.f32 %v87, %v335
  %v337 = vpop.f32.mrb[0].mxu0
  %338 = vmatprep.mubr.bf16.mxu0 0
  %339 = vmatmul.mubr.bf16.gmra.mrb[0].mxu0 %v151
  %v340 = vpop.f32.mrb[0].mxu0
  %v341 = vadd.f32 %v87, %v340
  %v342 = vpop.f32.mrb[0].mxu0
  %v343 = vpop.f32.mrb[0].mxu0
  %v344 = vadd.f32 %v87, %v343
  %v345 = vpop.f32.mrb[0].mxu0
  %346 = vmatprep.mubr.bf16.mxu0 0
  %347 = vmatmul.mubr.bf16.gmra.mrb[0].mxu0 %v154
  %v348 = vpop.f32.mrb[0].mxu0
  %v349 = vadd.f32 %v87, %v348
  %v350 = vpop.f32.mrb[0].mxu0
  %v351 = vpop.f32.mrb[0].mxu0
  %v352 = vadd.f32 %v87, %v351
  %v353 = vpop.f32.mrb[0].mxu0
  %354 = vmatprep.mubr.bf16.mxu0 0
  %355 = vmatmul.mubr.bf16.gmra.mrb[0].mxu0 %v157
  %v356 = vpop.f32.mrb[0].mxu0
  %v357 = vadd.f32 %v87, %v356
  %v358 = vpop.f32.mrb[0].mxu0
  %v359 = vpop.f32.mrb[0].mxu0
  %v360 = vadd.f32 %v87, %v359
  %v361 = vpop.f32.mrb[0].mxu0
  %362 = vmatprep.mubr.bf16.mxu0 0
  %363 = vmatmul.mubr.bf16.gmra.mrb[0].mxu0 %v160
  %v364 = vpop.f32.mrb[0].mxu0
  %v365 = vadd.f32 %v87, %v364
  %v366 = vpop.f32.mrb[0].mxu0
  %v367 = vpop.f32.mrb[0].mxu0
  %v368 = vpop.f32.mrb[0].mxu0
  %369 = vdwg.mxu0
  %v370 = vmax.f32 %v197, 0.0
  %v371 = vmax.f32 %v200, 0.0
  %v372 = vmax.f32 %v205, 0.0
  %v373 = vmax.f32 %v208, 0.0
  %v374 = vmax.f32 %v213, 0.0
  %v375 = vmax.f32 %v216, 0.0
  %v376 = vmax.f32 %v221, 0.0
  %v377 = vmax.f32 %v224, 0.0
  %v378 = vmax.f32 %v229, 0.0
  %v379 = vmax.f32 %v232, 0.0
  %v380 = vmax.f32 %v237, 0.0
  %v381 = vmax.f32 %v240, 0.0
  %v382 = vmax.f32 %v245, 0.0
  %v383 = vmax.f32 %v248, 0.0
  %v384 = vmax.f32 %v253, 0.0
  %v385 = vmax.f32 %v256, 0.0
  %v386 = vmax.f32 %v261, 0.0
  %v387 = vmax.f32 %v264, 0.0
  %v388 = vmax.f32 %v269, 0.0
  %v389 = vmax.f32 %v272, 0.0
  %v390 = vmax.f32 %v277, 0.0
  %v391 = vmax.f32 %v280, 0.0
  %v392 = vmax.f32 %v285, 0.0
  %v393 = vmax.f32 %v288, 0.0
  %v394 = vmax.f32 %v293, 0.0
  %v395 = vmax.f32 %v296, 0.0
  %v396 = vmax.f32 %v301, 0.0
  %v397 = vmax.f32 %v304, 0.0
  %v398 = vmax.f32 %v309, 0.0
  %v399 = vmax.f32 %v312, 0.0
  %v400 = vmax.f32 %v317, 0.0
  %v401 = vmax.f32 %v320, 0.0
  %v402 = vmax.f32 %v325, 0.0
  %v403 = vmax.f32 %v328, 0.0
  %v404 = vmax.f32 %v333, 0.0
  %v405 = vmax.f32 %v336, 0.0
  %v406 = vmax.f32 %v341, 0.0
  %v407 = vmax.f32 %v344, 0.0
  %v408 = vmax.f32 %v349, 0.0
  %v409 = vmax.f32 %v352, 0.0
  %v410 = vmax.f32 %v357, 0.0
  %v411 = vmax.f32 %v360, 0.0
  %v412 = vmax.f32 %v365, 0.0
  %vm413 = vcmask 261120
  %414 = vst.msk [vmem:[%s3] sm:$0xff] %vm413, %v370
  %415 = vst.msk [vmem:[%s3 + $0x8] sm:$0xff] %vm413, %v371
  %416 = vst.msk [vmem:[%s3 + $0x10] sm:$0xff] %vm413, %v372
  %417 = vst.msk [vmem:[%s3 + $0x18] sm:$0xff] %vm413, %v373
  %418 = vst.msk [vmem:[%s3 + $0x20] sm:$0xff] %vm413, %v374
  %419 = vst.msk [vmem:[%s3 + $0x28] sm:$0xff] %vm413, %v375
  %420 = vst.msk [vmem:[%s3 + $0x30] sm:$0xff] %vm413, %v376
  %421 = vst.msk [vmem:[%s3 + $0x38] sm:$0xff] %vm413, %v377
  %422 = vst.msk [vmem:[%s3 + $0x40] sm:$0xff] %vm413, %v378
  %423 = vst.msk [vmem:[%s3 + $0x48] sm:$0xff] %vm413, %v379
  %424 = vst.msk [vmem:[%s3 + $0x50] sm:$0xff] %vm413, %v380
  %425 = vst.msk [vmem:[%s3 + $0x58] sm:$0xff] %vm413, %v381
  %426 = vst.msk [vmem:[%s3 + $0x60] sm:$0xff] %vm413, %v382
  %427 = vst.msk [vmem:[%s3 + $0x68] sm:$0xff] %vm413, %v383
  %428 = vst.msk [vmem:[%s3 + $0x70] sm:$0xff] %vm413, %v384
  %429 = vst.msk [vmem:[%s3 + $0x78] sm:$0xff] %vm413, %v385
  %430 = vst.msk [vmem:[%s3 + $0x80] sm:$0xff] %vm413, %v386
  %431 = vst.msk [vmem:[%s3 + $0x88] sm:$0xff] %vm413, %v387
  %432 = vst.msk [vmem:[%s3 + $0x90] sm:$0xff] %vm413, %v388
  %433 = vst.msk [vmem:[%s3 + $0x98] sm:$0xff] %vm413, %v389
  %434 = vst.msk [vmem:[%s3 + $0xa0] sm:$0xff] %vm413, %v390
  %435 = vst.msk [vmem:[%s3 + $0xa8] sm:$0xff] %vm413, %v391
  %436 = vst.msk [vmem:[%s3 + $0xb0] sm:$0xff] %vm413, %v392
  %437 = vst.msk [vmem:[%s3 + $0xb8] sm:$0xff] %vm413, %v393
  %438 = vst.msk [vmem:[%s3 + $0xc0] sm:$0xff] %vm413, %v394
  %439 = vst.msk [vmem:[%s3 + $0xc8] sm:$0xff] %vm413, %v395
  %440 = vst.msk [vmem:[%s3 + $0xd0] sm:$0xff] %vm413, %v396
  %441 = vst.msk [vmem:[%s3 + $0xd8] sm:$0xff] %vm413, %v397
  %442 = vst.msk [vmem:[%s3 + $0xe0] sm:$0xff] %vm413, %v398
  %443 = vst.msk [vmem:[%s3 + $0xe8] sm:$0xff] %vm413, %v399
  %444 = vst.msk [vmem:[%s3 + $0xf0] sm:$0xff] %vm413, %v400
  %445 = vst.msk [vmem:[%s3 + $0xf8] sm:$0xff] %vm413, %v401
  %446 = vst.msk [vmem:[%s3 + $0x100] sm:$0xff] %vm413, %v402
  %447 = vst.msk [vmem:[%s3 + $0x108] sm:$0xff] %vm413, %v403
  %448 = vst.msk [vmem:[%s3 + $0x110] sm:$0xff] %vm413, %v404
  %449 = vst.msk [vmem:[%s3 + $0x118] sm:$0xff] %vm413, %v405
  %450 = vst.msk [vmem:[%s3 + $0x120] sm:$0xff] %vm413, %v406
  %451 = vst.msk [vmem:[%s3 + $0x128] sm:$0xff] %vm413, %v407
  %452 = vst.msk [vmem:[%s3 + $0x130] sm:$0xff] %vm413, %v408
  %453 = vst.msk [vmem:[%s3 + $0x138] sm:$0xff] %vm413, %v409
  %454 = vst.msk [vmem:[%s3 + $0x140] sm:$0xff] %vm413, %v410
  %455 = vst.msk [vmem:[%s3 + $0x148] sm:$0xff] %vm413, %v411
  %vm456 = vcmask 254976
  %457 = vst.msk [vmem:[%s3 + $0x150] sm:$0x3] %vm456, %v412
  // Predicated region
  $region14: #{vae_forward.6} parent=0 // pred_check
    _
  $region15: #{vae_forward.6} parent=0 // pred_check_branch
    %459 = sbr.rel (0) target = $region17
  $region16: #{vae_forward.6} parent=0 // pred_region
    _
  $region17: #{vae_forward.6} parent=0 // pred_fallthru
    _
  // Predicated region
  $region18: #{vae_forward.6} parent=0 // pred_check
    _
  $region19: #{vae_forward.6} parent=0 // pred_check_branch
    %461 = sbr.rel (0) target = $region21
  $region20: #{vae_forward.6} parent=0 // pred_region
    _
  $region21: #{vae_forward.6} parent=0 // pred_fallthru
    _

// kernel: vae_forward.7
$region0: #{vae_forward.7}
  #allocation0 [shape = 'u32[]', space=smem, size = 0x4, offset = 0x4, fixed_abs, tag = 'smem constant byte address 0x4 - core index']
  #allocation1 [shape = 'u32[144,128]{1,0:T(1,128)}', space=vmem, size = 0x12000, scoped, tag = 'internal scratch']
  %s0 = inlined_call_operand.vmem [shape: f32[50,512], index: 0, kind: input, shape index: {}]
  %s1 = inlined_call_operand.vmem [shape: bf16[512,64], index: 1, kind: input, shape index: {}]
  %s2 = inlined_call_operand.vmem [shape: f32[1,64], index: 2, kind: input, shape index: {}]
  %s3 = inlined_call_operand.vmem [shape: f32[50,64], index: 3, kind: output, shape index: {}]
  %s4 = sld [smem:[#allocation0]]
  $region22: #{vae_forward.7} parent=0
    _
  %s6 = ssub.s32 1, %s4
  %s7 = scalar_select 0, %s6, %s4
  // Predicated region
  $region2: #{vae_forward.7} parent=0 // pred_check
    _
  $region3: #{vae_forward.7} parent=0 // pred_check_branch
    %9 = sbr.rel (0) target = $region5
  $region4: #{vae_forward.7} parent=0 // pred_region
    _
  $region5: #{vae_forward.7} parent=0 // pred_fallthru
    _
  // Predicated region
  $region6: #{vae_forward.7} parent=0 // pred_check
    _
  $region7: #{vae_forward.7} parent=0 // pred_check_branch
    %11 = sbr.rel (0) target = $region9
  $region8: #{vae_forward.7} parent=0 // pred_region
    _
  $region9: #{vae_forward.7} parent=0 // pred_fallthru
    _
  // Predicated region
  $region10: #{vae_forward.7} parent=0 // pred_check
    _
  $region11: #{vae_forward.7} parent=0 // pred_check_branch
    %13 = sbr.rel (0) target = $region13
  $region12: #{vae_forward.7} parent=0 // pred_region
    _
  $region13: #{vae_forward.7} parent=0 // pred_fallthru
    _
  %v15 = vld [vmem:[%s0] sm:$0xff]
  %v16 = vld [vmem:[%s0 + $0x8] sm:$0xff]
  %v17 = vld [vmem:[%s0 + $0x10] sm:$0xff]
  %v18 = vld [vmem:[%s0 + $0x18] sm:$0xff]
  %v19 = vld [vmem:[%s0 + $0x20] sm:$0xff]
  %v20 = vld [vmem:[%s0 + $0x28] sm:$0xff]
  %v21 = vld [vmem:[%s0 + $0x30] sm:$0xff]
  %v22 = vld [vmem:[%s0 + $0x38] sm:$0xff]
  %v23 = vld [vmem:[%s0 + $0x40] sm:$0xff]
  %v24 = vld [vmem:[%s0 + $0x48] sm:$0xff]
  %v25 = vld [vmem:[%s0 + $0x50] sm:$0xff]
  %v26 = vld [vmem:[%s0 + $0x58] sm:$0xff]
  %v27 = vld [vmem:[%s0 + $0x60] sm:$0xff]
  %v28 = vld [vmem:[%s0 + $0x68] sm:$0xff]
  %v29 = vld [vmem:[%s0 + $0x70] sm:$0xff]
  %v30 = vld [vmem:[%s0 + $0x78] sm:$0xff]
  %v31 = vld [vmem:[%s0 + $0x80] sm:$0xff]
  %v32 = vld [vmem:[%s0 + $0x88] sm:$0xff]
  %v33 = vld [vmem:[%s0 + $0x90] sm:$0xff]
  %v34 = vld [vmem:[%s0 + $0x98] sm:$0xff]
  %v35 = vld [vmem:[%s0 + $0xa0] sm:$0xff]
  %v36 = vld [vmem:[%s0 + $0xa8] sm:$0xff]
  %v37 = vld [vmem:[%s0 + $0xb0] sm:$0xff]
  %v38 = vld [vmem:[%s0 + $0xb8] sm:$0xff]
  %v39 = vld [vmem:[%s0 + $0xc0] sm:$0x3]
  %v40 = vld [vmem:[%s0 + $0xc8] sm:$0x3]
  %v41 = vld [vmem:[%s0 + $0xd0] sm:$0x3]
  %v42 = vld [vmem:[%s0 + $0xd8] sm:$0x3]
  %v43 = vpack.c.bf16 %v19, %v15
  %v44 = vpack.c.bf16 %v20, %v16
  %v45 = vpack.c.bf16 %v21, %v17
  %v46 = vpack.c.bf16 %v22, %v18
  %v47 = vpack.c.bf16 %v27, %v23
  %v48 = vpack.c.bf16 %v28, %v24
  %v49 = vpack.c.bf16 %v29, %v25
  %v50 = vpack.c.bf16 %v30, %v26
  %v51 = vpack.c.bf16 %v35, %v31
  %v52 = vpack.c.bf16 %v36, %v32
  %v53 = vpack.c.bf16 %v37, %v33
  %v54 = vpack.c.bf16 %v38, %v34
  %v55 = vpack.c.bf16 %v39, %v39
  %v56 = vpack.c.bf16 %v40, %v40
  %v57 = vpack.c.bf16 %v41, %v41
  %v58 = vpack.c.bf16 %v42, %v42
  %v59 = vld [vmem:[%s1] sm:$0xf]
  %v60 = vld [vmem:[%s1 + $0x4] sm:$0xf]
  %v61 = vld [vmem:[%s1 + $0x8] sm:$0xf]
  %v62 = vld [vmem:[%s1 + $0xc] sm:$0xf]
  %v63 = vld [vmem:[%s1 + $0x10] sm:$0xf]
  %v64 = vld [vmem:[%s1 + $0x14] sm:$0xf]
  %v65 = vld [vmem:[%s1 + $0x18] sm:$0xf]
  %v66 = vld [vmem:[%s1 + $0x1c] sm:$0xf]
  %v67 = vld [vmem:[%s1 + $0x20] sm:$0xf]
  %v68 = vld [vmem:[%s1 + $0x24] sm:$0xf]
  %v69 = vld [vmem:[%s1 + $0x28] sm:$0xf]
  %v70 = vld [vmem:[%s1 + $0x2c] sm:$0xf]
  %v71 = vld [vmem:[%s1 + $0x30] sm:$0xf]
  %v72 = vld [vmem:[%s1 + $0x34] sm:$0xf]
  %v73 = vld [vmem:[%s1 + $0x38] sm:$0xf]
  %v74 = vld [vmem:[%s1 + $0x3c] sm:$0xf]
  %v75 = vld [vmem:[%s1 + $0x40] sm:$0xf]
  %v76 = vld [vmem:[%s1 + $0x44] sm:$0xf]
  %v77 = vld [vmem:[%s1 + $0x48] sm:$0xf]
  %v78 = vld [vmem:[%s1 + $0x4c] sm:$0xf]
  %v79 = vld [vmem:[%s1 + $0x50] sm:$0xf]
  %v80 = vld [vmem:[%s1 + $0x54] sm:$0xf]
  %v81 = vld [vmem:[%s1 + $0x58] sm:$0xf]
  %v82 = vld [vmem:[%s1 + $0x5c] sm:$0xf]
  %v83 = vld [vmem:[%s1 + $0x60] sm:$0xf]
  %v84 = vld [vmem:[%s1 + $0x64] sm:$0xf]
  %v85 = vld [vmem:[%s1 + $0x68] sm:$0xf]
  %v86 = vld [vmem:[%s1 + $0x6c] sm:$0xf]
  %v87 = vld [vmem:[%s1 + $0x70] sm:$0xf]
  %v88 = vld [vmem:[%s1 + $0x74] sm:$0xf]
  %v89 = vld [vmem:[%s1 + $0x78] sm:$0xf]
  %v90 = vld [vmem:[%s1 + $0x7c] sm:$0xf]
  %v91 = vld [vmem:[%s1 + $0x80] sm:$0xf]
  %v92 = vld [vmem:[%s1 + $0x84] sm:$0xf]
  %v93 = vld [vmem:[%s1 + $0x88] sm:$0xf]
  %v94 = vld [vmem:[%s1 + $0x8c] sm:$0xf]
  %v95 = vld [vmem:[%s1 + $0x90] sm:$0xf]
  %v96 = vld [vmem:[%s1 + $0x94] sm:$0xf]
  %v97 = vld [vmem:[%s1 + $0x98] sm:$0xf]
  %v98 = vld [vmem:[%s1 + $0x9c] sm:$0xf]
  %v99 = vld [vmem:[%s1 + $0xa0] sm:$0xf]
  %v100 = vld [vmem:[%s1 + $0xa4] sm:$0xf]
  %v101 = vld [vmem:[%s1 + $0xa8] sm:$0xf]
  %v102 = vld [vmem:[%s1 + $0xac] sm:$0xf]
  %v103 = vld [vmem:[%s1 + $0xb0] sm:$0xf]
  %v104 = vld [vmem:[%s1 + $0xb4] sm:$0xf]
  %v105 = vld [vmem:[%s1 + $0xb8] sm:$0xf]
  %v106 = vld [vmem:[%s1 + $0xbc] sm:$0xf]
  %v107 = vld [vmem:[%s1 + $0xc0] sm:$0xf]
  %v108 = vld [vmem:[%s1 + $0xc4] sm:$0xf]
  %v109 = vld [vmem:[%s1 + $0xc8] sm:$0xf]
  %v110 = vld [vmem:[%s1 + $0xcc] sm:$0xf]
  %v111 = vld [vmem:[%s1 + $0xd0] sm:$0xf]
  %v112 = vld [vmem:[%s1 + $0xd4] sm:$0xf]
  %v113 = vld [vmem:[%s1 + $0xd8] sm:$0xf]
  %v114 = vld [vmem:[%s1 + $0xdc] sm:$0xf]
  %v115 = vld [vmem:[%s1 + $0xe0] sm:$0xf]
  %v116 = vld [vmem:[%s1 + $0xe4] sm:$0xf]
  %v117 = vld [vmem:[%s1 + $0xe8] sm:$0xf]
  %v118 = vld [vmem:[%s1 + $0xec] sm:$0xf]
  %v119 = vld [vmem:[%s1 + $0xf0] sm:$0xf]
  %v120 = vld [vmem:[%s1 + $0xf4] sm:$0xf]
  %v121 = vld [vmem:[%s1 + $0xf8] sm:$0xf]
  %v122 = vld [vmem:[%s1 + $0xfc] sm:$0xf]
  %v123 = vld [vmem:[%s2] sm:$0x1]
  %v125 = vlaneseq
  %v126 = vshrl.u32 %v125, 7
  %v127 = vsub.s32 0, %v126
  %v128 = vrot.slane %v123, %v127
  %v194 = vunpack.c.l.b16 %v59
  %v195 = vunpack.c.l.b16 %v60
  %v196 = vunpack.c.l.b16 %v61
  %v197 = vunpack.c.l.b16 %v62
  %v198 = vunpack.c.l.b16 %v63
  %v199 = vunpack.c.l.b16 %v64
  %v200 = vunpack.c.l.b16 %v65
  %v201 = vunpack.c.l.b16 %v66
  %v202 = vunpack.c.l.b16 %v67
  %v203 = vunpack.c.l.b16 %v68
  %v204 = vunpack.c.l.b16 %v69
  %v205 = vunpack.c.l.b16 %v70
  %v206 = vunpack.c.l.b16 %v71
  %v207 = vunpack.c.l.b16 %v72
  %v208 = vunpack.c.l.b16 %v73
  %v209 = vunpack.c.l.b16 %v74
  %v210 = vunpack.c.l.b16 %v75
  %v211 = vunpack.c.l.b16 %v76
  %v212 = vunpack.c.l.b16 %v77
  %v213 = vunpack.c.l.b16 %v78
  %v214 = vunpack.c.l.b16 %v79
  %v215 = vunpack.c.l.b16 %v80
  %v216 = vunpack.c.l.b16 %v81
  %v217 = vunpack.c.l.b16 %v82
  %v218 = vunpack.c.l.b16 %v83
  %v219 = vunpack.c.l.b16 %v84
  %v220 = vunpack.c.l.b16 %v85
  %v221 = vunpack.c.l.b16 %v86
  %v222 = vunpack.c.l.b16 %v87
  %v223 = vunpack.c.l.b16 %v88
  %v224 = vunpack.c.l.b16 %v89
  %v225 = vunpack.c.l.b16 %v90
  %v226 = vunpack.c.l.b16 %v91
  %v227 = vunpack.c.l.b16 %v92
  %v228 = vunpack.c.l.b16 %v93
  %v229 = vunpack.c.l.b16 %v94
  %v230 = vunpack.c.l.b16 %v95
  %v231 = vunpack.c.l.b16 %v96
  %v232 = vunpack.c.l.b16 %v97
  %v233 = vunpack.c.l.b16 %v98
  %v234 = vunpack.c.l.b16 %v99
  %v235 = vunpack.c.l.b16 %v100
  %v236 = vunpack.c.l.b16 %v101
  %v237 = vunpack.c.l.b16 %v102
  %v238 = vunpack.c.l.b16 %v103
  %v239 = vunpack.c.l.b16 %v104
  %v240 = vunpack.c.l.b16 %v105
  %v241 = vunpack.c.l.b16 %v106
  %v242 = vunpack.c.l.b16 %v107
  %v243 = vunpack.c.l.b16 %v108
  %v244 = vunpack.c.l.b16 %v109
  %v245 = vunpack.c.l.b16 %v110
  %v246 = vunpack.c.l.b16 %v111
  %v247 = vunpack.c.l.b16 %v112
  %v248 = vunpack.c.l.b16 %v113
  %v249 = vunpack.c.l.b16 %v114
  %v250 = vunpack.c.l.b16 %v115
  %v251 = vunpack.c.l.b16 %v116
  %v252 = vunpack.c.l.b16 %v117
  %v253 = vunpack.c.l.b16 %v118
  %v254 = vunpack.c.l.b16 %v119
  %v255 = vunpack.c.l.b16 %v120
  %v256 = vunpack.c.l.b16 %v121
  %v257 = vunpack.c.l.b16 %v122
  %v258 = vpack.c.b16 %v195, %v194
  %v259 = vpack.c.b16 %v197, %v196
  %v260 = vpack.c.b16 %v199, %v198
  %v261 = vpack.c.b16 %v201, %v200
  %v262 = vpack.c.b16 %v203, %v202
  %v263 = vpack.c.b16 %v205, %v204
  %v264 = vpack.c.b16 %v207, %v206
  %v265 = vpack.c.b16 %v209, %v208
  %v266 = vpack.c.b16 %v211, %v210
  %v267 = vpack.c.b16 %v213, %v212
  %v268 = vpack.c.b16 %v215, %v214
  %v269 = vpack.c.b16 %v217, %v216
  %v270 = vpack.c.b16 %v219, %v218
  %v271 = vpack.c.b16 %v221, %v220
  %v272 = vpack.c.b16 %v223, %v222
  %v273 = vpack.c.b16 %v225, %v224
  %v274 = vpack.c.b16 %v227, %v226
  %v275 = vpack.c.b16 %v229, %v228
  %v276 = vpack.c.b16 %v231, %v230
  %v277 = vpack.c.b16 %v233, %v232
  %v278 = vpack.c.b16 %v235, %v234
  %v279 = vpack.c.b16 %v237, %v236
  %v280 = vpack.c.b16 %v239, %v238
  %v281 = vpack.c.b16 %v241, %v240
  %v282 = vpack.c.b16 %v243, %v242
  %v283 = vpack.c.b16 %v245, %v244
  %v284 = vpack.c.b16 %v247, %v246
  %v285 = vpack.c.b16 %v249, %v248
  %v286 = vpack.c.b16 %v251, %v250
  %v287 = vpack.c.b16 %v253, %v252
  %v288 = vpack.c.b16 %v255, %v254
  %v289 = vpack.c.b16 %v257, %v256
  %322 = vmatprep.subr.bf16.mxu0 0
  %323 = vmatpush1.bf16.msra.mxu0 %v258
  %324 = vmatprep.subr.bf16.mxu0 0
  %325 = vmatpush1.bf16.msra.mxu0 %v259
  %326 = vmatprep.subr.bf16.mxu0 0
  %327 = vmatpush1.bf16.msra.mxu0 %v260
  %328 = vmatprep.subr.bf16.mxu0 0
  %329 = vmatpush1.bf16.msra.mxu0 %v261
  %330 = vmatprep.subr.bf16.mxu0 0
  %331 = vmatpush1.bf16.msra.mxu0 %v262
  %332 = vmatprep.subr.bf16.mxu0 0
  %333 = vmatpush1.bf16.msra.mxu0 %v263
  %334 = vmatprep.subr.bf16.mxu0 0
  %335 = vmatpush1.bf16.msra.mxu0 %v264
  %336 = vmatprep.subr.bf16.mxu0 0
  %337 = vmatpush1.bf16.msra.mxu0 %v265
  %338 = vmatprep.subr.bf16.mxu0 0
  %339 = vmatpush1.bf16.msra.mxu0 %v266
  %340 = vmatprep.subr.bf16.mxu0 0
  %341 = vmatpush1.bf16.msra.mxu0 %v267
  %342 = vmatprep.subr.bf16.mxu0 0
  %343 = vmatpush1.bf16.msra.mxu0 %v268
  %344 = vmatprep.subr.bf16.mxu0 0
  %345 = vmatpush1.bf16.msra.mxu0 %v269
  %346 = vmatprep.subr.bf16.mxu0 0
  %347 = vmatpush1.bf16.msra.mxu0 %v270
  %348 = vmatprep.subr.bf16.mxu0 0
  %349 = vmatpush1.bf16.msra.mxu0 %v271
  %350 = vmatprep.subr.bf16.mxu0 0
  %351 = vmatpush1.bf16.msra.mxu0 %v272
  %352 = vmatprep.subr.bf16.mxu0 0
  %353 = vmatpush1.bf16.msra.mxu0 %v273
  %354 = vmatprep.mubr.bf16.mxu0 %v44
  %355 = vmatmul.mubr.bf16.gmra.mrb[0].mxu0 %v43
  %v356 = vpop.f32.mrb[0].mxu0
  %v357 = vadd.f32 %v128, %v356
  %v358 = vpop.f32.mrb[0].mxu0
  %v359 = vpop.f32.mrb[0].mxu0
  %v360 = vadd.f32 %v128, %v359
  %v361 = vpop.f32.mrb[0].mxu0
  %362 = vmatprep.mubr.bf16.mxu0 %v48
  %363 = vmatmul.mubr.bf16.gmra.mrb[0].mxu0 %v47
  %v364 = vpop.f32.mrb[0].mxu0
  %v365 = vadd.f32 %v128, %v364
  %v366 = vpop.f32.mrb[0].mxu0
  %v367 = vpop.f32.mrb[0].mxu0
  %v368 = vadd.f32 %v128, %v367
  %v369 = vpop.f32.mrb[0].mxu0
  %370 = vmatprep.mubr.bf16.mxu0 %v52
  %371 = vmatmul.mubr.bf16.gmra.mrb[0].mxu0 %v51
  %v372 = vpop.f32.mrb[0].mxu0
  %v373 = vadd.f32 %v128, %v372
  %v374 = vpop.f32.mrb[0].mxu0
  %v375 = vpop.f32.mrb[0].mxu0
  %v376 = vadd.f32 %v128, %v375
  %v377 = vpop.f32.mrb[0].mxu0
  %378 = vmatprep.mubr.bf16.mxu0 %v56
  %379 = vmatmul.mubr.bf16.gmra.mrb[0].mxu0 %v55
  %v380 = vpop.f32.mrb[0].mxu0
  %v381 = vadd.f32 %v128, %v380
  %v382 = vpop.f32.mrb[0].mxu0
  %v383 = vpop.f32.mrb[0].mxu0
  %v384 = vpop.f32.mrb[0].mxu0
  %385 = vdwg.mxu0
  %386 = vmatprep.subr.bf16.mxu0 0
  %387 = vmatpush1.bf16.msra.mxu0 %v274
  %388 = vmatprep.subr.bf16.mxu0 0
  %389 = vmatpush1.bf16.msra.mxu0 %v275
  %390 = vmatprep.subr.bf16.mxu0 0
  %391 = vmatpush1.bf16.msra.mxu0 %v276
  %392 = vmatprep.subr.bf16.mxu0 0
  %393 = vmatpush1.bf16.msra.mxu0 %v277
  %394 = vmatprep.subr.bf16.mxu0 0
  %395 = vmatpush1.bf16.msra.mxu0 %v278
  %396 = vmatprep.subr.bf16.mxu0 0
  %397 = vmatpush1.bf16.msra.mxu0 %v279
  %398 = vmatprep.subr.bf16.mxu0 0
  %399 = vmatpush1.bf16.msra.mxu0 %v280
  %400 = vmatprep.subr.bf16.mxu0 0
  %401 = vmatpush1.bf16.msra.mxu0 %v281
  %402 = vmatprep.subr.bf16.mxu0 0
  %403 = vmatpush1.bf16.msra.mxu0 %v282
  %404 = vmatprep.subr.bf16.mxu0 0
  %405 = vmatpush1.bf16.msra.mxu0 %v283
  %406 = vmatprep.subr.bf16.mxu0 0
  %407 = vmatpush1.bf16.msra.mxu0 %v284
  %408 = vmatprep.subr.bf16.mxu0 0
  %409 = vmatpush1.bf16.msra.mxu0 %v285
  %410 = vmatprep.subr.bf16.mxu0 0
  %411 = vmatpush1.bf16.msra.mxu0 %v286
  %412 = vmatprep.subr.bf16.mxu0 0
  %413 = vmatpush1.bf16.msra.mxu0 %v287
  %414 = vmatprep.subr.bf16.mxu0 0
  %415 = vmatpush1.bf16.msra.mxu0 %v288
  %416 = vmatprep.subr.bf16.mxu0 0
  %417 = vmatpush1.bf16.msra.mxu0 %v289
  %418 = vmatprep.mubr.bf16.mxu0 %v46
  %419 = vmatmul.mubr.bf16.gmra.mrb[0].mxu0 %v45
  %v420 = vpop.f32.mrb[0].mxu0
  %v421 = vadd.f32 %v357, %v420
  %v422 = vpop.f32.mrb[0].mxu0
  %v423 = vpop.f32.mrb[0].mxu0
  %v424 = vadd.f32 %v360, %v423
  %v425 = vpop.f32.mrb[0].mxu0
  %426 = vmatprep.mubr.bf16.mxu0 %v50
  %427 = vmatmul.mubr.bf16.gmra.mrb[0].mxu0 %v49
  %v428 = vpop.f32.mrb[0].mxu0
  %v429 = vadd.f32 %v365, %v428
  %v430 = vpop.f32.mrb[0].mxu0
  %v431 = vpop.f32.mrb[0].mxu0
  %v432 = vadd.f32 %v368, %v431
  %v433 = vpop.f32.mrb[0].mxu0
  %434 = vmatprep.mubr.bf16.mxu0 %v54
  %435 = vmatmul.mubr.bf16.gmra.mrb[0].mxu0 %v53
  %v436 = vpop.f32.mrb[0].mxu0
  %v437 = vadd.f32 %v373, %v436
  %v438 = vpop.f32.mrb[0].mxu0
  %v439 = vpop.f32.mrb[0].mxu0
  %v440 = vadd.f32 %v376, %v439
  %v441 = vpop.f32.mrb[0].mxu0
  %442 = vmatprep.mubr.bf16.mxu0 %v58
  %443 = vmatmul.mubr.bf16.gmra.mrb[0].mxu0 %v57
  %v444 = vpop.f32.mrb[0].mxu0
  %v445 = vadd.f32 %v381, %v444
  %v446 = vpop.f32.mrb[0].mxu0
  %v447 = vpop.f32.mrb[0].mxu0
  %v448 = vpop.f32.mrb[0].mxu0
  %449 = vdwg.mxu0
  %v450 = vmax.f32 %v421, 0.0
  %v451 = vmax.f32 %v424, 0.0
  %v452 = vmax.f32 %v429, 0.0
  %v453 = vmax.f32 %v432, 0.0
  %v454 = vmax.f32 %v437, 0.0
  %v455 = vmax.f32 %v440, 0.0
  %v456 = vmax.f32 %v445, 0.0
  %vm457 = vcmask 523264
  %458 = vst.msk [vmem:[%s3] sm:$0xff] %vm457, %v450
  %459 = vst.msk [vmem:[%s3 + $0x8] sm:$0xff] %vm457, %v451
  %460 = vst.msk [vmem:[%s3 + $0x10] sm:$0xff] %vm457, %v452
  %461 = vst.msk [vmem:[%s3 + $0x18] sm:$0xff] %vm457, %v453
  %462 = vst.msk [vmem:[%s3 + $0x20] sm:$0xff] %vm457, %v454
  %463 = vst.msk [vmem:[%s3 + $0x28] sm:$0xff] %vm457, %v455
  %vm464 = vcmask 517120
  %465 = vst.msk [vmem:[%s3 + $0x30] sm:$0x3] %vm464, %v456
  // Predicated region
  $region14: #{vae_forward.7} parent=0 // pred_check
    _
  $region15: #{vae_forward.7} parent=0 // pred_check_branch
    %467 = sbr.rel (0) target = $region17
  $region16: #{vae_forward.7} parent=0 // pred_region
    _
  $region17: #{vae_forward.7} parent=0 // pred_fallthru
    _
  // Predicated region
  $region18: #{vae_forward.7} parent=0 // pred_check
    _
  $region19: #{vae_forward.7} parent=0 // pred_check_branch
    %469 = sbr.rel (0) target = $region21
  $region20: #{vae_forward.7} parent=0 // pred_region
    _
  $region21: #{vae_forward.7} parent=0 // pred_fallthru
    _

// kernel: vae_forward.8
$region0: #{vae_forward.8}
  #allocation0 [shape = 'u32[]', space=smem, size = 0x4, offset = 0x4, fixed_abs, tag = 'smem constant byte address 0x4 - core index']
  #allocation1 [shape = 'u32[144,128]{1,0:T(1,128)}', space=vmem, size = 0x12000, scoped, tag = 'internal scratch']
  %s0 = inlined_call_operand.vmem [shape: f32[2,1024], index: 0, kind: input, shape index: {}]
  %s1 = inlined_call_operand.vmem [shape: bf16[1024,128], index: 1, kind: input, shape index: {}]
  %s2 = inlined_call_operand.vmem [shape: f32[1,128], index: 2, kind: input, shape index: {}]
  %s3 = inlined_call_operand.vmem [shape: f32[2,128], index: 3, kind: output, shape index: {}]
  %s4 = sld [smem:[#allocation0]]
  $region22: #{vae_forward.8} parent=0
    _
  %s6 = ssub.s32 1, %s4
  %s7 = scalar_select 0, %s6, %s4
  // Predicated region
  $region2: #{vae_forward.8} parent=0 // pred_check
    _
  $region3: #{vae_forward.8} parent=0 // pred_check_branch
    %9 = sbr.rel (0) target = $region5
  $region4: #{vae_forward.8} parent=0 // pred_region
    _
  $region5: #{vae_forward.8} parent=0 // pred_fallthru
    _
  // Predicated region
  $region6: #{vae_forward.8} parent=0 // pred_check
    _
  $region7: #{vae_forward.8} parent=0 // pred_check_branch
    %11 = sbr.rel (0) target = $region9
  $region8: #{vae_forward.8} parent=0 // pred_region
    _
  $region9: #{vae_forward.8} parent=0 // pred_fallthru
    _
  // Predicated region
  $region10: #{vae_forward.8} parent=0 // pred_check
    _
  $region11: #{vae_forward.8} parent=0 // pred_check_branch
    %13 = sbr.rel (0) target = $region13
  $region12: #{vae_forward.8} parent=0 // pred_region
    _
  $region13: #{vae_forward.8} parent=0 // pred_fallthru
    _
  %v15 = vld [vmem:[%s0] sm:$0xff]
  %v16 = vld [vmem:[%s0 + $0x8] sm:$0xff]
  %v19 = vcombine.high %v15, %v15
  %v21 = vunpack.c.l.s4 1983009808
  %v22 = vunpack.c.0.s8 %v21
  %v23 = vlaneseq
  %v24 = vshrl.u32 %v23, 7
  %v25 = vsub.s32 %v22, %v24
  %v26 = vrot.slane %v15, %v25
  %v28 = vunpack.c.l.s4 1983009808
  %v29 = vunpack.c.0.s8 %v28
  %v30 = vlaneseq
  %v31 = vshrl.u32 %v30, 7
  %v32 = vsub.s32 %v29, %v31
  %v33 = vrot.slane %v19, %v32
  %v34 = vcombine.high %v26, %v26
  %v35 = vcombine.high %v33, %v33
  %v36 = vcombine.high %v16, %v16
  %v38 = vunpack.c.l.s4 1983009808
  %v39 = vunpack.c.0.s8 %v38
  %v40 = vlaneseq
  %v41 = vshrl.u32 %v40, 7
  %v42 = vsub.s32 %v39, %v41
  %v43 = vrot.slane %v16, %v42
  %v45 = vunpack.c.l.s4 1983009808
  %v46 = vunpack.c.0.s8 %v45
  %v47 = vlaneseq
  %v48 = vshrl.u32 %v47, 7
  %v49 = vsub.s32 %v46, %v48
  %v50 = vrot.slane %v36, %v49
  %v51 = vcombine.high %v43, %v43
  %v52 = vcombine.high %v50, %v50
  %v61 = vpack.c.bf16 %v26, %v26
  %v62 = vpack.c.bf16 %v34, %v34
  %v63 = vpack.c.bf16 %v33, %v33
  %v64 = vpack.c.bf16 %v35, %v35
  %v65 = vpack.c.bf16 %v43, %v43
  %v66 = vpack.c.bf16 %v51, %v51
  %v67 = vpack.c.bf16 %v50, %v50
  %v68 = vpack.c.bf16 %v52, %v52
  %v69 = vld [vmem:[%s1] sm:$0xf]
  %v70 = vld [vmem:[%s1 + $0x4] sm:$0xf]
  %v71 = vld [vmem:[%s1 + $0x8] sm:$0xf]
  %v72 = vld [vmem:[%s1 + $0xc] sm:$0xf]
  %v73 = vld [vmem:[%s1 + $0x10] sm:$0xf]
  %v74 = vld [vmem:[%s1 + $0x14] sm:$0xf]
  %v75 = vld [vmem:[%s1 + $0x18] sm:$0xf]
  %v76 = vld [vmem:[%s1 + $0x1c] sm:$0xf]
  %v77 = vld [vmem:[%s1 + $0x20] sm:$0xf]
  %v78 = vld [vmem:[%s1 + $0x24] sm:$0xf]
  %v79 = vld [vmem:[%s1 + $0x28] sm:$0xf]
  %v80 = vld [vmem:[%s1 + $0x2c] sm:$0xf]
  %v81 = vld [vmem:[%s1 + $0x30] sm:$0xf]
  %v82 = vld [vmem:[%s1 + $0x34] sm:$0xf]
  %v83 = vld [vmem:[%s1 + $0x38] sm:$0xf]
  %v84 = vld [vmem:[%s1 + $0x3c] sm:$0xf]
  %v85 = vld [vmem:[%s1 + $0x40] sm:$0xf]
  %v86 = vld [vmem:[%s1 + $0x44] sm:$0xf]
  %v87 = vld [vmem:[%s1 + $0x48] sm:$0xf]
  %v88 = vld [vmem:[%s1 + $0x4c] sm:$0xf]
  %v89 = vld [vmem:[%s1 + $0x50] sm:$0xf]
  %v90 = vld [vmem:[%s1 + $0x54] sm:$0xf]
  %v91 = vld [vmem:[%s1 + $0x58] sm:$0xf]
  %v92 = vld [vmem:[%s1 + $0x5c] sm:$0xf]
  %v93 = vld [vmem:[%s1 + $0x60] sm:$0xf]
  %v94 = vld [vmem:[%s1 + $0x64] sm:$0xf]
  %v95 = vld [vmem:[%s1 + $0x68] sm:$0xf]
  %v96 = vld [vmem:[%s1 + $0x6c] sm:$0xf]
  %v97 = vld [vmem:[%s1 + $0x70] sm:$0xf]
  %v98 = vld [vmem:[%s1 + $0x74] sm:$0xf]
  %v99 = vld [vmem:[%s1 + $0x78] sm:$0xf]
  %v100 = vld [vmem:[%s1 + $0x7c] sm:$0xf]
  %v101 = vld [vmem:[%s1 + $0x80] sm:$0xf]
  %v102 = vld [vmem:[%s1 + $0x84] sm:$0xf]
  %v103 = vld [vmem:[%s1 + $0x88] sm:$0xf]
  %v104 = vld [vmem:[%s1 + $0x8c] sm:$0xf]
  %v105 = vld [vmem:[%s1 + $0x90] sm:$0xf]
  %v106 = vld [vmem:[%s1 + $0x94] sm:$0xf]
  %v107 = vld [vmem:[%s1 + $0x98] sm:$0xf]
  %v108 = vld [vmem:[%s1 + $0x9c] sm:$0xf]
  %v109 = vld [vmem:[%s1 + $0xa0] sm:$0xf]
  %v110 = vld [vmem:[%s1 + $0xa4] sm:$0xf]
  %v111 = vld [vmem:[%s1 + $0xa8] sm:$0xf]
  %v112 = vld [vmem:[%s1 + $0xac] sm:$0xf]
  %v113 = vld [vmem:[%s1 + $0xb0] sm:$0xf]
  %v114 = vld [vmem:[%s1 + $0xb4] sm:$0xf]
  %v115 = vld [vmem:[%s1 + $0xb8] sm:$0xf]
  %v116 = vld [vmem:[%s1 + $0xbc] sm:$0xf]
  %v117 = vld [vmem:[%s1 + $0xc0] sm:$0xf]
  %v118 = vld [vmem:[%s1 + $0xc4] sm:$0xf]
  %v119 = vld [vmem:[%s1 + $0xc8] sm:$0xf]
  %v120 = vld [vmem:[%s1 + $0xcc] sm:$0xf]
  %v121 = vld [vmem:[%s1 + $0xd0] sm:$0xf]
  %v122 = vld [vmem:[%s1 + $0xd4] sm:$0xf]
  %v123 = vld [vmem:[%s1 + $0xd8] sm:$0xf]
  %v124 = vld [vmem:[%s1 + $0xdc] sm:$0xf]
  %v125 = vld [vmem:[%s1 + $0xe0] sm:$0xf]
  %v126 = vld [vmem:[%s1 + $0xe4] sm:$0xf]
  %v127 = vld [vmem:[%s1 + $0xe8] sm:$0xf]
  %v128 = vld [vmem:[%s1 + $0xec] sm:$0xf]
  %v129 = vld [vmem:[%s1 + $0xf0] sm:$0xf]
  %v130 = vld [vmem:[%s1 + $0xf4] sm:$0xf]
  %v131 = vld [vmem:[%s1 + $0xf8] sm:$0xf]
  %v132 = vld [vmem:[%s1 + $0xfc] sm:$0xf]
  %v133 = vld [vmem:[%s1 + $0x100] sm:$0xf]
  %v134 = vld [vmem:[%s1 + $0x104] sm:$0xf]
  %v135 = vld [vmem:[%s1 + $0x108] sm:$0xf]
  %v136 = vld [vmem:[%s1 + $0x10c] sm:$0xf]
  %v137 = vld [vmem:[%s1 + $0x110] sm:$0xf]
  %v138 = vld [vmem:[%s1 + $0x114] sm:$0xf]
  %v139 = vld [vmem:[%s1 + $0x118] sm:$0xf]
  %v140 = vld [vmem:[%s1 + $0x11c] sm:$0xf]
  %v141 = vld [vmem:[%s1 + $0x120] sm:$0xf]
  %v142 = vld [vmem:[%s1 + $0x124] sm:$0xf]
  %v143 = vld [vmem:[%s1 + $0x128] sm:$0xf]
  %v144 = vld [vmem:[%s1 + $0x12c] sm:$0xf]
  %v145 = vld [vmem:[%s1 + $0x130] sm:$0xf]
  %v146 = vld [vmem:[%s1 + $0x134] sm:$0xf]
  %v147 = vld [vmem:[%s1 + $0x138] sm:$0xf]
  %v148 = vld [vmem:[%s1 + $0x13c] sm:$0xf]
  %v149 = vld [vmem:[%s1 + $0x140] sm:$0xf]
  %v150 = vld [vmem:[%s1 + $0x144] sm:$0xf]
  %v151 = vld [vmem:[%s1 + $0x148] sm:$0xf]
  %v152 = vld [vmem:[%s1 + $0x14c] sm:$0xf]
  %v153 = vld [vmem:[%s1 + $0x150] sm:$0xf]
  %v154 = vld [vmem:[%s1 + $0x154] sm:$0xf]
  %v155 = vld [vmem:[%s1 + $0x158] sm:$0xf]
  %v156 = vld [vmem:[%s1 + $0x15c] sm:$0xf]
  %v157 = vld [vmem:[%s1 + $0x160] sm:$0xf]
  %v158 = vld [vmem:[%s1 + $0x164] sm:$0xf]
  %v159 = vld [vmem:[%s1 + $0x168] sm:$0xf]
  %v160 = vld [vmem:[%s1 + $0x16c] sm:$0xf]
  %v161 = vld [vmem:[%s1 + $0x170] sm:$0xf]
  %v162 = vld [vmem:[%s1 + $0x174] sm:$0xf]
  %v163 = vld [vmem:[%s1 + $0x178] sm:$0xf]
  %v164 = vld [vmem:[%s1 + $0x17c] sm:$0xf]
  %v165 = vld [vmem:[%s1 + $0x180] sm:$0xf]
  %v166 = vld [vmem:[%s1 + $0x184] sm:$0xf]
  %v167 = vld [vmem:[%s1 + $0x188] sm:$0xf]
  %v168 = vld [vmem:[%s1 + $0x18c] sm:$0xf]
  %v169 = vld [vmem:[%s1 + $0x190] sm:$0xf]
  %v170 = vld [vmem:[%s1 + $0x194] sm:$0xf]
  %v171 = vld [vmem:[%s1 + $0x198] sm:$0xf]
  %v172 = vld [vmem:[%s1 + $0x19c] sm:$0xf]
  %v173 = vld [vmem:[%s1 + $0x1a0] sm:$0xf]
  %v174 = vld [vmem:[%s1 + $0x1a4] sm:$0xf]
  %v175 = vld [vmem:[%s1 + $0x1a8] sm:$0xf]
  %v176 = vld [vmem:[%s1 + $0x1ac] sm:$0xf]
  %v177 = vld [vmem:[%s1 + $0x1b0] sm:$0xf]
  %v178 = vld [vmem:[%s1 + $0x1b4] sm:$0xf]
  %v179 = vld [vmem:[%s1 + $0x1b8] sm:$0xf]
  %v180 = vld [vmem:[%s1 + $0x1bc] sm:$0xf]
  %v181 = vld [vmem:[%s1 + $0x1c0] sm:$0xf]
  %v182 = vld [vmem:[%s1 + $0x1c4] sm:$0xf]
  %v183 = vld [vmem:[%s1 + $0x1c8] sm:$0xf]
  %v184 = vld [vmem:[%s1 + $0x1cc] sm:$0xf]
  %v185 = vld [vmem:[%s1 + $0x1d0] sm:$0xf]
  %v186 = vld [vmem:[%s1 + $0x1d4] sm:$0xf]
  %v187 = vld [vmem:[%s1 + $0x1d8] sm:$0xf]
  %v188 = vld [vmem:[%s1 + $0x1dc] sm:$0xf]
  %v189 = vld [vmem:[%s1 + $0x1e0] sm:$0xf]
  %v190 = vld [vmem:[%s1 + $0x1e4] sm:$0xf]
  %v191 = vld [vmem:[%s1 + $0x1e8] sm:$0xf]
  %v192 = vld [vmem:[%s1 + $0x1ec] sm:$0xf]
  %v193 = vld [vmem:[%s1 + $0x1f0] sm:$0xf]
  %v194 = vld [vmem:[%s1 + $0x1f4] sm:$0xf]
  %v195 = vld [vmem:[%s1 + $0x1f8] sm:$0xf]
  %v196 = vld [vmem:[%s1 + $0x1fc] sm:$0xf]
  %v197 = vld [vmem:[%s2] sm:$0x1]
  %v199 = vlaneseq
  %v200 = vshrl.u32 %v199, 7
  %v201 = vsub.s32 0, %v200
  %v202 = vrot.slane %v197, %v201
  %v332 = vunpack.c.l.b16 %v69
  %v333 = vunpack.c.l.b16 %v70
  %v334 = vunpack.c.l.b16 %v71
  %v335 = vunpack.c.l.b16 %v72
  %v336 = vunpack.c.l.b16 %v73
  %v337 = vunpack.c.l.b16 %v74
  %v338 = vunpack.c.l.b16 %v75
  %v339 = vunpack.c.l.b16 %v76
  %v340 = vunpack.c.l.b16 %v77
  %v341 = vunpack.c.l.b16 %v78
  %v342 = vunpack.c.l.b16 %v79
  %v343 = vunpack.c.l.b16 %v80
  %v344 = vunpack.c.l.b16 %v81
  %v345 = vunpack.c.l.b16 %v82
  %v346 = vunpack.c.l.b16 %v83
  %v347 = vunpack.c.l.b16 %v84
  %v348 = vunpack.c.l.b16 %v85
  %v349 = vunpack.c.l.b16 %v86
  %v350 = vunpack.c.l.b16 %v87
  %v351 = vunpack.c.l.b16 %v88
  %v352 = vunpack.c.l.b16 %v89
  %v353 = vunpack.c.l.b16 %v90
  %v354 = vunpack.c.l.b16 %v91
  %v355 = vunpack.c.l.b16 %v92
  %v356 = vunpack.c.l.b16 %v93
  %v357 = vunpack.c.l.b16 %v94
  %v358 = vunpack.c.l.b16 %v95
  %v359 = vunpack.c.l.b16 %v96
  %v360 = vunpack.c.l.b16 %v97
  %v361 = vunpack.c.l.b16 %v98
  %v362 = vunpack.c.l.b16 %v99
  %v363 = vunpack.c.l.b16 %v100
  %v364 = vunpack.c.l.b16 %v101
  %v365 = vunpack.c.l.b16 %v102
  %v366 = vunpack.c.l.b16 %v103
  %v367 = vunpack.c.l.b16 %v104
  %v368 = vunpack.c.l.b16 %v105
  %v369 = vunpack.c.l.b16 %v106
  %v370 = vunpack.c.l.b16 %v107
  %v371 = vunpack.c.l.b16 %v108
  %v372 = vunpack.c.l.b16 %v109
  %v373 = vunpack.c.l.b16 %v110
  %v374 = vunpack.c.l.b16 %v111
  %v375 = vunpack.c.l.b16 %v112
  %v376 = vunpack.c.l.b16 %v113
  %v377 = vunpack.c.l.b16 %v114
  %v378 = vunpack.c.l.b16 %v115
  %v379 = vunpack.c.l.b16 %v116
  %v380 = vunpack.c.l.b16 %v117
  %v381 = vunpack.c.l.b16 %v118
  %v382 = vunpack.c.l.b16 %v119
  %v383 = vunpack.c.l.b16 %v120
  %v384 = vunpack.c.l.b16 %v121
  %v385 = vunpack.c.l.b16 %v122
  %v386 = vunpack.c.l.b16 %v123
  %v387 = vunpack.c.l.b16 %v124
  %v388 = vunpack.c.l.b16 %v125
  %v389 = vunpack.c.l.b16 %v126
  %v390 = vunpack.c.l.b16 %v127
  %v391 = vunpack.c.l.b16 %v128
  %v392 = vunpack.c.l.b16 %v129
  %v393 = vunpack.c.l.b16 %v130
  %v394 = vunpack.c.l.b16 %v131
  %v395 = vunpack.c.l.b16 %v132
  %v396 = vunpack.c.l.b16 %v133
  %v397 = vunpack.c.l.b16 %v134
  %v398 = vunpack.c.l.b16 %v135
  %v399 = vunpack.c.l.b16 %v136
  %v400 = vunpack.c.l.b16 %v137
  %v401 = vunpack.c.l.b16 %v138
  %v402 = vunpack.c.l.b16 %v139
  %v403 = vunpack.c.l.b16 %v140
  %v404 = vunpack.c.l.b16 %v141
  %v405 = vunpack.c.l.b16 %v142
  %v406 = vunpack.c.l.b16 %v143
  %v407 = vunpack.c.l.b16 %v144
  %v408 = vunpack.c.l.b16 %v145
  %v409 = vunpack.c.l.b16 %v146
  %v410 = vunpack.c.l.b16 %v147
  %v411 = vunpack.c.l.b16 %v148
  %v412 = vunpack.c.l.b16 %v149
  %v413 = vunpack.c.l.b16 %v150
  %v414 = vunpack.c.l.b16 %v151
  %v415 = vunpack.c.l.b16 %v152
  %v416 = vunpack.c.l.b16 %v153
  %v417 = vunpack.c.l.b16 %v154
  %v418 = vunpack.c.l.b16 %v155
  %v419 = vunpack.c.l.b16 %v156
  %v420 = vunpack.c.l.b16 %v157
  %v421 = vunpack.c.l.b16 %v158
  %v422 = vunpack.c.l.b16 %v159
  %v423 = vunpack.c.l.b16 %v160
  %v424 = vunpack.c.l.b16 %v161
  %v425 = vunpack.c.l.b16 %v162
  %v426 = vunpack.c.l.b16 %v163
  %v427 = vunpack.c.l.b16 %v164
  %v428 = vunpack.c.l.b16 %v165
  %v429 = vunpack.c.l.b16 %v166
  %v430 = vunpack.c.l.b16 %v167
  %v431 = vunpack.c.l.b16 %v168
  %v432 = vunpack.c.l.b16 %v169
  %v433 = vunpack.c.l.b16 %v170
  %v434 = vunpack.c.l.b16 %v171
  %v435 = vunpack.c.l.b16 %v172
  %v436 = vunpack.c.l.b16 %v173
  %v437 = vunpack.c.l.b16 %v174
  %v438 = vunpack.c.l.b16 %v175
  %v439 = vunpack.c.l.b16 %v176
  %v440 = vunpack.c.l.b16 %v177
  %v441 = vunpack.c.l.b16 %v178
  %v442 = vunpack.c.l.b16 %v179
  %v443 = vunpack.c.l.b16 %v180
  %v444 = vunpack.c.l.b16 %v181
  %v445 = vunpack.c.l.b16 %v182
  %v446 = vunpack.c.l.b16 %v183
  %v447 = vunpack.c.l.b16 %v184
  %v448 = vunpack.c.l.b16 %v185
  %v449 = vunpack.c.l.b16 %v186
  %v450 = vunpack.c.l.b16 %v187
  %v451 = vunpack.c.l.b16 %v188
  %v452 = vunpack.c.l.b16 %v189
  %v453 = vunpack.c.l.b16 %v190
  %v454 = vunpack.c.l.b16 %v191
  %v455 = vunpack.c.l.b16 %v192
  %v456 = vunpack.c.l.b16 %v193
  %v457 = vunpack.c.l.b16 %v194
  %v458 = vunpack.c.l.b16 %v195
  %v459 = vunpack.c.l.b16 %v196
  %v460 = vpack.c.b16 %v333, %v332
  %v461 = vpack.c.b16 %v335, %v334
  %v462 = vpack.c.b16 %v337, %v336
  %v463 = vpack.c.b16 %v339, %v338
  %v464 = vpack.c.b16 %v341, %v340
  %v465 = vpack.c.b16 %v343, %v342
  %v466 = vpack.c.b16 %v345, %v344
  %v467 = vpack.c.b16 %v347, %v346
  %v468 = vpack.c.b16 %v349, %v348
  %v469 = vpack.c.b16 %v351, %v350
  %v470 = vpack.c.b16 %v353, %v352
  %v471 = vpack.c.b16 %v355, %v354
  %v472 = vpack.c.b16 %v357, %v356
  %v473 = vpack.c.b16 %v359, %v358
  %v474 = vpack.c.b16 %v361, %v360
  %v475 = vpack.c.b16 %v363, %v362
  %v476 = vpack.c.b16 %v365, %v364
  %v477 = vpack.c.b16 %v367, %v366
  %v478 = vpack.c.b16 %v369, %v368
  %v479 = vpack.c.b16 %v371, %v370
  %v480 = vpack.c.b16 %v373, %v372
  %v481 = vpack.c.b16 %v375, %v374
  %v482 = vpack.c.b16 %v377, %v376
  %v483 = vpack.c.b16 %v379, %v378
  %v484 = vpack.c.b16 %v381, %v380
  %v485 = vpack.c.b16 %v383, %v382
  %v486 = vpack.c.b16 %v385, %v384
  %v487 = vpack.c.b16 %v387, %v386
  %v488 = vpack.c.b16 %v389, %v388
  %v489 = vpack.c.b16 %v391, %v390
  %v490 = vpack.c.b16 %v393, %v392
  %v491 = vpack.c.b16 %v395, %v394
  %v492 = vpack.c.b16 %v397, %v396
  %v493 = vpack.c.b16 %v399, %v398
  %v494 = vpack.c.b16 %v401, %v400
  %v495 = vpack.c.b16 %v403, %v402
  %v496 = vpack.c.b16 %v405, %v404
  %v497 = vpack.c.b16 %v407, %v406
  %v498 = vpack.c.b16 %v409, %v408
  %v499 = vpack.c.b16 %v411, %v410
  %v500 = vpack.c.b16 %v413, %v412
  %v501 = vpack.c.b16 %v415, %v414
  %v502 = vpack.c.b16 %v417, %v416
  %v503 = vpack.c.b16 %v419, %v418
  %v504 = vpack.c.b16 %v421, %v420
  %v505 = vpack.c.b16 %v423, %v422
  %v506 = vpack.c.b16 %v425, %v424
  %v507 = vpack.c.b16 %v427, %v426
  %v508 = vpack.c.b16 %v429, %v428
  %v509 = vpack.c.b16 %v431, %v430
  %v510 = vpack.c.b16 %v433, %v432
  %v511 = vpack.c.b16 %v435, %v434
  %v512 = vpack.c.b16 %v437, %v436
  %v513 = vpack.c.b16 %v439, %v438
  %v514 = vpack.c.b16 %v441, %v440
  %v515 = vpack.c.b16 %v443, %v442
  %v516 = vpack.c.b16 %v445, %v444
  %v517 = vpack.c.b16 %v447, %v446
  %v518 = vpack.c.b16 %v449, %v448
  %v519 = vpack.c.b16 %v451, %v450
  %v520 = vpack.c.b16 %v453, %v452
  %v521 = vpack.c.b16 %v455, %v454
  %v522 = vpack.c.b16 %v457, %v456
  %v523 = vpack.c.b16 %v459, %v458
  %588 = vmatprep.subr.bf16.mxu0 0
  %589 = vmatpush1.bf16.msra.mxu0 %v460
  %590 = vmatprep.subr.bf16.mxu0 0
  %591 = vmatpush1.bf16.msra.mxu0 %v461
  %592 = vmatprep.subr.bf16.mxu0 0
  %593 = vmatpush1.bf16.msra.mxu0 %v462
  %594 = vmatprep.subr.bf16.mxu0 0
  %595 = vmatpush1.bf16.msra.mxu0 %v463
  %596 = vmatprep.subr.bf16.mxu0 0
  %597 = vmatpush1.bf16.msra.mxu0 %v464
  %598 = vmatprep.subr.bf16.mxu0 0
  %599 = vmatpush1.bf16.msra.mxu0 %v465
  %600 = vmatprep.subr.bf16.mxu0 0
  %601 = vmatpush1.bf16.msra.mxu0 %v466
  %602 = vmatprep.subr.bf16.mxu0 0
  %603 = vmatpush1.bf16.msra.mxu0 %v467
  %604 = vmatprep.subr.bf16.mxu0 0
  %605 = vmatpush1.bf16.msra.mxu0 %v468
  %606 = vmatprep.subr.bf16.mxu0 0
  %607 = vmatpush1.bf16.msra.mxu0 %v469
  %608 = vmatprep.subr.bf16.mxu0 0
  %609 = vmatpush1.bf16.msra.mxu0 %v470
  %610 = vmatprep.subr.bf16.mxu0 0
  %611 = vmatpush1.bf16.msra.mxu0 %v471
  %612 = vmatprep.subr.bf16.mxu0 0
  %613 = vmatpush1.bf16.msra.mxu0 %v472
  %614 = vmatprep.subr.bf16.mxu0 0
  %615 = vmatpush1.bf16.msra.mxu0 %v473
  %616 = vmatprep.subr.bf16.mxu0 0
  %617 = vmatpush1.bf16.msra.mxu0 %v474
  %618 = vmatprep.subr.bf16.mxu0 0
  %619 = vmatpush1.bf16.msra.mxu0 %v475
  %620 = vmatprep.mubr.bf16.mxu0 %v62
  %621 = vmatmul.mubr.bf16.gmra.mrb[0].mxu0 %v61
  %v622 = vpop.f32.mrb[0].mxu0
  %v623 = vadd.f32 %v202, %v622
  %v624 = vpop.f32.mrb[0].mxu0
  %v625 = vpop.f32.mrb[0].mxu0
  %v626 = vpop.f32.mrb[0].mxu0
  %627 = vdwg.mxu0
  %628 = vmatprep.subr.bf16.mxu0 0
  %629 = vmatpush1.bf16.msra.mxu0 %v476
  %630 = vmatprep.subr.bf16.mxu0 0
  %631 = vmatpush1.bf16.msra.mxu0 %v477
  %632 = vmatprep.subr.bf16.mxu0 0
  %633 = vmatpush1.bf16.msra.mxu0 %v478
  %634 = vmatprep.subr.bf16.mxu0 0
  %635 = vmatpush1.bf16.msra.mxu0 %v479
  %636 = vmatprep.subr.bf16.mxu0 0
  %637 = vmatpush1.bf16.msra.mxu0 %v480
  %638 = vmatprep.subr.bf16.mxu0 0
  %639 = vmatpush1.bf16.msra.mxu0 %v481
  %640 = vmatprep.subr.bf16.mxu0 0
  %641 = vmatpush1.bf16.msra.mxu0 %v482
  %642 = vmatprep.subr.bf16.mxu0 0
  %643 = vmatpush1.bf16.msra.mxu0 %v483
  %644 = vmatprep.subr.bf16.mxu0 0
  %645 = vmatpush1.bf16.msra.mxu0 %v484
  %646 = vmatprep.subr.bf16.mxu0 0
  %647 = vmatpush1.bf16.msra.mxu0 %v485
  %648 = vmatprep.subr.bf16.mxu0 0
  %649 = vmatpush1.bf16.msra.mxu0 %v486
  %650 = vmatprep.subr.bf16.mxu0 0
  %651 = vmatpush1.bf16.msra.mxu0 %v487
  %652 = vmatprep.subr.bf16.mxu0 0
  %653 = vmatpush1.bf16.msra.mxu0 %v488
  %654 = vmatprep.subr.bf16.mxu0 0
  %655 = vmatpush1.bf16.msra.mxu0 %v489
  %656 = vmatprep.subr.bf16.mxu0 0
  %657 = vmatpush1.bf16.msra.mxu0 %v490
  %658 = vmatprep.subr.bf16.mxu0 0
  %659 = vmatpush1.bf16.msra.mxu0 %v491
  %660 = vmatprep.mubr.bf16.mxu0 %v64
  %661 = vmatmul.mubr.bf16.gmra.mrb[0].mxu0 %v63
  %v662 = vpop.f32.mrb[0].mxu0
  %v663 = vadd.f32 %v623, %v662
  %v664 = vpop.f32.mrb[0].mxu0
  %v665 = vpop.f32.mrb[0].mxu0
  %v666 = vpop.f32.mrb[0].mxu0
  %667 = vdwg.mxu0
  %668 = vmatprep.subr.bf16.mxu0 0
  %669 = vmatpush1.bf16.msra.mxu0 %v492
  %670 = vmatprep.subr.bf16.mxu0 0
  %671 = vmatpush1.bf16.msra.mxu0 %v493
  %672 = vmatprep.subr.bf16.mxu0 0
  %673 = vmatpush1.bf16.msra.mxu0 %v494
  %674 = vmatprep.subr.bf16.mxu0 0
  %675 = vmatpush1.bf16.msra.mxu0 %v495
  %676 = vmatprep.subr.bf16.mxu0 0
  %677 = vmatpush1.bf16.msra.mxu0 %v496
  %678 = vmatprep.subr.bf16.mxu0 0
  %679 = vmatpush1.bf16.msra.mxu0 %v497
  %680 = vmatprep.subr.bf16.mxu0 0
  %681 = vmatpush1.bf16.msra.mxu0 %v498
  %682 = vmatprep.subr.bf16.mxu0 0
  %683 = vmatpush1.bf16.msra.mxu0 %v499
  %684 = vmatprep.subr.bf16.mxu0 0
  %685 = vmatpush1.bf16.msra.mxu0 %v500
  %686 = vmatprep.subr.bf16.mxu0 0
  %687 = vmatpush1.bf16.msra.mxu0 %v501
  %688 = vmatprep.subr.bf16.mxu0 0
  %689 = vmatpush1.bf16.msra.mxu0 %v502
  %690 = vmatprep.subr.bf16.mxu0 0
  %691 = vmatpush1.bf16.msra.mxu0 %v503
  %692 = vmatprep.subr.bf16.mxu0 0
  %693 = vmatpush1.bf16.msra.mxu0 %v504
  %694 = vmatprep.subr.bf16.mxu0 0
  %695 = vmatpush1.bf16.msra.mxu0 %v505
  %696 = vmatprep.subr.bf16.mxu0 0
  %697 = vmatpush1.bf16.msra.mxu0 %v506
  %698 = vmatprep.subr.bf16.mxu0 0
  %699 = vmatpush1.bf16.msra.mxu0 %v507
  %700 = vmatprep.mubr.bf16.mxu0 %v66
  %701 = vmatmul.mubr.bf16.gmra.mrb[0].mxu0 %v65
  %v702 = vpop.f32.mrb[0].mxu0
  %v703 = vadd.f32 %v663, %v702
  %v704 = vpop.f32.mrb[0].mxu0
  %v705 = vpop.f32.mrb[0].mxu0
  %v706 = vpop.f32.mrb[0].mxu0
  %707 = vdwg.mxu0
  %708 = vmatprep.subr.bf16.mxu0 0
  %709 = vmatpush1.bf16.msra.mxu0 %v508
  %710 = vmatprep.subr.bf16.mxu0 0
  %711 = vmatpush1.bf16.msra.mxu0 %v509
  %712 = vmatprep.subr.bf16.mxu0 0
  %713 = vmatpush1.bf16.msra.mxu0 %v510
  %714 = vmatprep.subr.bf16.mxu0 0
  %715 = vmatpush1.bf16.msra.mxu0 %v511
  %716 = vmatprep.subr.bf16.mxu0 0
  %717 = vmatpush1.bf16.msra.mxu0 %v512
  %718 = vmatprep.subr.bf16.mxu0 0
  %719 = vmatpush1.bf16.msra.mxu0 %v513
  %720 = vmatprep.subr.bf16.mxu0 0
  %721 = vmatpush1.bf16.msra.mxu0 %v514
  %722 = vmatprep.subr.bf16.mxu0 0
  %723 = vmatpush1.bf16.msra.mxu0 %v515
  %724 = vmatprep.subr.bf16.mxu0 0
  %725 = vmatpush1.bf16.msra.mxu0 %v516
  %726 = vmatprep.subr.bf16.mxu0 0
  %727 = vmatpush1.bf16.msra.mxu0 %v517
  %728 = vmatprep.subr.bf16.mxu0 0
  %729 = vmatpush1.bf16.msra.mxu0 %v518
  %730 = vmatprep.subr.bf16.mxu0 0
  %731 = vmatpush1.bf16.msra.mxu0 %v519
  %732 = vmatprep.subr.bf16.mxu0 0
  %733 = vmatpush1.bf16.msra.mxu0 %v520
  %734 = vmatprep.subr.bf16.mxu0 0
  %735 = vmatpush1.bf16.msra.mxu0 %v521
  %736 = vmatprep.subr.bf16.mxu0 0
  %737 = vmatpush1.bf16.msra.mxu0 %v522
  %738 = vmatprep.subr.bf16.mxu0 0
  %739 = vmatpush1.bf16.msra.mxu0 %v523
  %740 = vmatprep.mubr.bf16.mxu0 %v68
  %741 = vmatmul.mubr.bf16.gmra.mrb[0].mxu0 %v67
  %v742 = vpop.f32.mrb[0].mxu0
  %v743 = vadd.f32 %v703, %v742
  %v744 = vpop.f32.mrb[0].mxu0
  %v745 = vpop.f32.mrb[0].mxu0
  %v746 = vpop.f32.mrb[0].mxu0
  %747 = vdwg.mxu0
  %v748 = vmax.f32 %v743, 0.0
  %749 = vst [vmem:[%s3] sm:$0x3] %v748
  // Predicated region
  $region14: #{vae_forward.8} parent=0 // pred_check
    _
  $region15: #{vae_forward.8} parent=0 // pred_check_branch
    %751 = sbr.rel (0) target = $region17
  $region16: #{vae_forward.8} parent=0 // pred_region
    _
  $region17: #{vae_forward.8} parent=0 // pred_fallthru
    _
  // Predicated region
  $region18: #{vae_forward.8} parent=0 // pred_check
    _
  $region19: #{vae_forward.8} parent=0 // pred_check_branch
    %753 = sbr.rel (0) target = $region21
  $region20: #{vae_forward.8} parent=0 // pred_region
    _
  $region21: #{vae_forward.8} parent=0 // pred_fallthru
    _

// kernel: vae_forward.9
$region0: #{vae_forward.9}
  #allocation0 [shape = 'u32[]', space=smem, size = 0x4, offset = 0x4, fixed_abs, tag = 'smem constant byte address 0x4 - core index']
  #allocation1 [shape = 'u32[144,128]{1,0:T(1,128)}', space=vmem, size = 0x12000, scoped, tag = 'internal scratch']
  %s0 = inlined_call_operand.vmem [shape: f32[2,128], index: 0, kind: input, shape index: {}]
  %s1 = inlined_call_operand.vmem [shape: f32[2,2], index: 1, kind: input, shape index: {}]
  %s2 = inlined_call_operand.vmem [shape: bf16[128,128], index: 2, kind: input, shape index: {}]
  %s3 = inlined_call_operand.vmem [shape: f32[1,128], index: 3, kind: input, shape index: {}]
  %s4 = inlined_call_operand.vmem [shape: f32[1,128], index: 4, kind: input, shape index: {}]
  %s5 = inlined_call_operand.vmem [shape: f32[1,128], index: 5, kind: input, shape index: {}]
  %s6 = inlined_call_operand.vmem [shape: bf16[128,4], index: 6, kind: input, shape index: {}]
  %s7 = inlined_call_operand.vmem [shape: f32[1,4], index: 7, kind: input, shape index: {}]
  %s8 = inlined_call_operand.vmem [shape: bf16[2,128], index: 8, kind: input, shape index: {}]
  %s9 = inlined_call_operand.vmem [shape: f32[1,128], index: 9, kind: input, shape index: {}]
  %s10 = inlined_call_operand.vmem [shape: bf16[128,128], index: 10, kind: input, shape index: {}]
  %s11 = inlined_call_operand.vmem [shape: f32[1,128], index: 11, kind: input, shape index: {}]
  %s12 = inlined_call_operand.vmem [shape: bf16[128,1024], index: 12, kind: input, shape index: {}]
  %s13 = inlined_call_operand.vmem [shape: f32[1,1024], index: 13, kind: input, shape index: {}]
  %s14 = inlined_call_operand.hbm [shape: f32[2,2], index: 14, kind: output, shape index: {0}]
  %s15 = inlined_call_operand.hbm [shape: f32[2,2], index: 15, kind: output, shape index: {1}]
  %s16 = inlined_call_operand.vmem [shape: f32[2,1024], index: 16, kind: output, shape index: {2}]
  %17 = xla_tuple %s14, %s15, %s16
  %s18 = sld [smem:[#allocation0]]
  $region82: #{vae_forward.9} parent=0
    _
  %s20 = ssub.s32 1, %s18
  %s21 = scalar_select 0, %s20, %s18
  $region1: #{vae_forward.9} parent=0
    #allocation2 [shape = 'u8[1024]{0}', space=vmem, size = 0x400, scoped, tag = 'output window, operand 0, single buffered']
    #allocation3 [shape = 's32[1]{0}', space=sflag, size = 0x4, scoped, tag = 'scoped memory for vae_forward.9']
    #allocation4 [shape = 'u8[1024]{0}', space=vmem, size = 0x400, scoped, tag = 'output window, operand 1, single buffered']
    #allocation5 [shape = 's32[1]{0}', space=sflag, size = 0x4, scoped, tag = 'scoped memory for vae_forward.9']
    %22 = vsyncpa [#allocation3], 0
    %23 = vsyncpa [#allocation5], 0
    // Predicated region
    $region2: #{vae_forward.9} parent=1 // pred_check
      _
    $region3: #{vae_forward.9} parent=1 // pred_check_branch
      %25 = sbr.rel (0) target = $region5
    $region4: #{vae_forward.9} parent=1 // pred_region
      _
    $region5: #{vae_forward.9} parent=1 // pred_fallthru
      _
    // Predicated region
    $region6: #{vae_forward.9} parent=1 // pred_check
      _
    $region7: #{vae_forward.9} parent=1 // pred_check_branch
      %27 = sbr.rel (0) target = $region9
    $region8: #{vae_forward.9} parent=1 // pred_region
      _
    $region9: #{vae_forward.9} parent=1 // pred_fallthru
      _
    // Predicated region
    $region10: #{vae_forward.9} parent=1 // pred_check
      _
    $region11: #{vae_forward.9} parent=1 // pred_check_branch
      %29 = sbr.rel (0) target = $region13
    $region12: #{vae_forward.9} parent=1 // pred_region
      _
    $region13: #{vae_forward.9} parent=1 // pred_fallthru
      _
    // Predicated region
    $region14: #{vae_forward.9} parent=1 // pred_check
      _
    $region15: #{vae_forward.9} parent=1 // pred_check_branch
      %31 = sbr.rel (0) target = $region17
    $region16: #{vae_forward.9} parent=1 // pred_region
      _
    $region17: #{vae_forward.9} parent=1 // pred_fallthru
      _
    // Predicated region
    $region18: #{vae_forward.9} parent=1 // pred_check
      _
    $region19: #{vae_forward.9} parent=1 // pred_check_branch
      %33 = sbr.rel (0) target = $region21
    $region20: #{vae_forward.9} parent=1 // pred_region
      _
    $region21: #{vae_forward.9} parent=1 // pred_fallthru
      _
    // Predicated region
    $region22: #{vae_forward.9} parent=1 // pred_check
      _
    $region23: #{vae_forward.9} parent=1 // pred_check_branch
      %35 = sbr.rel (0) target = $region25
    $region24: #{vae_forward.9} parent=1 // pred_region
      _
    $region25: #{vae_forward.9} parent=1 // pred_fallthru
      _
    // Predicated region
    $region26: #{vae_forward.9} parent=1 // pred_check
      _
    $region27: #{vae_forward.9} parent=1 // pred_check_branch
      %37 = sbr.rel (0) target = $region29
    $region28: #{vae_forward.9} parent=1 // pred_region
      _
    $region29: #{vae_forward.9} parent=1 // pred_fallthru
      _
    // Predicated region
    $region30: #{vae_forward.9} parent=1 // pred_check
      _
    $region31: #{vae_forward.9} parent=1 // pred_check_branch
      %39 = sbr.rel (0) target = $region33
    $region32: #{vae_forward.9} parent=1 // pred_region
      _
    $region33: #{vae_forward.9} parent=1 // pred_fallthru
      _
    // Predicated region
    $region34: #{vae_forward.9} parent=1 // pred_check
      _
    $region35: #{vae_forward.9} parent=1 // pred_check_branch
      %41 = sbr.rel (0) target = $region37
    $region36: #{vae_forward.9} parent=1 // pred_region
      _
    $region37: #{vae_forward.9} parent=1 // pred_fallthru
      _
    // Predicated region
    $region38: #{vae_forward.9} parent=1 // pred_check
      _
    $region39: #{vae_forward.9} parent=1 // pred_check_branch
      %43 = sbr.rel (0) target = $region41
    $region40: #{vae_forward.9} parent=1 // pred_region
      _
    $region41: #{vae_forward.9} parent=1 // pred_fallthru
      _
    // Predicated region
    $region42: #{vae_forward.9} parent=1 // pred_check
      _
    $region43: #{vae_forward.9} parent=1 // pred_check_branch
      %45 = sbr.rel (0) target = $region45
    $region44: #{vae_forward.9} parent=1 // pred_region
      _
    $region45: #{vae_forward.9} parent=1 // pred_fallthru
      _
    // Predicated region
    $region46: #{vae_forward.9} parent=1 // pred_check
      _
    $region47: #{vae_forward.9} parent=1 // pred_check_branch
      %47 = sbr.rel (0) target = $region49
    $region48: #{vae_forward.9} parent=1 // pred_region
      _
    $region49: #{vae_forward.9} parent=1 // pred_fallthru
      _
    // Predicated region
    $region50: #{vae_forward.9} parent=1 // pred_check
      _
    $region51: #{vae_forward.9} parent=1 // pred_check_branch
      %49 = sbr.rel (0) target = $region53
    $region52: #{vae_forward.9} parent=1 // pred_region
      _
    $region53: #{vae_forward.9} parent=1 // pred_fallthru
      _
    // Predicated region
    $region54: #{vae_forward.9} parent=1 // pred_check
      _
    $region55: #{vae_forward.9} parent=1 // pred_check_branch
      %51 = sbr.rel (0) target = $region57
    $region56: #{vae_forward.9} parent=1 // pred_region
      _
    $region57: #{vae_forward.9} parent=1 // pred_fallthru
      _
    %v53 = vld [vmem:[%s0] sm:$0x3]
    %v54 = vpack.c.bf16 %v53, %v53
    %v55 = vld [vmem:[%s2] sm:$0xf]
    %v56 = vld [vmem:[%s2 + $0x4] sm:$0xf]
    %v57 = vld [vmem:[%s2 + $0x8] sm:$0xf]
    %v58 = vld [vmem:[%s2 + $0xc] sm:$0xf]
    %v59 = vld [vmem:[%s2 + $0x10] sm:$0xf]
    %v60 = vld [vmem:[%s2 + $0x14] sm:$0xf]
    %v61 = vld [vmem:[%s2 + $0x18] sm:$0xf]
    %v62 = vld [vmem:[%s2 + $0x1c] sm:$0xf]
    %v63 = vld [vmem:[%s2 + $0x20] sm:$0xf]
    %v64 = vld [vmem:[%s2 + $0x24] sm:$0xf]
    %v65 = vld [vmem:[%s2 + $0x28] sm:$0xf]
    %v66 = vld [vmem:[%s2 + $0x2c] sm:$0xf]
    %v67 = vld [vmem:[%s2 + $0x30] sm:$0xf]
    %v68 = vld [vmem:[%s2 + $0x34] sm:$0xf]
    %v69 = vld [vmem:[%s2 + $0x38] sm:$0xf]
    %v70 = vld [vmem:[%s2 + $0x3c] sm:$0xf]
    %v71 = vld [vmem:[%s3] sm:$0x1]
    %v73 = vlaneseq
    %v74 = vshrl.u32 %v73, 7
    %v75 = vsub.s32 0, %v74
    %v76 = vrot.slane %v71, %v75
    %v94 = vunpack.c.l.b16 %v55
    %v95 = vunpack.c.l.b16 %v56
    %v96 = vunpack.c.l.b16 %v57
    %v97 = vunpack.c.l.b16 %v58
    %v98 = vunpack.c.l.b16 %v59
    %v99 = vunpack.c.l.b16 %v60
    %v100 = vunpack.c.l.b16 %v61
    %v101 = vunpack.c.l.b16 %v62
    %v102 = vunpack.c.l.b16 %v63
    %v103 = vunpack.c.l.b16 %v64
    %v104 = vunpack.c.l.b16 %v65
    %v105 = vunpack.c.l.b16 %v66
    %v106 = vunpack.c.l.b16 %v67
    %v107 = vunpack.c.l.b16 %v68
    %v108 = vunpack.c.l.b16 %v69
    %v109 = vunpack.c.l.b16 %v70
    %v110 = vpack.c.b16 %v95, %v94
    %v111 = vpack.c.b16 %v97, %v96
    %v112 = vpack.c.b16 %v99, %v98
    %v113 = vpack.c.b16 %v101, %v100
    %v114 = vpack.c.b16 %v103, %v102
    %v115 = vpack.c.b16 %v105, %v104
    %v116 = vpack.c.b16 %v107, %v106
    %v117 = vpack.c.b16 %v109, %v108
    %126 = vmatprep.subr.bf16.mxu0 0
    %127 = vmatpush1.bf16.msra.mxu0 %v110
    %128 = vmatprep.subr.bf16.mxu0 0
    %129 = vmatpush1.bf16.msra.mxu0 %v111
    %130 = vmatprep.subr.bf16.mxu0 0
    %131 = vmatpush1.bf16.msra.mxu0 %v112
    %132 = vmatprep.subr.bf16.mxu0 0
    %133 = vmatpush1.bf16.msra.mxu0 %v113
    %134 = vmatprep.subr.bf16.mxu0 0
    %135 = vmatpush1.bf16.msra.mxu0 %v114
    %136 = vmatprep.subr.bf16.mxu0 0
    %137 = vmatpush1.bf16.msra.mxu0 %v115
    %138 = vmatprep.subr.bf16.mxu0 0
    %139 = vmatpush1.bf16.msra.mxu0 %v116
    %140 = vmatprep.subr.bf16.mxu0 0
    %141 = vmatpush1.bf16.msra.mxu0 %v117
    %142 = vmatprep.subr.bf16.mxu0 0
    %143 = vmatpush1.bf16.msra.mxu0 0
    %144 = vmatprep.subr.bf16.mxu0 0
    %145 = vmatpush1.bf16.msra.mxu0 0
    %146 = vmatprep.subr.bf16.mxu0 0
    %147 = vmatpush1.bf16.msra.mxu0 0
    %148 = vmatprep.subr.bf16.mxu0 0
    %149 = vmatpush1.bf16.msra.mxu0 0
    %150 = vmatprep.subr.bf16.mxu0 0
    %151 = vmatpush1.bf16.msra.mxu0 0
    %152 = vmatprep.subr.bf16.mxu0 0
    %153 = vmatpush1.bf16.msra.mxu0 0
    %154 = vmatprep.subr.bf16.mxu0 0
    %155 = vmatpush1.bf16.msra.mxu0 0
    %156 = vmatprep.subr.bf16.mxu0 0
    %157 = vmatpush1.bf16.msra.mxu0 0
    %158 = vmatprep.mubr.bf16.mxu0 0
    %159 = vmatmul.mubr.bf16.gmra.mrb[0].mxu0 %v54
    %v160 = vpop.f32.mrb[0].mxu0
    %v161 = vadd.f32 %v76, %v160
    %v162 = vpop.f32.mrb[0].mxu0
    %v163 = vpop.f32.mrb[0].mxu0
    %v164 = vpop.f32.mrb[0].mxu0
    %165 = vdwg.mxu0
    %vm166 = vcmask 1041408
    %v167 = vsel %vm166, %v161, 0.0
    %v168 = vrot.slane %v167, 4
    %v169 = vadd.f32 %v167, %v168
    %v170 = vrot.slane %v169, 2
    %v171 = vadd.f32 %v169, %v170
    %v172 = vrot.slane %v171, 1
    %v173 = vadd.f32 %v171, %v172
    %v174 = vrcp.pop 2.0
    %v175 = vmul.f32 %v173, %v174
    %v176 = vsub.f32 %v161, %v175
    %v177 = vmul.f32 %v176, %v176
    %v178 = vsel %vm166, %v177, 0.0
    %v179 = vrot.slane %v178, 4
    %v180 = vadd.f32 %v178, %v179
    %v181 = vrot.slane %v180, 2
    %v182 = vadd.f32 %v180, %v181
    %v183 = vrot.slane %v182, 1
    %v184 = vadd.f32 %v182, %v183
    %v185 = vmul.f32 %v184, %v174
    %v186 = vadd.f32 %v185, 1e-05
    %v187 = vrsqrt.pop %v186
    %v188 = vmul.f32 %v176, %v187
    %v189 = vld [vmem:[%s4] sm:$0x1]
    %v191 = vlaneseq
    %v192 = vshrl.u32 %v191, 7
    %v193 = vsub.s32 0, %v192
    %v194 = vrot.slane %v189, %v193
    %v196 = vmul.f32 %v188, %v194
    %v197 = vld [vmem:[%s5] sm:$0x1]
    %v199 = vlaneseq
    %v200 = vshrl.u32 %v199, 7
    %v201 = vsub.s32 0, %v200
    %v202 = vrot.slane %v197, %v201
    %v204 = vadd.f32 %v196, %v202
    %v205 = vmax.f32 %v204, 0.0
    %v206 = vpack.c.bf16 %v205, %v205
    %v207 = vld [vmem:[%s6] sm:$0xf]
    %v208 = vld [vmem:[%s6 + $0x4] sm:$0xf]
    %v209 = vld [vmem:[%s6 + $0x8] sm:$0xf]
    %v210 = vld [vmem:[%s6 + $0xc] sm:$0xf]
    %v211 = vld [vmem:[%s6 + $0x10] sm:$0xf]
    %v212 = vld [vmem:[%s6 + $0x14] sm:$0xf]
    %v213 = vld [vmem:[%s6 + $0x18] sm:$0xf]
    %v214 = vld [vmem:[%s6 + $0x1c] sm:$0xf]
    %v215 = vld [vmem:[%s6 + $0x20] sm:$0xf]
    %v216 = vld [vmem:[%s6 + $0x24] sm:$0xf]
    %v217 = vld [vmem:[%s6 + $0x28] sm:$0xf]
    %v218 = vld [vmem:[%s6 + $0x2c] sm:$0xf]
    %v219 = vld [vmem:[%s6 + $0x30] sm:$0xf]
    %v220 = vld [vmem:[%s6 + $0x34] sm:$0xf]
    %v221 = vld [vmem:[%s6 + $0x38] sm:$0xf]
    %v222 = vld [vmem:[%s6 + $0x3c] sm:$0xf]
    %v223 = vld [vmem:[%s7] sm:$0x1]
    %v225 = vlaneseq
    %v226 = vshrl.u32 %v225, 7
    %v227 = vsub.s32 0, %v226
    %v228 = vrot.slane %v223, %v227
    %v246 = vunpack.c.l.b16 %v207
    %v247 = vunpack.c.l.b16 %v208
    %v248 = vunpack.c.l.b16 %v209
    %v249 = vunpack.c.l.b16 %v210
    %v250 = vunpack.c.l.b16 %v211
    %v251 = vunpack.c.l.b16 %v212
    %v252 = vunpack.c.l.b16 %v213
    %v253 = vunpack.c.l.b16 %v214
    %v254 = vunpack.c.l.b16 %v215
    %v255 = vunpack.c.l.b16 %v216
    %v256 = vunpack.c.l.b16 %v217
    %v257 = vunpack.c.l.b16 %v218
    %v258 = vunpack.c.l.b16 %v219
    %v259 = vunpack.c.l.b16 %v220
    %v260 = vunpack.c.l.b16 %v221
    %v261 = vunpack.c.l.b16 %v222
    %v262 = vpack.c.b16 %v247, %v246
    %v263 = vpack.c.b16 %v249, %v248
    %v264 = vpack.c.b16 %v251, %v250
    %v265 = vpack.c.b16 %v253, %v252
    %v266 = vpack.c.b16 %v255, %v254
    %v267 = vpack.c.b16 %v257, %v256
    %v268 = vpack.c.b16 %v259, %v258
    %v269 = vpack.c.b16 %v261, %v260
    %278 = vmatprep.subr.bf16.mxu0 0
    %279 = vmatpush1.bf16.msra.mxu0 %v262
    %280 = vmatprep.subr.bf16.mxu0 0
    %281 = vmatpush1.bf16.msra.mxu0 %v263
    %282 = vmatprep.subr.bf16.mxu0 0
    %283 = vmatpush1.bf16.msra.mxu0 %v264
    %284 = vmatprep.subr.bf16.mxu0 0
    %285 = vmatpush1.bf16.msra.mxu0 %v265
    %286 = vmatprep.subr.bf16.mxu0 0
    %287 = vmatpush1.bf16.msra.mxu0 %v266
    %288 = vmatprep.subr.bf16.mxu0 0
    %289 = vmatpush1.bf16.msra.mxu0 %v267
    %290 = vmatprep.subr.bf16.mxu0 0
    %291 = vmatpush1.bf16.msra.mxu0 %v268
    %292 = vmatprep.subr.bf16.mxu0 0
    %293 = vmatpush1.bf16.msra.mxu0 %v269
    %294 = vmatprep.subr.bf16.mxu0 0
    %295 = vmatpush1.bf16.msra.mxu0 0
    %296 = vmatprep.subr.bf16.mxu0 0
    %297 = vmatpush1.bf16.msra.mxu0 0
    %298 = vmatprep.subr.bf16.mxu0 0
    %299 = vmatpush1.bf16.msra.mxu0 0
    %300 = vmatprep.subr.bf16.mxu0 0
    %301 = vmatpush1.bf16.msra.mxu0 0
    %302 = vmatprep.subr.bf16.mxu0 0
    %303 = vmatpush1.bf16.msra.mxu0 0
    %304 = vmatprep.subr.bf16.mxu0 0
    %305 = vmatpush1.bf16.msra.mxu0 0
    %306 = vmatprep.subr.bf16.mxu0 0
    %307 = vmatpush1.bf16.msra.mxu0 0
    %308 = vmatprep.subr.bf16.mxu0 0
    %309 = vmatpush1.bf16.msra.mxu0 0
    %310 = vmatprep.mubr.bf16.mxu0 0
    %311 = vmatmul.mubr.bf16.gmra.mrb[0].mxu0 %v206
    %v312 = vpop.f32.mrb[0].mxu0
    %v313 = vadd.f32 %v228, %v312
    %v314 = vpop.f32.mrb[0].mxu0
    %v315 = vpop.f32.mrb[0].mxu0
    %v316 = vpop.f32.mrb[0].mxu0
    %317 = vdwg.mxu0
    %v318 = vmul.f32 %v313, 0.5
    %v319 = vmul.f32 %v318, 1.442695
    %v320 = vpow.pop %v319
    %v321 = vld [vmem:[%s1] sm:$0x3]
    %323 = vrot.lane.b32.xlu0 %v321, 2
    %v324 = vpop.permute.xlu0 %323
    %v326 = vmul.f32 %v320, %v324
    %328 = vrot.lane.b32.xlu0 %v326, 126
    %v329 = vpop.permute.xlu0 %328
    %v331 = vadd.f32 %v313, %v329
    %v332 = vpack.c.bf16 %v331, %v331
    %v333 = vld [vmem:[%s8] sm:$0x1]
    %v334 = vld [vmem:[%s9] sm:$0x1]
    %v336 = vlaneseq
    %v337 = vshrl.u32 %v336, 7
    %v338 = vsub.s32 0, %v337
    %v339 = vrot.slane %v334, %v338
    %vm341 = vcmask 15360
    %v343 = vsel %vm341, %v332, 0
    %vm345 = vcmask 1040384
    %v347 = vsel %vm345, %v333, 0
    %349 = vmatprep.subr.bf16.mxu0 0
    %350 = vmatpush1.bf16.msra.mxu0 %v347
    %351 = vmatprep.subr.bf16.mxu0 0
    %352 = vmatpush1.bf16.msra.mxu0 0
    %353 = vmatprep.subr.bf16.mxu0 0
    %354 = vmatpush1.bf16.msra.mxu0 0
    %355 = vmatprep.subr.bf16.mxu0 0
    %356 = vmatpush1.bf16.msra.mxu0 0
    %357 = vmatprep.subr.bf16.mxu0 0
    %358 = vmatpush1.bf16.msra.mxu0 0
    %359 = vmatprep.subr.bf16.mxu0 0
    %360 = vmatpush1.bf16.msra.mxu0 0
    %361 = vmatprep.subr.bf16.mxu0 0
    %362 = vmatpush1.bf16.msra.mxu0 0
    %363 = vmatprep.subr.bf16.mxu0 0
    %364 = vmatpush1.bf16.msra.mxu0 0
    %365 = vmatprep.subr.bf16.mxu0 0
    %366 = vmatpush1.bf16.msra.mxu0 0
    %367 = vmatprep.subr.bf16.mxu0 0
    %368 = vmatpush1.bf16.msra.mxu0 0
    %369 = vmatprep.subr.bf16.mxu0 0
    %370 = vmatpush1.bf16.msra.mxu0 0
    %371 = vmatprep.subr.bf16.mxu0 0
    %372 = vmatpush1.bf16.msra.mxu0 0
    %373 = vmatprep.subr.bf16.mxu0 0
    %374 = vmatpush1.bf16.msra.mxu0 0
    %375 = vmatprep.subr.bf16.mxu0 0
    %376 = vmatpush1.bf16.msra.mxu0 0
    %377 = vmatprep.subr.bf16.mxu0 0
    %378 = vmatpush1.bf16.msra.mxu0 0
    %379 = vmatprep.subr.bf16.mxu0 0
    %380 = vmatpush1.bf16.msra.mxu0 0
    %381 = vmatprep.mubr.bf16.mxu0 0
    %382 = vmatmul.mubr.bf16.gmra.mrb[0].mxu0 %v343
    %v383 = vpop.f32.mrb[0].mxu0
    %v384 = vadd.f32 %v339, %v383
    %v385 = vpop.f32.mrb[0].mxu0
    %v386 = vpop.f32.mrb[0].mxu0
    %v387 = vpop.f32.mrb[0].mxu0
    %388 = vdwg.mxu0
    %v389 = vpack.c.bf16 %v384, %v384
    %v390 = vld [vmem:[%s10] sm:$0xf]
    %v391 = vld [vmem:[%s10 + $0x4] sm:$0xf]
    %v392 = vld [vmem:[%s10 + $0x8] sm:$0xf]
    %v393 = vld [vmem:[%s10 + $0xc] sm:$0xf]
    %v394 = vld [vmem:[%s10 + $0x10] sm:$0xf]
    %v395 = vld [vmem:[%s10 + $0x14] sm:$0xf]
    %v396 = vld [vmem:[%s10 + $0x18] sm:$0xf]
    %v397 = vld [vmem:[%s10 + $0x1c] sm:$0xf]
    %v398 = vld [vmem:[%s10 + $0x20] sm:$0xf]
    %v399 = vld [vmem:[%s10 + $0x24] sm:$0xf]
    %v400 = vld [vmem:[%s10 + $0x28] sm:$0xf]
    %v401 = vld [vmem:[%s10 + $0x2c] sm:$0xf]
    %v402 = vld [vmem:[%s10 + $0x30] sm:$0xf]
    %v403 = vld [vmem:[%s10 + $0x34] sm:$0xf]
    %v404 = vld [vmem:[%s10 + $0x38] sm:$0xf]
    %v405 = vld [vmem:[%s10 + $0x3c] sm:$0xf]
    %v406 = vld [vmem:[%s11] sm:$0x1]
    %v408 = vlaneseq
    %v409 = vshrl.u32 %v408, 7
    %v410 = vsub.s32 0, %v409
    %v411 = vrot.slane %v406, %v410
    %v429 = vunpack.c.l.b16 %v390
    %v430 = vunpack.c.l.b16 %v391
    %v431 = vunpack.c.l.b16 %v392
    %v432 = vunpack.c.l.b16 %v393
    %v433 = vunpack.c.l.b16 %v394
    %v434 = vunpack.c.l.b16 %v395
    %v435 = vunpack.c.l.b16 %v396
    %v436 = vunpack.c.l.b16 %v397
    %v437 = vunpack.c.l.b16 %v398
    %v438 = vunpack.c.l.b16 %v399
    %v439 = vunpack.c.l.b16 %v400
    %v440 = vunpack.c.l.b16 %v401
    %v441 = vunpack.c.l.b16 %v402
    %v442 = vunpack.c.l.b16 %v403
    %v443 = vunpack.c.l.b16 %v404
    %v444 = vunpack.c.l.b16 %v405
    %v445 = vpack.c.b16 %v430, %v429
    %v446 = vpack.c.b16 %v432, %v431
    %v447 = vpack.c.b16 %v434, %v433
    %v448 = vpack.c.b16 %v436, %v435
    %v449 = vpack.c.b16 %v438, %v437
    %v450 = vpack.c.b16 %v440, %v439
    %v451 = vpack.c.b16 %v442, %v441
    %v452 = vpack.c.b16 %v444, %v443
    %461 = vmatprep.subr.bf16.mxu0 0
    %462 = vmatpush1.bf16.msra.mxu0 %v445
    %463 = vmatprep.subr.bf16.mxu0 0
    %464 = vmatpush1.bf16.msra.mxu0 %v446
    %465 = vmatprep.subr.bf16.mxu0 0
    %466 = vmatpush1.bf16.msra.mxu0 %v447
    %467 = vmatprep.subr.bf16.mxu0 0
    %468 = vmatpush1.bf16.msra.mxu0 %v448
    %469 = vmatprep.subr.bf16.mxu0 0
    %470 = vmatpush1.bf16.msra.mxu0 %v449
    %471 = vmatprep.subr.bf16.mxu0 0
    %472 = vmatpush1.bf16.msra.mxu0 %v450
    %473 = vmatprep.subr.bf16.mxu0 0
    %474 = vmatpush1.bf16.msra.mxu0 %v451
    %475 = vmatprep.subr.bf16.mxu0 0
    %476 = vmatpush1.bf16.msra.mxu0 %v452
    %477 = vmatprep.subr.bf16.mxu0 0
    %478 = vmatpush1.bf16.msra.mxu0 0
    %479 = vmatprep.subr.bf16.mxu0 0
    %480 = vmatpush1.bf16.msra.mxu0 0
    %481 = vmatprep.subr.bf16.mxu0 0
    %482 = vmatpush1.bf16.msra.mxu0 0
    %483 = vmatprep.subr.bf16.mxu0 0
    %484 = vmatpush1.bf16.msra.mxu0 0
    %485 = vmatprep.subr.bf16.mxu0 0
    %486 = vmatpush1.bf16.msra.mxu0 0
    %487 = vmatprep.subr.bf16.mxu0 0
    %488 = vmatpush1.bf16.msra.mxu0 0
    %489 = vmatprep.subr.bf16.mxu0 0
    %490 = vmatpush1.bf16.msra.mxu0 0
    %491 = vmatprep.subr.bf16.mxu0 0
    %492 = vmatpush1.bf16.msra.mxu0 0
    %493 = vmatprep.mubr.bf16.mxu0 0
    %494 = vmatmul.mubr.bf16.gmra.mrb[0].mxu0 %v389
    %v495 = vpop.f32.mrb[0].mxu0
    %v496 = vadd.f32 %v411, %v495
    %v497 = vpop.f32.mrb[0].mxu0
    %v498 = vpop.f32.mrb[0].mxu0
    %v499 = vpop.f32.mrb[0].mxu0
    %500 = vdwg.mxu0
    %v501 = vmax.f32 %v496, 0.0
    %v502 = vpack.c.bf16 %v501, %v501
    %v503 = vld [vmem:[%s12] sm:$0xff]
    %v504 = vld [vmem:[%s12 + $0x8] sm:$0xff]
    %v505 = vld [vmem:[%s12 + $0x10] sm:$0xff]
    %v506 = vld [vmem:[%s12 + $0x18] sm:$0xff]
    %v507 = vld [vmem:[%s12 + $0x20] sm:$0xff]
    %v508 = vld [vmem:[%s12 + $0x28] sm:$0xff]
    %v509 = vld [vmem:[%s12 + $0x30] sm:$0xff]
    %v510 = vld [vmem:[%s12 + $0x38] sm:$0xff]
    %v511 = vld [vmem:[%s12 + $0x40] sm:$0xff]
    %v512 = vld [vmem:[%s12 + $0x48] sm:$0xff]
    %v513 = vld [vmem:[%s12 + $0x50] sm:$0xff]
    %v514 = vld [vmem:[%s12 + $0x58] sm:$0xff]
    %v515 = vld [vmem:[%s12 + $0x60] sm:$0xff]
    %v516 = vld [vmem:[%s12 + $0x68] sm:$0xff]
    %v517 = vld [vmem:[%s12 + $0x70] sm:$0xff]
    %v518 = vld [vmem:[%s12 + $0x78] sm:$0xff]
    %v519 = vld [vmem:[%s12 + $0x80] sm:$0xff]
    %v520 = vld [vmem:[%s12 + $0x88] sm:$0xff]
    %v521 = vld [vmem:[%s12 + $0x90] sm:$0xff]
    %v522 = vld [vmem:[%s12 + $0x98] sm:$0xff]
    %v523 = vld [vmem:[%s12 + $0xa0] sm:$0xff]
    %v524 = vld [vmem:[%s12 + $0xa8] sm:$0xff]
    %v525 = vld [vmem:[%s12 + $0xb0] sm:$0xff]
    %v526 = vld [vmem:[%s12 + $0xb8] sm:$0xff]
    %v527 = vld [vmem:[%s12 + $0xc0] sm:$0xff]
    %v528 = vld [vmem:[%s12 + $0xc8] sm:$0xff]
    %v529 = vld [vmem:[%s12 + $0xd0] sm:$0xff]
    %v530 = vld [vmem:[%s12 + $0xd8] sm:$0xff]
    %v531 = vld [vmem:[%s12 + $0xe0] sm:$0xff]
    %v532 = vld [vmem:[%s12 + $0xe8] sm:$0xff]
    %v533 = vld [vmem:[%s12 + $0xf0] sm:$0xff]
    %v534 = vld [vmem:[%s12 + $0xf8] sm:$0xff]
    %v535 = vld [vmem:[%s12 + $0x100] sm:$0xff]
    %v536 = vld [vmem:[%s12 + $0x108] sm:$0xff]
    %v537 = vld [vmem:[%s12 + $0x110] sm:$0xff]
    %v538 = vld [vmem:[%s12 + $0x118] sm:$0xff]
    %v539 = vld [vmem:[%s12 + $0x120] sm:$0xff]
    %v540 = vld [vmem:[%s12 + $0x128] sm:$0xff]
    %v541 = vld [vmem:[%s12 + $0x130] sm:$0xff]
    %v542 = vld [vmem:[%s12 + $0x138] sm:$0xff]
    %v543 = vld [vmem:[%s12 + $0x140] sm:$0xff]
    %v544 = vld [vmem:[%s12 + $0x148] sm:$0xff]
    %v545 = vld [vmem:[%s12 + $0x150] sm:$0xff]
    %v546 = vld [vmem:[%s12 + $0x158] sm:$0xff]
    %v547 = vld [vmem:[%s12 + $0x160] sm:$0xff]
    %v548 = vld [vmem:[%s12 + $0x168] sm:$0xff]
    %v549 = vld [vmem:[%s12 + $0x170] sm:$0xff]
    %v550 = vld [vmem:[%s12 + $0x178] sm:$0xff]
    %v551 = vld [vmem:[%s12 + $0x180] sm:$0xff]
    %v552 = vld [vmem:[%s12 + $0x188] sm:$0xff]
    %v553 = vld [vmem:[%s12 + $0x190] sm:$0xff]
    %v554 = vld [vmem:[%s12 + $0x198] sm:$0xff]
    %v555 = vld [vmem:[%s12 + $0x1a0] sm:$0xff]
    %v556 = vld [vmem:[%s12 + $0x1a8] sm:$0xff]
    %v557 = vld [vmem:[%s12 + $0x1b0] sm:$0xff]
    %v558 = vld [vmem:[%s12 + $0x1b8] sm:$0xff]
    %v559 = vld [vmem:[%s12 + $0x1c0] sm:$0xff]
    %v560 = vld [vmem:[%s12 + $0x1c8] sm:$0xff]
    %v561 = vld [vmem:[%s12 + $0x1d0] sm:$0xff]
    %v562 = vld [vmem:[%s12 + $0x1d8] sm:$0xff]
    %v563 = vld [vmem:[%s12 + $0x1e0] sm:$0xff]
    %v564 = vld [vmem:[%s12 + $0x1e8] sm:$0xff]
    %v565 = vld [vmem:[%s12 + $0x1f0] sm:$0xff]
    %v566 = vld [vmem:[%s12 + $0x1f8] sm:$0xff]
    %v567 = vld [vmem:[%s13] sm:$0xff]
    %v569 = vlaneseq
    %v570 = vshrl.u32 %v569, 7
    %v571 = vsub.s32 0, %v570
    %v572 = vrot.slane %v567, %v571
    %v573 = vlaneseq
    %v574 = vshrl.u32 %v573, 7
    %v575 = vsub.s32 1, %v574
    %v576 = vrot.slane %v567, %v575
    %v577 = vlaneseq
    %v578 = vshrl.u32 %v577, 7
    %v579 = vsub.s32 2, %v578
    %v580 = vrot.slane %v567, %v579
    %v581 = vlaneseq
    %v582 = vshrl.u32 %v581, 7
    %v583 = vsub.s32 3, %v582
    %v584 = vrot.slane %v567, %v583
    %v585 = vlaneseq
    %v586 = vshrl.u32 %v585, 7
    %v587 = vsub.s32 4, %v586
    %v588 = vrot.slane %v567, %v587
    %v589 = vlaneseq
    %v590 = vshrl.u32 %v589, 7
    %v591 = vsub.s32 5, %v590
    %v592 = vrot.slane %v567, %v591
    %v593 = vlaneseq
    %v594 = vshrl.u32 %v593, 7
    %v595 = vsub.s32 6, %v594
    %v596 = vrot.slane %v567, %v595
    %v597 = vlaneseq
    %v598 = vshrl.u32 %v597, 7
    %v599 = vsub.s32 7, %v598
    %v600 = vrot.slane %v567, %v599
    %v673 = vunpack.c.l.b16 %v503
    %v674 = vunpack.c.h.b16 %v503
    %v675 = vunpack.c.l.b16 %v504
    %v676 = vunpack.c.h.b16 %v504
    %v677 = vunpack.c.l.b16 %v505
    %v678 = vunpack.c.h.b16 %v505
    %v679 = vunpack.c.l.b16 %v506
    %v680 = vunpack.c.h.b16 %v506
    %v681 = vunpack.c.l.b16 %v507
    %v682 = vunpack.c.h.b16 %v507
    %v683 = vunpack.c.l.b16 %v508
    %v684 = vunpack.c.h.b16 %v508
    %v685 = vunpack.c.l.b16 %v509
    %v686 = vunpack.c.h.b16 %v509
    %v687 = vunpack.c.l.b16 %v510
    %v688 = vunpack.c.h.b16 %v510
    %v689 = vunpack.c.l.b16 %v511
    %v690 = vunpack.c.h.b16 %v511
    %v691 = vunpack.c.l.b16 %v512
    %v692 = vunpack.c.h.b16 %v512
    %v693 = vunpack.c.l.b16 %v513
    %v694 = vunpack.c.h.b16 %v513
    %v695 = vunpack.c.l.b16 %v514
    %v696 = vunpack.c.h.b16 %v514
    %v697 = vunpack.c.l.b16 %v515
    %v698 = vunpack.c.h.b16 %v515
    %v699 = vunpack.c.l.b16 %v516
    %v700 = vunpack.c.h.b16 %v516
    %v701 = vunpack.c.l.b16 %v517
    %v702 = vunpack.c.h.b16 %v517
    %v703 = vunpack.c.l.b16 %v518
    %v704 = vunpack.c.h.b16 %v518
    %v705 = vunpack.c.l.b16 %v519
    %v706 = vunpack.c.h.b16 %v519
    %v707 = vunpack.c.l.b16 %v520
    %v708 = vunpack.c.h.b16 %v520
    %v709 = vunpack.c.l.b16 %v521
    %v710 = vunpack.c.h.b16 %v521
    %v711 = vunpack.c.l.b16 %v522
    %v712 = vunpack.c.h.b16 %v522
    %v713 = vunpack.c.l.b16 %v523
    %v714 = vunpack.c.h.b16 %v523
    %v715 = vunpack.c.l.b16 %v524
    %v716 = vunpack.c.h.b16 %v524
    %v717 = vunpack.c.l.b16 %v525
    %v718 = vunpack.c.h.b16 %v525
    %v719 = vunpack.c.l.b16 %v526
    %v720 = vunpack.c.h.b16 %v526
    %v721 = vunpack.c.l.b16 %v527
    %v722 = vunpack.c.h.b16 %v527
    %v723 = vunpack.c.l.b16 %v528
    %v724 = vunpack.c.h.b16 %v528
    %v725 = vunpack.c.l.b16 %v529
    %v726 = vunpack.c.h.b16 %v529
    %v727 = vunpack.c.l.b16 %v530
    %v728 = vunpack.c.h.b16 %v530
    %v729 = vunpack.c.l.b16 %v531
    %v730 = vunpack.c.h.b16 %v531
    %v731 = vunpack.c.l.b16 %v532
    %v732 = vunpack.c.h.b16 %v532
    %v733 = vunpack.c.l.b16 %v533
    %v734 = vunpack.c.h.b16 %v533
    %v735 = vunpack.c.l.b16 %v534
    %v736 = vunpack.c.h.b16 %v534
    %v737 = vunpack.c.l.b16 %v535
    %v738 = vunpack.c.h.b16 %v535
    %v739 = vunpack.c.l.b16 %v536
    %v740 = vunpack.c.h.b16 %v536
    %v741 = vunpack.c.l.b16 %v537
    %v742 = vunpack.c.h.b16 %v537
    %v743 = vunpack.c.l.b16 %v538
    %v744 = vunpack.c.h.b16 %v538
    %v745 = vunpack.c.l.b16 %v539
    %v746 = vunpack.c.h.b16 %v539
    %v747 = vunpack.c.l.b16 %v540
    %v748 = vunpack.c.h.b16 %v540
    %v749 = vunpack.c.l.b16 %v541
    %v750 = vunpack.c.h.b16 %v541
    %v751 = vunpack.c.l.b16 %v542
    %v752 = vunpack.c.h.b16 %v542
    %v753 = vunpack.c.l.b16 %v543
    %v754 = vunpack.c.h.b16 %v543
    %v755 = vunpack.c.l.b16 %v544
    %v756 = vunpack.c.h.b16 %v544
    %v757 = vunpack.c.l.b16 %v545
    %v758 = vunpack.c.h.b16 %v545
    %v759 = vunpack.c.l.b16 %v546
    %v760 = vunpack.c.h.b16 %v546
    %v761 = vunpack.c.l.b16 %v547
    %v762 = vunpack.c.h.b16 %v547
    %v763 = vunpack.c.l.b16 %v548
    %v764 = vunpack.c.h.b16 %v548
    %v765 = vunpack.c.l.b16 %v549
    %v766 = vunpack.c.h.b16 %v549
    %v767 = vunpack.c.l.b16 %v550
    %v768 = vunpack.c.h.b16 %v550
    %v769 = vunpack.c.l.b16 %v551
    %v770 = vunpack.c.h.b16 %v551
    %v771 = vunpack.c.l.b16 %v552
    %v772 = vunpack.c.h.b16 %v552
    %v773 = vunpack.c.l.b16 %v553
    %v774 = vunpack.c.h.b16 %v553
    %v775 = vunpack.c.l.b16 %v554
    %v776 = vunpack.c.h.b16 %v554
    %v777 = vunpack.c.l.b16 %v555
    %v778 = vunpack.c.h.b16 %v555
    %v779 = vunpack.c.l.b16 %v556
    %v780 = vunpack.c.h.b16 %v556
    %v781 = vunpack.c.l.b16 %v557
    %v782 = vunpack.c.h.b16 %v557
    %v783 = vunpack.c.l.b16 %v558
    %v784 = vunpack.c.h.b16 %v558
    %v785 = vunpack.c.l.b16 %v559
    %v786 = vunpack.c.h.b16 %v559
    %v787 = vunpack.c.l.b16 %v560
    %v788 = vunpack.c.h.b16 %v560
    %v789 = vunpack.c.l.b16 %v561
    %v790 = vunpack.c.h.b16 %v561
    %v791 = vunpack.c.l.b16 %v562
    %v792 = vunpack.c.h.b16 %v562
    %v793 = vunpack.c.l.b16 %v563
    %v794 = vunpack.c.h.b16 %v563
    %v795 = vunpack.c.l.b16 %v564
    %v796 = vunpack.c.h.b16 %v564
    %v797 = vunpack.c.l.b16 %v565
    %v798 = vunpack.c.h.b16 %v565
    %v799 = vunpack.c.l.b16 %v566
    %v800 = vunpack.c.h.b16 %v566
    %v801 = vpack.c.b16 %v681, %v673
    %v802 = vpack.c.b16 %v682, %v674
    %v803 = vpack.c.b16 %v683, %v675
    %v804 = vpack.c.b16 %v684, %v676
    %v805 = vpack.c.b16 %v685, %v677
    %v806 = vpack.c.b16 %v686, %v678
    %v807 = vpack.c.b16 %v687, %v679
    %v808 = vpack.c.b16 %v688, %v680
    %v809 = vpack.c.b16 %v697, %v689
    %v810 = vpack.c.b16 %v698, %v690
    %v811 = vpack.c.b16 %v699, %v691
    %v812 = vpack.c.b16 %v700, %v692
    %v813 = vpack.c.b16 %v701, %v693
    %v814 = vpack.c.b16 %v702, %v694
    %v815 = vpack.c.b16 %v703, %v695
    %v816 = vpack.c.b16 %v704, %v696
    %v817 = vpack.c.b16 %v713, %v705
    %v818 = vpack.c.b16 %v714, %v706
    %v819 = vpack.c.b16 %v715, %v707
    %v820 = vpack.c.b16 %v716, %v708
    %v821 = vpack.c.b16 %v717, %v709
    %v822 = vpack.c.b16 %v718, %v710
    %v823 = vpack.c.b16 %v719, %v711
    %v824 = vpack.c.b16 %v720, %v712
    %v825 = vpack.c.b16 %v729, %v721
    %v826 = vpack.c.b16 %v730, %v722
    %v827 = vpack.c.b16 %v731, %v723
    %v828 = vpack.c.b16 %v732, %v724
    %v829 = vpack.c.b16 %v733, %v725
    %v830 = vpack.c.b16 %v734, %v726
    %v831 = vpack.c.b16 %v735, %v727
    %v832 = vpack.c.b16 %v736, %v728
    %v833 = vpack.c.b16 %v745, %v737
    %v834 = vpack.c.b16 %v746, %v738
    %v835 = vpack.c.b16 %v747, %v739
    %v836 = vpack.c.b16 %v748, %v740
    %v837 = vpack.c.b16 %v749, %v741
    %v838 = vpack.c.b16 %v750, %v742
    %v839 = vpack.c.b16 %v751, %v743
    %v840 = vpack.c.b16 %v752, %v744
    %v841 = vpack.c.b16 %v761, %v753
    %v842 = vpack.c.b16 %v762, %v754
    %v843 = vpack.c.b16 %v763, %v755
    %v844 = vpack.c.b16 %v764, %v756
    %v845 = vpack.c.b16 %v765, %v757
    %v846 = vpack.c.b16 %v766, %v758
    %v847 = vpack.c.b16 %v767, %v759
    %v848 = vpack.c.b16 %v768, %v760
    %v849 = vpack.c.b16 %v777, %v769
    %v850 = vpack.c.b16 %v778, %v770
    %v851 = vpack.c.b16 %v779, %v771
    %v852 = vpack.c.b16 %v780, %v772
    %v853 = vpack.c.b16 %v781, %v773
    %v854 = vpack.c.b16 %v782, %v774
    %v855 = vpack.c.b16 %v783, %v775
    %v856 = vpack.c.b16 %v784, %v776
    %v857 = vpack.c.b16 %v793, %v785
    %v858 = vpack.c.b16 %v794, %v786
    %v859 = vpack.c.b16 %v795, %v787
    %v860 = vpack.c.b16 %v796, %v788
    %v861 = vpack.c.b16 %v797, %v789
    %v862 = vpack.c.b16 %v798, %v790
    %v863 = vpack.c.b16 %v799, %v791
    %v864 = vpack.c.b16 %v800, %v792
    %929 = vmatprep.subr.bf16.mxu0 %v802
    %930 = vmatpush1.bf16.msra.mxu0 %v801
    %931 = vmatprep.subr.bf16.mxu0 %v810
    %932 = vmatpush1.bf16.msra.mxu0 %v809
    %933 = vmatprep.subr.bf16.mxu0 %v818
    %934 = vmatpush1.bf16.msra.mxu0 %v817
    %935 = vmatprep.subr.bf16.mxu0 %v826
    %936 = vmatpush1.bf16.msra.mxu0 %v825
    %937 = vmatprep.subr.bf16.mxu0 %v834
    %938 = vmatpush1.bf16.msra.mxu0 %v833
    %939 = vmatprep.subr.bf16.mxu0 %v842
    %940 = vmatpush1.bf16.msra.mxu0 %v841
    %941 = vmatprep.subr.bf16.mxu0 %v850
    %942 = vmatpush1.bf16.msra.mxu0 %v849
    %943 = vmatprep.subr.bf16.mxu0 %v858
    %944 = vmatpush1.bf16.msra.mxu0 %v857
    %945 = vmatprep.subr.bf16.mxu0 0
    %946 = vmatpush1.bf16.msra.mxu0 0
    %947 = vmatprep.subr.bf16.mxu0 0
    %948 = vmatpush1.bf16.msra.mxu0 0
    %949 = vmatprep.subr.bf16.mxu0 0
    %950 = vmatpush1.bf16.msra.mxu0 0
    %951 = vmatprep.subr.bf16.mxu0 0
    %952 = vmatpush1.bf16.msra.mxu0 0
    %953 = vmatprep.subr.bf16.mxu0 0
    %954 = vmatpush1.bf16.msra.mxu0 0
    %955 = vmatprep.subr.bf16.mxu0 0
    %956 = vmatpush1.bf16.msra.mxu0 0
    %957 = vmatprep.subr.bf16.mxu0 0
    %958 = vmatpush1.bf16.msra.mxu0 0
    %959 = vmatprep.subr.bf16.mxu0 0
    %960 = vmatpush1.bf16.msra.mxu0 0
    %961 = vmatprep.mubr.bf16.mxu0 0
    %962 = vmatmul.mubr.bf16.gmra.mrb[0].mxu0 %v502
    %v963 = vpop.f32.mrb[0].mxu0
    %v964 = vadd.f32 %v572, %v963
    %v965 = vpop.f32.mrb[0].mxu0
    %v966 = vadd.f32 %v576, %v965
    %v967 = vpop.f32.mrb[0].mxu0
    %v968 = vpop.f32.mrb[0].mxu0
    %969 = vdwg.mxu0
    %970 = vmatprep.subr.bf16.mxu0 %v804
    %971 = vmatpush1.bf16.msra.mxu0 %v803
    %972 = vmatprep.subr.bf16.mxu0 %v812
    %973 = vmatpush1.bf16.msra.mxu0 %v811
    %974 = vmatprep.subr.bf16.mxu0 %v820
    %975 = vmatpush1.bf16.msra.mxu0 %v819
    %976 = vmatprep.subr.bf16.mxu0 %v828
    %977 = vmatpush1.bf16.msra.mxu0 %v827
    %978 = vmatprep.subr.bf16.mxu0 %v836
    %979 = vmatpush1.bf16.msra.mxu0 %v835
    %980 = vmatprep.subr.bf16.mxu0 %v844
    %981 = vmatpush1.bf16.msra.mxu0 %v843
    %982 = vmatprep.subr.bf16.mxu0 %v852
    %983 = vmatpush1.bf16.msra.mxu0 %v851
    %984 = vmatprep.subr.bf16.mxu0 %v860
    %985 = vmatpush1.bf16.msra.mxu0 %v859
    %986 = vmatprep.subr.bf16.mxu0 0
    %987 = vmatpush1.bf16.msra.mxu0 0
    %988 = vmatprep.subr.bf16.mxu0 0
    %989 = vmatpush1.bf16.msra.mxu0 0
    %990 = vmatprep.subr.bf16.mxu0 0
    %991 = vmatpush1.bf16.msra.mxu0 0
    %992 = vmatprep.subr.bf16.mxu0 0
    %993 = vmatpush1.bf16.msra.mxu0 0
    %994 = vmatprep.subr.bf16.mxu0 0
    %995 = vmatpush1.bf16.msra.mxu0 0
    %996 = vmatprep.subr.bf16.mxu0 0
    %997 = vmatpush1.bf16.msra.mxu0 0
    %998 = vmatprep.subr.bf16.mxu0 0
    %999 = vmatpush1.bf16.msra.mxu0 0
    %1000 = vmatprep.subr.bf16.mxu0 0
    %1001 = vmatpush1.bf16.msra.mxu0 0
    %1002 = vmatprep.mubr.bf16.mxu0 0
    %1003 = vmatmul.mubr.bf16.gmra.mrb[0].mxu0 %v502
    %v1004 = vpop.f32.mrb[0].mxu0
    %v1005 = vadd.f32 %v580, %v1004
    %v1006 = vpop.f32.mrb[0].mxu0
    %v1007 = vadd.f32 %v584, %v1006
    %v1008 = vpop.f32.mrb[0].mxu0
    %v1009 = vpop.f32.mrb[0].mxu0
    %1010 = vdwg.mxu0
    %1011 = vmatprep.subr.bf16.mxu0 %v806
    %1012 = vmatpush1.bf16.msra.mxu0 %v805
    %1013 = vmatprep.subr.bf16.mxu0 %v814
    %1014 = vmatpush1.bf16.msra.mxu0 %v813
    %1015 = vmatprep.subr.bf16.mxu0 %v822
    %1016 = vmatpush1.bf16.msra.mxu0 %v821
    %1017 = vmatprep.subr.bf16.mxu0 %v830
    %1018 = vmatpush1.bf16.msra.mxu0 %v829
    %1019 = vmatprep.subr.bf16.mxu0 %v838
    %1020 = vmatpush1.bf16.msra.mxu0 %v837
    %1021 = vmatprep.subr.bf16.mxu0 %v846
    %1022 = vmatpush1.bf16.msra.mxu0 %v845
    %1023 = vmatprep.subr.bf16.mxu0 %v854
    %1024 = vmatpush1.bf16.msra.mxu0 %v853
    %1025 = vmatprep.subr.bf16.mxu0 %v862
    %1026 = vmatpush1.bf16.msra.mxu0 %v861
    %1027 = vmatprep.subr.bf16.mxu0 0
    %1028 = vmatpush1.bf16.msra.mxu0 0
    %1029 = vmatprep.subr.bf16.mxu0 0
    %1030 = vmatpush1.bf16.msra.mxu0 0
    %1031 = vmatprep.subr.bf16.mxu0 0
    %1032 = vmatpush1.bf16.msra.mxu0 0
    %1033 = vmatprep.subr.bf16.mxu0 0
    %1034 = vmatpush1.bf16.msra.mxu0 0
    %1035 = vmatprep.subr.bf16.mxu0 0
    %1036 = vmatpush1.bf16.msra.mxu0 0
    %1037 = vmatprep.subr.bf16.mxu0 0
    %1038 = vmatpush1.bf16.msra.mxu0 0
    %1039 = vmatprep.subr.bf16.mxu0 0
    %1040 = vmatpush1.bf16.msra.mxu0 0
    %1041 = vmatprep.subr.bf16.mxu0 0
    %1042 = vmatpush1.bf16.msra.mxu0 0
    %1043 = vmatprep.mubr.bf16.mxu0 0
    %1044 = vmatmul.mubr.bf16.gmra.mrb[0].mxu0 %v502
    %v1045 = vpop.f32.mrb[0].mxu0
    %v1046 = vadd.f32 %v588, %v1045
    %v1047 = vpop.f32.mrb[0].mxu0
    %v1048 = vadd.f32 %v592, %v1047
    %v1049 = vpop.f32.mrb[0].mxu0
    %v1050 = vpop.f32.mrb[0].mxu0
    %1051 = vdwg.mxu0
    %1052 = vmatprep.subr.bf16.mxu0 %v808
    %1053 = vmatpush1.bf16.msra.mxu0 %v807
    %1054 = vmatprep.subr.bf16.mxu0 %v816
    %1055 = vmatpush1.bf16.msra.mxu0 %v815
    %1056 = vmatprep.subr.bf16.mxu0 %v824
    %1057 = vmatpush1.bf16.msra.mxu0 %v823
    %1058 = vmatprep.subr.bf16.mxu0 %v832
    %1059 = vmatpush1.bf16.msra.mxu0 %v831
    %1060 = vmatprep.subr.bf16.mxu0 %v840
    %1061 = vmatpush1.bf16.msra.mxu0 %v839
    %1062 = vmatprep.subr.bf16.mxu0 %v848
    %1063 = vmatpush1.bf16.msra.mxu0 %v847
    %1064 = vmatprep.subr.bf16.mxu0 %v856
    %1065 = vmatpush1.bf16.msra.mxu0 %v855
    %1066 = vmatprep.subr.bf16.mxu0 %v864
    %1067 = vmatpush1.bf16.msra.mxu0 %v863
    %1068 = vmatprep.subr.bf16.mxu0 0
    %1069 = vmatpush1.bf16.msra.mxu0 0
    %1070 = vmatprep.subr.bf16.mxu0 0
    %1071 = vmatpush1.bf16.msra.mxu0 0
    %1072 = vmatprep.subr.bf16.mxu0 0
    %1073 = vmatpush1.bf16.msra.mxu0 0
    %1074 = vmatprep.subr.bf16.mxu0 0
    %1075 = vmatpush1.bf16.msra.mxu0 0
    %1076 = vmatprep.subr.bf16.mxu0 0
    %1077 = vmatpush1.bf16.msra.mxu0 0
    %1078 = vmatprep.subr.bf16.mxu0 0
    %1079 = vmatpush1.bf16.msra.mxu0 0
    %1080 = vmatprep.subr.bf16.mxu0 0
    %1081 = vmatpush1.bf16.msra.mxu0 0
    %1082 = vmatprep.subr.bf16.mxu0 0
    %1083 = vmatpush1.bf16.msra.mxu0 0
    %1084 = vmatprep.mubr.bf16.mxu0 0
    %1085 = vmatmul.mubr.bf16.gmra.mrb[0].mxu0 %v502
    %v1086 = vpop.f32.mrb[0].mxu0
    %v1087 = vadd.f32 %v596, %v1086
    %v1088 = vpop.f32.mrb[0].mxu0
    %v1089 = vadd.f32 %v600, %v1088
    %v1090 = vpop.f32.mrb[0].mxu0
    %v1091 = vpop.f32.mrb[0].mxu0
    %1092 = vdwg.mxu0
    %v1093 = vmax.f32 %v964, 0.0
    %v1094 = vmax.f32 %v966, 0.0
    %v1095 = vmax.f32 %v1005, 0.0
    %v1096 = vmax.f32 %v1007, 0.0
    %v1097 = vmax.f32 %v1046, 0.0
    %v1098 = vmax.f32 %v1048, 0.0
    %v1099 = vmax.f32 %v1087, 0.0
    %v1100 = vmax.f32 %v1089, 0.0
    %vm1101 = vcmask 9216
    %1102 = vst.msk [vmem:[#allocation2] sm:$0x3] %vm1101, %v313
    %1104 = vrot.lane.b32.xlu0 %v313, 126
    %v1105 = vpop.permute.xlu0 %1104
    %1107 = vst.msk [vmem:[#allocation4] sm:$0x3] %vm1101, %v1105
    %v1116 = vcombine.low %v1093, %v1094
    %v1117 = vcombine.low %v1095, %v1096
    %v1119 = vunpack.c.l.s4 1983009808
    %v1120 = vunpack.c.0.s8 %v1119
    %v1121 = vlaneseq
    %v1122 = vshrl.u32 %v1121, 7
    %v1123 = vsub.s32 %v1120, %v1122
    %v1124 = vrot.slane %v1116, %v1123
    %v1126 = vunpack.c.l.s4 1983009808
    %v1127 = vunpack.c.0.s8 %v1126
    %v1128 = vlaneseq
    %v1129 = vshrl.u32 %v1128, 7
    %v1130 = vsub.s32 %v1127, %v1129
    %v1131 = vrot.slane %v1117, %v1130
    %v1132 = vcombine.low %v1124, %v1131
    %v1133 = vcombine.low %v1097, %v1098
    %v1134 = vcombine.low %v1099, %v1100
    %v1136 = vunpack.c.l.s4 1983009808
    %v1137 = vunpack.c.0.s8 %v1136
    %v1138 = vlaneseq
    %v1139 = vshrl.u32 %v1138, 7
    %v1140 = vsub.s32 %v1137, %v1139
    %v1141 = vrot.slane %v1133, %v1140
    %v1143 = vunpack.c.l.s4 1983009808
    %v1144 = vunpack.c.0.s8 %v1143
    %v1145 = vlaneseq
    %v1146 = vshrl.u32 %v1145, 7
    %v1147 = vsub.s32 %v1144, %v1146
    %v1148 = vrot.slane %v1134, %v1147
    %v1149 = vcombine.low %v1141, %v1148
    %1152 = vst [vmem:[%s16] sm:$0xff] %v1132
    %1153 = vst [vmem:[%s16 + $0x8] sm:$0xff] %v1149
    // Predicated region
    $region58: #{vae_forward.9} parent=1 // pred_check
      _
    $region59: #{vae_forward.9} parent=1 // pred_check_branch
      %1155 = sbr.rel (0) target = $region61
    $region60: #{vae_forward.9} parent=1 // pred_region
      %s1157 = ssub.s32 32, 32
      %1158 = vsyncadd [#allocation3], %s1157
      %s1160 = sshll.u32 [#allocation2], 4
      %s1161 = int_to_ptr.vmem [resolvable:$true] %s1160
      %1163 = dma.vmem_to_hbm [thread:$0]  %s1161, 32, %s14, [#allocation3]
    $region61: #{vae_forward.9} parent=1 // pred_fallthru
      _
    // Predicated region
    $region62: #{vae_forward.9} parent=1 // pred_check
      _
    $region63: #{vae_forward.9} parent=1 // pred_check_branch
      %1165 = sbr.rel (0) target = $region65
    $region64: #{vae_forward.9} parent=1 // pred_region
      %s1167 = ssub.s32 32, 32
      %1168 = vsyncadd [#allocation5], %s1167
      %s1170 = sshll.u32 [#allocation4], 4
      %s1171 = int_to_ptr.vmem [resolvable:$true] %s1170
      %1173 = dma.vmem_to_hbm [thread:$0]  %s1171, 32, %s15, [#allocation5]
    $region65: #{vae_forward.9} parent=1 // pred_fallthru
      _
    // Predicated region
    $region66: #{vae_forward.9} parent=1 // pred_check
      _
    $region67: #{vae_forward.9} parent=1 // pred_check_branch
      %1175 = sbr.rel (0) target = $region69
    $region68: #{vae_forward.9} parent=1 // pred_region
      _
    $region69: #{vae_forward.9} parent=1 // pred_fallthru
      _
    // Predicated region
    $region70: #{vae_forward.9} parent=1 // pred_check
      _
    $region71: #{vae_forward.9} parent=1 // pred_check_branch
      %1177 = sbr.rel (0) target = $region73
    $region72: #{vae_forward.9} parent=1 // pred_region
      %1178 = dma.done [#allocation3], 32
    $region73: #{vae_forward.9} parent=1 // pred_fallthru
      _
    // Predicated region
    $region74: #{vae_forward.9} parent=1 // pred_check
      _
    $region75: #{vae_forward.9} parent=1 // pred_check_branch
      %1180 = sbr.rel (0) target = $region77
    $region76: #{vae_forward.9} parent=1 // pred_region
      %1181 = dma.done [#allocation5], 32
    $region77: #{vae_forward.9} parent=1 // pred_fallthru
      _
    // Predicated region
    $region78: #{vae_forward.9} parent=1 // pred_check
      _
    $region79: #{vae_forward.9} parent=1 // pred_check_branch
      %1183 = sbr.rel (0) target = $region81
    $region80: #{vae_forward.9} parent=1 // pred_region
      _
    $region81: #{vae_forward.9} parent=1 // pred_fallthru
      _
    %1184 = vsyncpa [#allocation3], 1
    %1185 = vsyncpa [#allocation5], 1

// kernel: vae_forward.10
$region0: #{vae_forward.10}
  #allocation0 [shape = 'u32[]', space=smem, size = 0x4, offset = 0x4, fixed_abs, tag = 'smem constant byte address 0x4 - core index']
  #allocation1 [shape = 'u32[144,128]{1,0:T(1,128)}', space=vmem, size = 0x12000, scoped, tag = 'internal scratch']
  %s0 = inlined_call_operand.vmem [shape: f32[72,576], index: 0, kind: input, shape index: {}]
  %s1 = inlined_call_operand.vmem [shape: bf16[576,128], index: 1, kind: input, shape index: {}]
  %s2 = inlined_call_operand.vmem [shape: f32[1,128], index: 2, kind: input, shape index: {}]
  %s3 = inlined_call_operand.vmem [shape: f32[72,128], index: 3, kind: output, shape index: {}]
  %s4 = sld [smem:[#allocation0]]
  $region22: #{vae_forward.10} parent=0
    _
  %s6 = ssub.s32 1, %s4
  %s7 = scalar_select 0, %s6, %s4
  // Predicated region
  $region2: #{vae_forward.10} parent=0 // pred_check
    _
  $region3: #{vae_forward.10} parent=0 // pred_check_branch
    %9 = sbr.rel (0) target = $region5
  $region4: #{vae_forward.10} parent=0 // pred_region
    _
  $region5: #{vae_forward.10} parent=0 // pred_fallthru
    _
  // Predicated region
  $region6: #{vae_forward.10} parent=0 // pred_check
    _
  $region7: #{vae_forward.10} parent=0 // pred_check_branch
    %11 = sbr.rel (0) target = $region9
  $region8: #{vae_forward.10} parent=0 // pred_region
    _
  $region9: #{vae_forward.10} parent=0 // pred_fallthru
    _
  // Predicated region
  $region10: #{vae_forward.10} parent=0 // pred_check
    _
  $region11: #{vae_forward.10} parent=0 // pred_check_branch
    %13 = sbr.rel (0) target = $region13
  $region12: #{vae_forward.10} parent=0 // pred_region
    _
  $region13: #{vae_forward.10} parent=0 // pred_fallthru
    _
  %v15 = vld [vmem:[%s0] sm:$0xff]
  %v16 = vld [vmem:[%s0 + $0x8] sm:$0xff]
  %v17 = vld [vmem:[%s0 + $0x10] sm:$0xff]
  %v18 = vld [vmem:[%s0 + $0x18] sm:$0xff]
  %v19 = vld [vmem:[%s0 + $0x20] sm:$0xff]
  %v20 = vld [vmem:[%s0 + $0x28] sm:$0xff]
  %v21 = vld [vmem:[%s0 + $0x30] sm:$0xff]
  %v22 = vld [vmem:[%s0 + $0x38] sm:$0xff]
  %v23 = vld [vmem:[%s0 + $0x40] sm:$0xff]
  %v24 = vld [vmem:[%s0 + $0x48] sm:$0xff]
  %v25 = vld [vmem:[%s0 + $0x50] sm:$0xff]
  %v26 = vld [vmem:[%s0 + $0x58] sm:$0xff]
  %v27 = vld [vmem:[%s0 + $0x60] sm:$0xff]
  %v28 = vld [vmem:[%s0 + $0x68] sm:$0xff]
  %v29 = vld [vmem:[%s0 + $0x70] sm:$0xff]
  %v30 = vld [vmem:[%s0 + $0x78] sm:$0xff]
  %v31 = vld [vmem:[%s0 + $0x80] sm:$0xff]
  %v32 = vld [vmem:[%s0 + $0x88] sm:$0xff]
  %v33 = vld [vmem:[%s0 + $0x90] sm:$0xff]
  %v34 = vld [vmem:[%s0 + $0x98] sm:$0xff]
  %v35 = vld [vmem:[%s0 + $0xa0] sm:$0xff]
  %v36 = vld [vmem:[%s0 + $0xa8] sm:$0xff]
  %v37 = vld [vmem:[%s0 + $0xb0] sm:$0xff]
  %v38 = vld [vmem:[%s0 + $0xb8] sm:$0xff]
  %v39 = vld [vmem:[%s0 + $0xc0] sm:$0xff]
  %v40 = vld [vmem:[%s0 + $0xc8] sm:$0xff]
  %v41 = vld [vmem:[%s0 + $0xd0] sm:$0xff]
  %v42 = vld [vmem:[%s0 + $0xd8] sm:$0xff]
  %v43 = vld [vmem:[%s0 + $0xe0] sm:$0xff]
  %v44 = vld [vmem:[%s0 + $0xe8] sm:$0xff]
  %v45 = vld [vmem:[%s0 + $0xf0] sm:$0xff]
  %v46 = vld [vmem:[%s0 + $0xf8] sm:$0xff]
  %v47 = vld [vmem:[%s0 + $0x100] sm:$0xff]
  %v48 = vld [vmem:[%s0 + $0x108] sm:$0xff]
  %v49 = vld [vmem:[%s0 + $0x110] sm:$0xff]
  %v50 = vld [vmem:[%s0 + $0x118] sm:$0xff]
  %v51 = vld [vmem:[%s0 + $0x120] sm:$0xff]
  %v52 = vld [vmem:[%s0 + $0x128] sm:$0xff]
  %v53 = vld [vmem:[%s0 + $0x130] sm:$0xff]
  %v54 = vld [vmem:[%s0 + $0x138] sm:$0xff]
  %v55 = vld [vmem:[%s0 + $0x140] sm:$0xff]
  %v56 = vld [vmem:[%s0 + $0x148] sm:$0xff]
  %v57 = vld [vmem:[%s0 + $0x150] sm:$0xff]
  %v58 = vld [vmem:[%s0 + $0x158] sm:$0xff]
  %v59 = vld [vmem:[%s0 + $0x160] sm:$0xff]
  %v60 = vpack.c.bf16 %v20, %v15
  %v61 = vpack.c.bf16 %v21, %v16
  %v62 = vpack.c.bf16 %v22, %v17
  %v63 = vpack.c.bf16 %v23, %v18
  %v64 = vpack.c.bf16 %v24, %v19
  %v65 = vpack.c.bf16 %v30, %v25
  %v66 = vpack.c.bf16 %v31, %v26
  %v67 = vpack.c.bf16 %v32, %v27
  %v68 = vpack.c.bf16 %v33, %v28
  %v69 = vpack.c.bf16 %v34, %v29
  %v70 = vpack.c.bf16 %v40, %v35
  %v71 = vpack.c.bf16 %v41, %v36
  %v72 = vpack.c.bf16 %v42, %v37
  %v73 = vpack.c.bf16 %v43, %v38
  %v74 = vpack.c.bf16 %v44, %v39
  %v75 = vpack.c.bf16 %v50, %v45
  %v76 = vpack.c.bf16 %v51, %v46
  %v77 = vpack.c.bf16 %v52, %v47
  %v78 = vpack.c.bf16 %v53, %v48
  %v79 = vpack.c.bf16 %v54, %v49
  %v80 = vpack.c.bf16 %v55, %v55
  %v81 = vpack.c.bf16 %v56, %v56
  %v82 = vpack.c.bf16 %v57, %v57
  %v83 = vpack.c.bf16 %v58, %v58
  %v84 = vpack.c.bf16 %v59, %v59
  %v85 = vld [vmem:[%s1] sm:$0xf]
  %v86 = vld [vmem:[%s1 + $0x4] sm:$0xf]
  %v87 = vld [vmem:[%s1 + $0x8] sm:$0xf]
  %v88 = vld [vmem:[%s1 + $0xc] sm:$0xf]
  %v89 = vld [vmem:[%s1 + $0x10] sm:$0xf]
  %v90 = vld [vmem:[%s1 + $0x14] sm:$0xf]
  %v91 = vld [vmem:[%s1 + $0x18] sm:$0xf]
  %v92 = vld [vmem:[%s1 + $0x1c] sm:$0xf]
  %v93 = vld [vmem:[%s1 + $0x20] sm:$0xf]
  %v94 = vld [vmem:[%s1 + $0x24] sm:$0xf]
  %v95 = vld [vmem:[%s1 + $0x28] sm:$0xf]
  %v96 = vld [vmem:[%s1 + $0x2c] sm:$0xf]
  %v97 = vld [vmem:[%s1 + $0x30] sm:$0xf]
  %v98 = vld [vmem:[%s1 + $0x34] sm:$0xf]
  %v99 = vld [vmem:[%s1 + $0x38] sm:$0xf]
  %v100 = vld [vmem:[%s1 + $0x3c] sm:$0xf]
  %v101 = vld [vmem:[%s1 + $0x40] sm:$0xf]
  %v102 = vld [vmem:[%s1 + $0x44] sm:$0xf]
  %v103 = vld [vmem:[%s1 + $0x48] sm:$0xf]
  %v104 = vld [vmem:[%s1 + $0x4c] sm:$0xf]
  %v105 = vld [vmem:[%s1 + $0x50] sm:$0xf]
  %v106 = vld [vmem:[%s1 + $0x54] sm:$0xf]
  %v107 = vld [vmem:[%s1 + $0x58] sm:$0xf]
  %v108 = vld [vmem:[%s1 + $0x5c] sm:$0xf]
  %v109 = vld [vmem:[%s1 + $0x60] sm:$0xf]
  %v110 = vld [vmem:[%s1 + $0x64] sm:$0xf]
  %v111 = vld [vmem:[%s1 + $0x68] sm:$0xf]
  %v112 = vld [vmem:[%s1 + $0x6c] sm:$0xf]
  %v113 = vld [vmem:[%s1 + $0x70] sm:$0xf]
  %v114 = vld [vmem:[%s1 + $0x74] sm:$0xf]
  %v115 = vld [vmem:[%s1 + $0x78] sm:$0xf]
  %v116 = vld [vmem:[%s1 + $0x7c] sm:$0xf]
  %v117 = vld [vmem:[%s1 + $0x80] sm:$0xf]
  %v118 = vld [vmem:[%s1 + $0x84] sm:$0xf]
  %v119 = vld [vmem:[%s1 + $0x88] sm:$0xf]
  %v120 = vld [vmem:[%s1 + $0x8c] sm:$0xf]
  %v121 = vld [vmem:[%s1 + $0x90] sm:$0xf]
  %v122 = vld [vmem:[%s1 + $0x94] sm:$0xf]
  %v123 = vld [vmem:[%s1 + $0x98] sm:$0xf]
  %v124 = vld [vmem:[%s1 + $0x9c] sm:$0xf]
  %v125 = vld [vmem:[%s1 + $0xa0] sm:$0xf]
  %v126 = vld [vmem:[%s1 + $0xa4] sm:$0xf]
  %v127 = vld [vmem:[%s1 + $0xa8] sm:$0xf]
  %v128 = vld [vmem:[%s1 + $0xac] sm:$0xf]
  %v129 = vld [vmem:[%s1 + $0xb0] sm:$0xf]
  %v130 = vld [vmem:[%s1 + $0xb4] sm:$0xf]
  %v131 = vld [vmem:[%s1 + $0xb8] sm:$0xf]
  %v132 = vld [vmem:[%s1 + $0xbc] sm:$0xf]
  %v133 = vld [vmem:[%s1 + $0xc0] sm:$0xf]
  %v134 = vld [vmem:[%s1 + $0xc4] sm:$0xf]
  %v135 = vld [vmem:[%s1 + $0xc8] sm:$0xf]
  %v136 = vld [vmem:[%s1 + $0xcc] sm:$0xf]
  %v137 = vld [vmem:[%s1 + $0xd0] sm:$0xf]
  %v138 = vld [vmem:[%s1 + $0xd4] sm:$0xf]
  %v139 = vld [vmem:[%s1 + $0xd8] sm:$0xf]
  %v140 = vld [vmem:[%s1 + $0xdc] sm:$0xf]
  %v141 = vld [vmem:[%s1 + $0xe0] sm:$0xf]
  %v142 = vld [vmem:[%s1 + $0xe4] sm:$0xf]
  %v143 = vld [vmem:[%s1 + $0xe8] sm:$0xf]
  %v144 = vld [vmem:[%s1 + $0xec] sm:$0xf]
  %v145 = vld [vmem:[%s1 + $0xf0] sm:$0xf]
  %v146 = vld [vmem:[%s1 + $0xf4] sm:$0xf]
  %v147 = vld [vmem:[%s1 + $0xf8] sm:$0xf]
  %v148 = vld [vmem:[%s1 + $0xfc] sm:$0xf]
  %v149 = vld [vmem:[%s1 + $0x100] sm:$0xf]
  %v150 = vld [vmem:[%s1 + $0x104] sm:$0xf]
  %v151 = vld [vmem:[%s1 + $0x108] sm:$0xf]
  %v152 = vld [vmem:[%s1 + $0x10c] sm:$0xf]
  %v153 = vld [vmem:[%s1 + $0x110] sm:$0xf]
  %v154 = vld [vmem:[%s1 + $0x114] sm:$0xf]
  %v155 = vld [vmem:[%s1 + $0x118] sm:$0xf]
  %v156 = vld [vmem:[%s1 + $0x11c] sm:$0xf]
  %v157 = vld [vmem:[%s2] sm:$0x1]
  %v159 = vlaneseq
  %v160 = vshrl.u32 %v159, 7
  %v161 = vsub.s32 0, %v160
  %v162 = vrot.slane %v157, %v161
  %v236 = vunpack.c.l.b16 %v85
  %v237 = vunpack.c.l.b16 %v86
  %v238 = vunpack.c.l.b16 %v87
  %v239 = vunpack.c.l.b16 %v88
  %v240 = vunpack.c.l.b16 %v89
  %v241 = vunpack.c.l.b16 %v90
  %v242 = vunpack.c.l.b16 %v91
  %v243 = vunpack.c.l.b16 %v92
  %v244 = vunpack.c.l.b16 %v93
  %v245 = vunpack.c.l.b16 %v94
  %v246 = vunpack.c.l.b16 %v95
  %v247 = vunpack.c.l.b16 %v96
  %v248 = vunpack.c.l.b16 %v97
  %v249 = vunpack.c.l.b16 %v98
  %v250 = vunpack.c.l.b16 %v99
  %v251 = vunpack.c.l.b16 %v100
  %v252 = vunpack.c.l.b16 %v101
  %v253 = vunpack.c.l.b16 %v102
  %v254 = vunpack.c.l.b16 %v103
  %v255 = vunpack.c.l.b16 %v104
  %v256 = vunpack.c.l.b16 %v105
  %v257 = vunpack.c.l.b16 %v106
  %v258 = vunpack.c.l.b16 %v107
  %v259 = vunpack.c.l.b16 %v108
  %v260 = vunpack.c.l.b16 %v109
  %v261 = vunpack.c.l.b16 %v110
  %v262 = vunpack.c.l.b16 %v111
  %v263 = vunpack.c.l.b16 %v112
  %v264 = vunpack.c.l.b16 %v113
  %v265 = vunpack.c.l.b16 %v114
  %v266 = vunpack.c.l.b16 %v115
  %v267 = vunpack.c.l.b16 %v116
  %v268 = vunpack.c.l.b16 %v117
  %v269 = vunpack.c.l.b16 %v118
  %v270 = vunpack.c.l.b16 %v119
  %v271 = vunpack.c.l.b16 %v120
  %v272 = vunpack.c.l.b16 %v121
  %v273 = vunpack.c.l.b16 %v122
  %v274 = vunpack.c.l.b16 %v123
  %v275 = vunpack.c.l.b16 %v124
  %v276 = vunpack.c.l.b16 %v125
  %v277 = vunpack.c.l.b16 %v126
  %v278 = vunpack.c.l.b16 %v127
  %v279 = vunpack.c.l.b16 %v128
  %v280 = vunpack.c.l.b16 %v129
  %v281 = vunpack.c.l.b16 %v130
  %v282 = vunpack.c.l.b16 %v131
  %v283 = vunpack.c.l.b16 %v132
  %v284 = vunpack.c.l.b16 %v133
  %v285 = vunpack.c.l.b16 %v134
  %v286 = vunpack.c.l.b16 %v135
  %v287 = vunpack.c.l.b16 %v136
  %v288 = vunpack.c.l.b16 %v137
  %v289 = vunpack.c.l.b16 %v138
  %v290 = vunpack.c.l.b16 %v139
  %v291 = vunpack.c.l.b16 %v140
  %v292 = vunpack.c.l.b16 %v141
  %v293 = vunpack.c.l.b16 %v142
  %v294 = vunpack.c.l.b16 %v143
  %v295 = vunpack.c.l.b16 %v144
  %v296 = vunpack.c.l.b16 %v145
  %v297 = vunpack.c.l.b16 %v146
  %v298 = vunpack.c.l.b16 %v147
  %v299 = vunpack.c.l.b16 %v148
  %v300 = vunpack.c.l.b16 %v149
  %v301 = vunpack.c.l.b16 %v150
  %v302 = vunpack.c.l.b16 %v151
  %v303 = vunpack.c.l.b16 %v152
  %v304 = vunpack.c.l.b16 %v153
  %v305 = vunpack.c.l.b16 %v154
  %v306 = vunpack.c.l.b16 %v155
  %v307 = vunpack.c.l.b16 %v156
  %v308 = vpack.c.b16 %v237, %v236
  %v309 = vpack.c.b16 %v239, %v238
  %v310 = vpack.c.b16 %v241, %v240
  %v311 = vpack.c.b16 %v243, %v242
  %v312 = vpack.c.b16 %v245, %v244
  %v313 = vpack.c.b16 %v247, %v246
  %v314 = vpack.c.b16 %v249, %v248
  %v315 = vpack.c.b16 %v251, %v250
  %v316 = vpack.c.b16 %v253, %v252
  %v317 = vpack.c.b16 %v255, %v254
  %v318 = vpack.c.b16 %v257, %v256
  %v319 = vpack.c.b16 %v259, %v258
  %v320 = vpack.c.b16 %v261, %v260
  %v321 = vpack.c.b16 %v263, %v262
  %v322 = vpack.c.b16 %v265, %v264
  %v323 = vpack.c.b16 %v267, %v266
  %v324 = vpack.c.b16 %v269, %v268
  %v325 = vpack.c.b16 %v271, %v270
  %v326 = vpack.c.b16 %v273, %v272
  %v327 = vpack.c.b16 %v275, %v274
  %v328 = vpack.c.b16 %v277, %v276
  %v329 = vpack.c.b16 %v279, %v278
  %v330 = vpack.c.b16 %v281, %v280
  %v331 = vpack.c.b16 %v283, %v282
  %v332 = vpack.c.b16 %v285, %v284
  %v333 = vpack.c.b16 %v287, %v286
  %v334 = vpack.c.b16 %v289, %v288
  %v335 = vpack.c.b16 %v291, %v290
  %v336 = vpack.c.b16 %v293, %v292
  %v337 = vpack.c.b16 %v295, %v294
  %v338 = vpack.c.b16 %v297, %v296
  %v339 = vpack.c.b16 %v299, %v298
  %v340 = vpack.c.b16 %v301, %v300
  %v341 = vpack.c.b16 %v303, %v302
  %v342 = vpack.c.b16 %v305, %v304
  %v343 = vpack.c.b16 %v307, %v306
  %vm380 = vcmask 523264
  %v382 = vsel %vm380, %v64, 0
  %v385 = vsel %vm380, %v69, 0
  %v388 = vsel %vm380, %v74, 0
  %v391 = vsel %vm380, %v79, 0
  %v394 = vsel %vm380, %v84, 0
  %396 = vmatprep.subr.bf16.mxu0 0
  %397 = vmatpush1.bf16.msra.mxu0 %v308
  %398 = vmatprep.subr.bf16.mxu0 0
  %399 = vmatpush1.bf16.msra.mxu0 %v309
  %400 = vmatprep.subr.bf16.mxu0 0
  %401 = vmatpush1.bf16.msra.mxu0 %v310
  %402 = vmatprep.subr.bf16.mxu0 0
  %403 = vmatpush1.bf16.msra.mxu0 %v311
  %404 = vmatprep.subr.bf16.mxu0 0
  %405 = vmatpush1.bf16.msra.mxu0 %v312
  %406 = vmatprep.subr.bf16.mxu0 0
  %407 = vmatpush1.bf16.msra.mxu0 %v313
  %408 = vmatprep.subr.bf16.mxu0 0
  %409 = vmatpush1.bf16.msra.mxu0 %v314
  %410 = vmatprep.subr.bf16.mxu0 0
  %411 = vmatpush1.bf16.msra.mxu0 %v315
  %412 = vmatprep.subr.bf16.mxu0 0
  %413 = vmatpush1.bf16.msra.mxu0 %v316
  %414 = vmatprep.subr.bf16.mxu0 0
  %415 = vmatpush1.bf16.msra.mxu0 %v317
  %416 = vmatprep.subr.bf16.mxu0 0
  %417 = vmatpush1.bf16.msra.mxu0 %v318
  %418 = vmatprep.subr.bf16.mxu0 0
  %419 = vmatpush1.bf16.msra.mxu0 %v319
  %420 = vmatprep.subr.bf16.mxu0 0
  %421 = vmatpush1.bf16.msra.mxu0 %v320
  %422 = vmatprep.subr.bf16.mxu0 0
  %423 = vmatpush1.bf16.msra.mxu0 %v321
  %424 = vmatprep.subr.bf16.mxu0 0
  %425 = vmatpush1.bf16.msra.mxu0 %v322
  %426 = vmatprep.subr.bf16.mxu0 0
  %427 = vmatpush1.bf16.msra.mxu0 %v323
  %428 = vmatprep.mubr.bf16.mxu0 %v61
  %429 = vmatmul.mubr.bf16.gmra.mrb[0].mxu0 %v60
  %v430 = vpop.f32.mrb[0].mxu0
  %v431 = vadd.f32 %v162, %v430
  %v432 = vpop.f32.mrb[0].mxu0
  %v433 = vpop.f32.mrb[0].mxu0
  %v434 = vadd.f32 %v162, %v433
  %v435 = vpop.f32.mrb[0].mxu0
  %436 = vmatprep.mubr.bf16.mxu0 %v66
  %437 = vmatmul.mubr.bf16.gmra.mrb[0].mxu0 %v65
  %v438 = vpop.f32.mrb[0].mxu0
  %v439 = vadd.f32 %v162, %v438
  %v440 = vpop.f32.mrb[0].mxu0
  %v441 = vpop.f32.mrb[0].mxu0
  %v442 = vadd.f32 %v162, %v441
  %v443 = vpop.f32.mrb[0].mxu0
  %444 = vmatprep.mubr.bf16.mxu0 %v71
  %445 = vmatmul.mubr.bf16.gmra.mrb[0].mxu0 %v70
  %v446 = vpop.f32.mrb[0].mxu0
  %v447 = vadd.f32 %v162, %v446
  %v448 = vpop.f32.mrb[0].mxu0
  %v449 = vpop.f32.mrb[0].mxu0
  %v450 = vadd.f32 %v162, %v449
  %v451 = vpop.f32.mrb[0].mxu0
  %452 = vmatprep.mubr.bf16.mxu0 %v76
  %453 = vmatmul.mubr.bf16.gmra.mrb[0].mxu0 %v75
  %v454 = vpop.f32.mrb[0].mxu0
  %v455 = vadd.f32 %v162, %v454
  %v456 = vpop.f32.mrb[0].mxu0
  %v457 = vpop.f32.mrb[0].mxu0
  %v458 = vadd.f32 %v162, %v457
  %v459 = vpop.f32.mrb[0].mxu0
  %460 = vmatprep.mubr.bf16.mxu0 %v81
  %461 = vmatmul.mubr.bf16.gmra.mrb[0].mxu0 %v80
  %v462 = vpop.f32.mrb[0].mxu0
  %v463 = vadd.f32 %v162, %v462
  %v464 = vpop.f32.mrb[0].mxu0
  %v465 = vpop.f32.mrb[0].mxu0
  %v466 = vpop.f32.mrb[0].mxu0
  %467 = vdwg.mxu0
  %468 = vmatprep.subr.bf16.mxu0 0
  %469 = vmatpush1.bf16.msra.mxu0 %v324
  %470 = vmatprep.subr.bf16.mxu0 0
  %471 = vmatpush1.bf16.msra.mxu0 %v325
  %472 = vmatprep.subr.bf16.mxu0 0
  %473 = vmatpush1.bf16.msra.mxu0 %v326
  %474 = vmatprep.subr.bf16.mxu0 0
  %475 = vmatpush1.bf16.msra.mxu0 %v327
  %476 = vmatprep.subr.bf16.mxu0 0
  %477 = vmatpush1.bf16.msra.mxu0 %v328
  %478 = vmatprep.subr.bf16.mxu0 0
  %479 = vmatpush1.bf16.msra.mxu0 %v329
  %480 = vmatprep.subr.bf16.mxu0 0
  %481 = vmatpush1.bf16.msra.mxu0 %v330
  %482 = vmatprep.subr.bf16.mxu0 0
  %483 = vmatpush1.bf16.msra.mxu0 %v331
  %484 = vmatprep.subr.bf16.mxu0 0
  %485 = vmatpush1.bf16.msra.mxu0 %v332
  %486 = vmatprep.subr.bf16.mxu0 0
  %487 = vmatpush1.bf16.msra.mxu0 %v333
  %488 = vmatprep.subr.bf16.mxu0 0
  %489 = vmatpush1.bf16.msra.mxu0 %v334
  %490 = vmatprep.subr.bf16.mxu0 0
  %491 = vmatpush1.bf16.msra.mxu0 %v335
  %492 = vmatprep.subr.bf16.mxu0 0
  %493 = vmatpush1.bf16.msra.mxu0 %v336
  %494 = vmatprep.subr.bf16.mxu0 0
  %495 = vmatpush1.bf16.msra.mxu0 %v337
  %496 = vmatprep.subr.bf16.mxu0 0
  %497 = vmatpush1.bf16.msra.mxu0 %v338
  %498 = vmatprep.subr.bf16.mxu0 0
  %499 = vmatpush1.bf16.msra.mxu0 %v339
  %500 = vmatprep.mubr.bf16.mxu0 %v63
  %501 = vmatmul.mubr.bf16.gmra.mrb[0].mxu0 %v62
  %v502 = vpop.f32.mrb[0].mxu0
  %v503 = vadd.f32 %v431, %v502
  %v504 = vpop.f32.mrb[0].mxu0
  %v505 = vpop.f32.mrb[0].mxu0
  %v506 = vadd.f32 %v434, %v505
  %v507 = vpop.f32.mrb[0].mxu0
  %508 = vmatprep.mubr.bf16.mxu0 %v68
  %509 = vmatmul.mubr.bf16.gmra.mrb[0].mxu0 %v67
  %v510 = vpop.f32.mrb[0].mxu0
  %v511 = vadd.f32 %v439, %v510
  %v512 = vpop.f32.mrb[0].mxu0
  %v513 = vpop.f32.mrb[0].mxu0
  %v514 = vadd.f32 %v442, %v513
  %v515 = vpop.f32.mrb[0].mxu0
  %516 = vmatprep.mubr.bf16.mxu0 %v73
  %517 = vmatmul.mubr.bf16.gmra.mrb[0].mxu0 %v72
  %v518 = vpop.f32.mrb[0].mxu0
  %v519 = vadd.f32 %v447, %v518
  %v520 = vpop.f32.mrb[0].mxu0
  %v521 = vpop.f32.mrb[0].mxu0
  %v522 = vadd.f32 %v450, %v521
  %v523 = vpop.f32.mrb[0].mxu0
  %524 = vmatprep.mubr.bf16.mxu0 %v78
  %525 = vmatmul.mubr.bf16.gmra.mrb[0].mxu0 %v77
  %v526 = vpop.f32.mrb[0].mxu0
  %v527 = vadd.f32 %v455, %v526
  %v528 = vpop.f32.mrb[0].mxu0
  %v529 = vpop.f32.mrb[0].mxu0
  %v530 = vadd.f32 %v458, %v529
  %v531 = vpop.f32.mrb[0].mxu0
  %532 = vmatprep.mubr.bf16.mxu0 %v83
  %533 = vmatmul.mubr.bf16.gmra.mrb[0].mxu0 %v82
  %v534 = vpop.f32.mrb[0].mxu0
  %v535 = vadd.f32 %v463, %v534
  %v536 = vpop.f32.mrb[0].mxu0
  %v537 = vpop.f32.mrb[0].mxu0
  %v538 = vpop.f32.mrb[0].mxu0
  %539 = vdwg.mxu0
  %540 = vmatprep.subr.bf16.mxu0 0
  %541 = vmatpush1.bf16.msra.mxu0 %v340
  %542 = vmatprep.subr.bf16.mxu0 0
  %543 = vmatpush1.bf16.msra.mxu0 %v341
  %544 = vmatprep.subr.bf16.mxu0 0
  %545 = vmatpush1.bf16.msra.mxu0 %v342
  %546 = vmatprep.subr.bf16.mxu0 0
  %547 = vmatpush1.bf16.msra.mxu0 %v343
  %548 = vmatprep.subr.bf16.mxu0 0
  %549 = vmatpush1.bf16.msra.mxu0 0
  %550 = vmatprep.subr.bf16.mxu0 0
  %551 = vmatpush1.bf16.msra.mxu0 0
  %552 = vmatprep.subr.bf16.mxu0 0
  %553 = vmatpush1.bf16.msra.mxu0 0
  %554 = vmatprep.subr.bf16.mxu0 0
  %555 = vmatpush1.bf16.msra.mxu0 0
  %556 = vmatprep.subr.bf16.mxu0 0
  %557 = vmatpush1.bf16.msra.mxu0 0
  %558 = vmatprep.subr.bf16.mxu0 0
  %559 = vmatpush1.bf16.msra.mxu0 0
  %560 = vmatprep.subr.bf16.mxu0 0
  %561 = vmatpush1.bf16.msra.mxu0 0
  %562 = vmatprep.subr.bf16.mxu0 0
  %563 = vmatpush1.bf16.msra.mxu0 0
  %564 = vmatprep.subr.bf16.mxu0 0
  %565 = vmatpush1.bf16.msra.mxu0 0
  %566 = vmatprep.subr.bf16.mxu0 0
  %567 = vmatpush1.bf16.msra.mxu0 0
  %568 = vmatprep.subr.bf16.mxu0 0
  %569 = vmatpush1.bf16.msra.mxu0 0
  %570 = vmatprep.subr.bf16.mxu0 0
  %571 = vmatpush1.bf16.msra.mxu0 0
  %572 = vmatprep.mubr.bf16.mxu0 0
  %573 = vmatmul.mubr.bf16.gmra.mrb[0].mxu0 %v382
  %v574 = vpop.f32.mrb[0].mxu0
  %v575 = vadd.f32 %v503, %v574
  %v576 = vpop.f32.mrb[0].mxu0
  %v577 = vpop.f32.mrb[0].mxu0
  %v578 = vadd.f32 %v506, %v577
  %v579 = vpop.f32.mrb[0].mxu0
  %580 = vmatprep.mubr.bf16.mxu0 0
  %581 = vmatmul.mubr.bf16.gmra.mrb[0].mxu0 %v385
  %v582 = vpop.f32.mrb[0].mxu0
  %v583 = vadd.f32 %v511, %v582
  %v584 = vpop.f32.mrb[0].mxu0
  %v585 = vpop.f32.mrb[0].mxu0
  %v586 = vadd.f32 %v514, %v585
  %v587 = vpop.f32.mrb[0].mxu0
  %588 = vmatprep.mubr.bf16.mxu0 0
  %589 = vmatmul.mubr.bf16.gmra.mrb[0].mxu0 %v388
  %v590 = vpop.f32.mrb[0].mxu0
  %v591 = vadd.f32 %v519, %v590
  %v592 = vpop.f32.mrb[0].mxu0
  %v593 = vpop.f32.mrb[0].mxu0
  %v594 = vadd.f32 %v522, %v593
  %v595 = vpop.f32.mrb[0].mxu0
  %596 = vmatprep.mubr.bf16.mxu0 0
  %597 = vmatmul.mubr.bf16.gmra.mrb[0].mxu0 %v391
  %v598 = vpop.f32.mrb[0].mxu0
  %v599 = vadd.f32 %v527, %v598
  %v600 = vpop.f32.mrb[0].mxu0
  %v601 = vpop.f32.mrb[0].mxu0
  %v602 = vadd.f32 %v530, %v601
  %v603 = vpop.f32.mrb[0].mxu0
  %604 = vmatprep.mubr.bf16.mxu0 0
  %605 = vmatmul.mubr.bf16.gmra.mrb[0].mxu0 %v394
  %v606 = vpop.f32.mrb[0].mxu0
  %v607 = vadd.f32 %v535, %v606
  %v608 = vpop.f32.mrb[0].mxu0
  %v609 = vpop.f32.mrb[0].mxu0
  %v610 = vpop.f32.mrb[0].mxu0
  %611 = vdwg.mxu0
  %v612 = vmax.f32 %v575, 0.0
  %v613 = vmax.f32 %v578, 0.0
  %v614 = vmax.f32 %v583, 0.0
  %v615 = vmax.f32 %v586, 0.0
  %v616 = vmax.f32 %v591, 0.0
  %v617 = vmax.f32 %v594, 0.0
  %v618 = vmax.f32 %v599, 0.0
  %v619 = vmax.f32 %v602, 0.0
  %v620 = vmax.f32 %v607, 0.0
  %621 = vst [vmem:[%s3] sm:$0xff] %v612
  %622 = vst [vmem:[%s3 + $0x8] sm:$0xff] %v613
  %623 = vst [vmem:[%s3 + $0x10] sm:$0xff] %v614
  %624 = vst [vmem:[%s3 + $0x18] sm:$0xff] %v615
  %625 = vst [vmem:[%s3 + $0x20] sm:$0xff] %v616
  %626 = vst [vmem:[%s3 + $0x28] sm:$0xff] %v617
  %627 = vst [vmem:[%s3 + $0x30] sm:$0xff] %v618
  %628 = vst [vmem:[%s3 + $0x38] sm:$0xff] %v619
  %629 = vst [vmem:[%s3 + $0x40] sm:$0xff] %v620
  // Predicated region
  $region14: #{vae_forward.10} parent=0 // pred_check
    _
  $region15: #{vae_forward.10} parent=0 // pred_check_branch
    %631 = sbr.rel (0) target = $region17
  $region16: #{vae_forward.10} parent=0 // pred_region
    _
  $region17: #{vae_forward.10} parent=0 // pred_fallthru
    _
  // Predicated region
  $region18: #{vae_forward.10} parent=0 // pred_check
    _
  $region19: #{vae_forward.10} parent=0 // pred_check_branch
    %633 = sbr.rel (0) target = $region21
  $region20: #{vae_forward.10} parent=0 // pred_region
    _
  $region21: #{vae_forward.10} parent=0 // pred_fallthru
    _

// kernel: vae_forward.11
$region0: #{vae_forward.11}
  #allocation0 [shape = 'u32[]', space=smem, size = 0x4, offset = 0x4, fixed_abs, tag = 'smem constant byte address 0x4 - core index']
  #allocation1 [shape = 'u32[144,128]{1,0:T(1,128)}', space=vmem, size = 0x12000, scoped, tag = 'internal scratch']
  %s0 = inlined_call_operand.vmem [shape: f32[392,288], index: 0, kind: input, shape index: {}]
  %s1 = inlined_call_operand.vmem [shape: bf16[288,4], index: 1, kind: input, shape index: {}]
  %s2 = inlined_call_operand.vmem [shape: f32[1,4], index: 2, kind: input, shape index: {}]
  %s3 = inlined_call_operand.vmem [shape: f32[392,4], index: 3, kind: output, shape index: {}]
  %s4 = sld [smem:[#allocation0]]
  $region22: #{vae_forward.11} parent=0
    _
  %s6 = ssub.s32 1, %s4
  %s7 = scalar_select 0, %s6, %s4
  // Predicated region
  $region2: #{vae_forward.11} parent=0 // pred_check
    _
  $region3: #{vae_forward.11} parent=0 // pred_check_branch
    %9 = sbr.rel (0) target = $region5
  $region4: #{vae_forward.11} parent=0 // pred_region
    _
  $region5: #{vae_forward.11} parent=0 // pred_fallthru
    _
  // Predicated region
  $region6: #{vae_forward.11} parent=0 // pred_check
    _
  $region7: #{vae_forward.11} parent=0 // pred_check_branch
    %11 = sbr.rel (0) target = $region9
  $region8: #{vae_forward.11} parent=0 // pred_region
    _
  $region9: #{vae_forward.11} parent=0 // pred_fallthru
    _
  // Predicated region
  $region10: #{vae_forward.11} parent=0 // pred_check
    _
  $region11: #{vae_forward.11} parent=0 // pred_check_branch
    %13 = sbr.rel (0) target = $region13
  $region12: #{vae_forward.11} parent=0 // pred_region
    _
  $region13: #{vae_forward.11} parent=0 // pred_fallthru
    _
  %v15 = vld [vmem:[%s0] sm:$0xff]
  %v16 = vld [vmem:[%s0 + $0x8] sm:$0xff]
  %v17 = vld [vmem:[%s0 + $0x10] sm:$0xff]
  %v18 = vld [vmem:[%s0 + $0x18] sm:$0xff]
  %v19 = vld [vmem:[%s0 + $0x20] sm:$0xff]
  %v20 = vld [vmem:[%s0 + $0x28] sm:$0xff]
  %v21 = vld [vmem:[%s0 + $0x30] sm:$0xff]
  %v22 = vld [vmem:[%s0 + $0x38] sm:$0xff]
  %v23 = vld [vmem:[%s0 + $0x40] sm:$0xff]
  %v24 = vld [vmem:[%s0 + $0x48] sm:$0xff]
  %v25 = vld [vmem:[%s0 + $0x50] sm:$0xff]
  %v26 = vld [vmem:[%s0 + $0x58] sm:$0xff]
  %v27 = vld [vmem:[%s0 + $0x60] sm:$0xff]
  %v28 = vld [vmem:[%s0 + $0x68] sm:$0xff]
  %v29 = vld [vmem:[%s0 + $0x70] sm:$0xff]
  %v30 = vld [vmem:[%s0 + $0x78] sm:$0xff]
  %v31 = vld [vmem:[%s0 + $0x80] sm:$0xff]
  %v32 = vld [vmem:[%s0 + $0x88] sm:$0xff]
  %v33 = vld [vmem:[%s0 + $0x90] sm:$0xff]
  %v34 = vld [vmem:[%s0 + $0x98] sm:$0xff]
  %v35 = vld [vmem:[%s0 + $0xa0] sm:$0xff]
  %v36 = vld [vmem:[%s0 + $0xa8] sm:$0xff]
  %v37 = vld [vmem:[%s0 + $0xb0] sm:$0xff]
  %v38 = vld [vmem:[%s0 + $0xb8] sm:$0xff]
  %v39 = vld [vmem:[%s0 + $0xc0] sm:$0xff]
  %v40 = vld [vmem:[%s0 + $0xc8] sm:$0xff]
  %v41 = vld [vmem:[%s0 + $0xd0] sm:$0xff]
  %v42 = vld [vmem:[%s0 + $0xd8] sm:$0xff]
  %v43 = vld [vmem:[%s0 + $0xe0] sm:$0xff]
  %v44 = vld [vmem:[%s0 + $0xe8] sm:$0xff]
  %v45 = vld [vmem:[%s0 + $0xf0] sm:$0xff]
  %v46 = vld [vmem:[%s0 + $0xf8] sm:$0xff]
  %v47 = vld [vmem:[%s0 + $0x100] sm:$0xff]
  %v48 = vld [vmem:[%s0 + $0x108] sm:$0xff]
  %v49 = vld [vmem:[%s0 + $0x110] sm:$0xff]
  %v50 = vld [vmem:[%s0 + $0x118] sm:$0xff]
  %v51 = vld [vmem:[%s0 + $0x120] sm:$0xff]
  %v52 = vld [vmem:[%s0 + $0x128] sm:$0xff]
  %v53 = vld [vmem:[%s0 + $0x130] sm:$0xff]
  %v54 = vld [vmem:[%s0 + $0x138] sm:$0xff]
  %v55 = vld [vmem:[%s0 + $0x140] sm:$0xff]
  %v56 = vld [vmem:[%s0 + $0x148] sm:$0xff]
  %v57 = vld [vmem:[%s0 + $0x150] sm:$0xff]
  %v58 = vld [vmem:[%s0 + $0x158] sm:$0xff]
  %v59 = vld [vmem:[%s0 + $0x160] sm:$0xff]
  %v60 = vld [vmem:[%s0 + $0x168] sm:$0xff]
  %v61 = vld [vmem:[%s0 + $0x170] sm:$0xff]
  %v62 = vld [vmem:[%s0 + $0x178] sm:$0xff]
  %v63 = vld [vmem:[%s0 + $0x180] sm:$0xff]
  %v64 = vld [vmem:[%s0 + $0x188] sm:$0xff]
  %v65 = vld [vmem:[%s0 + $0x190] sm:$0xff]
  %v66 = vld [vmem:[%s0 + $0x198] sm:$0xff]
  %v67 = vld [vmem:[%s0 + $0x1a0] sm:$0xff]
  %v68 = vld [vmem:[%s0 + $0x1a8] sm:$0xff]
  %v69 = vld [vmem:[%s0 + $0x1b0] sm:$0xff]
  %v70 = vld [vmem:[%s0 + $0x1b8] sm:$0xff]
  %v71 = vld [vmem:[%s0 + $0x1c0] sm:$0xff]
  %v72 = vld [vmem:[%s0 + $0x1c8] sm:$0xff]
  %v73 = vld [vmem:[%s0 + $0x1d0] sm:$0xff]
  %v74 = vld [vmem:[%s0 + $0x1d8] sm:$0xff]
  %v75 = vld [vmem:[%s0 + $0x1e0] sm:$0xff]
  %v76 = vld [vmem:[%s0 + $0x1e8] sm:$0xff]
  %v77 = vld [vmem:[%s0 + $0x1f0] sm:$0xff]
  %v78 = vld [vmem:[%s0 + $0x1f8] sm:$0xff]
  %v79 = vld [vmem:[%s0 + $0x200] sm:$0xff]
  %v80 = vld [vmem:[%s0 + $0x208] sm:$0xff]
  %v81 = vld [vmem:[%s0 + $0x210] sm:$0xff]
  %v82 = vld [vmem:[%s0 + $0x218] sm:$0xff]
  %v83 = vld [vmem:[%s0 + $0x220] sm:$0xff]
  %v84 = vld [vmem:[%s0 + $0x228] sm:$0xff]
  %v85 = vld [vmem:[%s0 + $0x230] sm:$0xff]
  %v86 = vld [vmem:[%s0 + $0x238] sm:$0xff]
  %v87 = vld [vmem:[%s0 + $0x240] sm:$0xff]
  %v88 = vld [vmem:[%s0 + $0x248] sm:$0xff]
  %v89 = vld [vmem:[%s0 + $0x250] sm:$0xff]
  %v90 = vld [vmem:[%s0 + $0x258] sm:$0xff]
  %v91 = vld [vmem:[%s0 + $0x260] sm:$0xff]
  %v92 = vld [vmem:[%s0 + $0x268] sm:$0xff]
  %v93 = vld [vmem:[%s0 + $0x270] sm:$0xff]
  %v94 = vld [vmem:[%s0 + $0x278] sm:$0xff]
  %v95 = vld [vmem:[%s0 + $0x280] sm:$0xff]
  %v96 = vld [vmem:[%s0 + $0x288] sm:$0xff]
  %v97 = vld [vmem:[%s0 + $0x290] sm:$0xff]
  %v98 = vld [vmem:[%s0 + $0x298] sm:$0xff]
  %v99 = vld [vmem:[%s0 + $0x2a0] sm:$0xff]
  %v100 = vld [vmem:[%s0 + $0x2a8] sm:$0xff]
  %v101 = vld [vmem:[%s0 + $0x2b0] sm:$0xff]
  %v102 = vld [vmem:[%s0 + $0x2b8] sm:$0xff]
  %v103 = vld [vmem:[%s0 + $0x2c0] sm:$0xff]
  %v104 = vld [vmem:[%s0 + $0x2c8] sm:$0xff]
  %v105 = vld [vmem:[%s0 + $0x2d0] sm:$0xff]
  %v106 = vld [vmem:[%s0 + $0x2d8] sm:$0xff]
  %v107 = vld [vmem:[%s0 + $0x2e0] sm:$0xff]
  %v108 = vld [vmem:[%s0 + $0x2e8] sm:$0xff]
  %v109 = vld [vmem:[%s0 + $0x2f0] sm:$0xff]
  %v110 = vld [vmem:[%s0 + $0x2f8] sm:$0xff]
  %v111 = vld [vmem:[%s0 + $0x300] sm:$0xff]
  %v112 = vld [vmem:[%s0 + $0x308] sm:$0xff]
  %v113 = vld [vmem:[%s0 + $0x310] sm:$0xff]
  %v114 = vld [vmem:[%s0 + $0x318] sm:$0xff]
  %v115 = vld [vmem:[%s0 + $0x320] sm:$0xff]
  %v116 = vld [vmem:[%s0 + $0x328] sm:$0xff]
  %v117 = vld [vmem:[%s0 + $0x330] sm:$0xff]
  %v118 = vld [vmem:[%s0 + $0x338] sm:$0xff]
  %v119 = vld [vmem:[%s0 + $0x340] sm:$0xff]
  %v120 = vld [vmem:[%s0 + $0x348] sm:$0xff]
  %v121 = vld [vmem:[%s0 + $0x350] sm:$0xff]
  %v122 = vld [vmem:[%s0 + $0x358] sm:$0xff]
  %v123 = vld [vmem:[%s0 + $0x360] sm:$0xff]
  %v124 = vld [vmem:[%s0 + $0x368] sm:$0xff]
  %v125 = vld [vmem:[%s0 + $0x370] sm:$0xff]
  %v126 = vld [vmem:[%s0 + $0x378] sm:$0xff]
  %v127 = vld [vmem:[%s0 + $0x380] sm:$0xff]
  %v128 = vld [vmem:[%s0 + $0x388] sm:$0xff]
  %v129 = vld [vmem:[%s0 + $0x390] sm:$0xff]
  %v130 = vld [vmem:[%s0 + $0x398] sm:$0xff]
  %v131 = vld [vmem:[%s0 + $0x3a0] sm:$0xff]
  %v132 = vld [vmem:[%s0 + $0x3a8] sm:$0xff]
  %v133 = vld [vmem:[%s0 + $0x3b0] sm:$0xff]
  %v134 = vld [vmem:[%s0 + $0x3b8] sm:$0xff]
  %v135 = vld [vmem:[%s0 + $0x3c0] sm:$0xff]
  %v136 = vld [vmem:[%s0 + $0x3c8] sm:$0xff]
  %v137 = vld [vmem:[%s0 + $0x3d0] sm:$0xff]
  %v138 = vld [vmem:[%s0 + $0x3d8] sm:$0xff]
  %v139 = vld [vmem:[%s0 + $0x3e0] sm:$0xff]
  %v140 = vld [vmem:[%s0 + $0x3e8] sm:$0xff]
  %v141 = vld [vmem:[%s0 + $0x3f0] sm:$0xff]
  %v142 = vld [vmem:[%s0 + $0x3f8] sm:$0xff]
  %v143 = vld [vmem:[%s0 + $0x400] sm:$0xff]
  %v144 = vld [vmem:[%s0 + $0x408] sm:$0xff]
  %v145 = vld [vmem:[%s0 + $0x410] sm:$0xff]
  %v146 = vld [vmem:[%s0 + $0x418] sm:$0xff]
  %v147 = vld [vmem:[%s0 + $0x420] sm:$0xff]
  %v148 = vld [vmem:[%s0 + $0x428] sm:$0xff]
  %v149 = vld [vmem:[%s0 + $0x430] sm:$0xff]
  %v150 = vld [vmem:[%s0 + $0x438] sm:$0xff]
  %v151 = vld [vmem:[%s0 + $0x440] sm:$0xff]
  %v152 = vld [vmem:[%s0 + $0x448] sm:$0xff]
  %v153 = vld [vmem:[%s0 + $0x450] sm:$0xff]
  %v154 = vld [vmem:[%s0 + $0x458] sm:$0xff]
  %v155 = vld [vmem:[%s0 + $0x460] sm:$0xff]
  %v156 = vld [vmem:[%s0 + $0x468] sm:$0xff]
  %v157 = vld [vmem:[%s0 + $0x470] sm:$0xff]
  %v158 = vld [vmem:[%s0 + $0x478] sm:$0xff]
  %v159 = vld [vmem:[%s0 + $0x480] sm:$0xff]
  %v160 = vld [vmem:[%s0 + $0x488] sm:$0xff]
  %v161 = vld [vmem:[%s0 + $0x490] sm:$0xff]
  %v162 = vpack.c.bf16 %v18, %v15
  %v163 = vpack.c.bf16 %v19, %v16
  %v164 = vpack.c.bf16 %v20, %v17
  %v165 = vpack.c.bf16 %v24, %v21
  %v166 = vpack.c.bf16 %v25, %v22
  %v167 = vpack.c.bf16 %v26, %v23
  %v168 = vpack.c.bf16 %v30, %v27
  %v169 = vpack.c.bf16 %v31, %v28
  %v170 = vpack.c.bf16 %v32, %v29
  %v171 = vpack.c.bf16 %v36, %v33
  %v172 = vpack.c.bf16 %v37, %v34
  %v173 = vpack.c.bf16 %v38, %v35
  %v174 = vpack.c.bf16 %v42, %v39
  %v175 = vpack.c.bf16 %v43, %v40
  %v176 = vpack.c.bf16 %v44, %v41
  %v177 = vpack.c.bf16 %v48, %v45
  %v178 = vpack.c.bf16 %v49, %v46
  %v179 = vpack.c.bf16 %v50, %v47
  %v180 = vpack.c.bf16 %v54, %v51
  %v181 = vpack.c.bf16 %v55, %v52
  %v182 = vpack.c.bf16 %v56, %v53
  %v183 = vpack.c.bf16 %v60, %v57
  %v184 = vpack.c.bf16 %v61, %v58
  %v185 = vpack.c.bf16 %v62, %v59
  %v186 = vpack.c.bf16 %v66, %v63
  %v187 = vpack.c.bf16 %v67, %v64
  %v188 = vpack.c.bf16 %v68, %v65
  %v189 = vpack.c.bf16 %v72, %v69
  %v190 = vpack.c.bf16 %v73, %v70
  %v191 = vpack.c.bf16 %v74, %v71
  %v192 = vpack.c.bf16 %v78, %v75
  %v193 = vpack.c.bf16 %v79, %v76
  %v194 = vpack.c.bf16 %v80, %v77
  %v195 = vpack.c.bf16 %v84, %v81
  %v196 = vpack.c.bf16 %v85, %v82
  %v197 = vpack.c.bf16 %v86, %v83
  %v198 = vpack.c.bf16 %v90, %v87
  %v199 = vpack.c.bf16 %v91, %v88
  %v200 = vpack.c.bf16 %v92, %v89
  %v201 = vpack.c.bf16 %v96, %v93
  %v202 = vpack.c.bf16 %v97, %v94
  %v203 = vpack.c.bf16 %v98, %v95
  %v204 = vpack.c.bf16 %v102, %v99
  %v205 = vpack.c.bf16 %v103, %v100
  %v206 = vpack.c.bf16 %v104, %v101
  %v207 = vpack.c.bf16 %v108, %v105
  %v208 = vpack.c.bf16 %v109, %v106
  %v209 = vpack.c.bf16 %v110, %v107
  %v210 = vpack.c.bf16 %v114, %v111
  %v211 = vpack.c.bf16 %v115, %v112
  %v212 = vpack.c.bf16 %v116, %v113
  %v213 = vpack.c.bf16 %v120, %v117
  %v214 = vpack.c.bf16 %v121, %v118
  %v215 = vpack.c.bf16 %v122, %v119
  %v216 = vpack.c.bf16 %v126, %v123
  %v217 = vpack.c.bf16 %v127, %v124
  %v218 = vpack.c.bf16 %v128, %v125
  %v219 = vpack.c.bf16 %v132, %v129
  %v220 = vpack.c.bf16 %v133, %v130
  %v221 = vpack.c.bf16 %v134, %v131
  %v222 = vpack.c.bf16 %v138, %v135
  %v223 = vpack.c.bf16 %v139, %v136
  %v224 = vpack.c.bf16 %v140, %v137
  %v225 = vpack.c.bf16 %v144, %v141
  %v226 = vpack.c.bf16 %v145, %v142
  %v227 = vpack.c.bf16 %v146, %v143
  %v228 = vpack.c.bf16 %v150, %v147
  %v229 = vpack.c.bf16 %v151, %v148
  %v230 = vpack.c.bf16 %v152, %v149
  %v231 = vpack.c.bf16 %v156, %v153
  %v232 = vpack.c.bf16 %v157, %v154
  %v233 = vpack.c.bf16 %v158, %v155
  %v234 = vpack.c.bf16 %v159, %v159
  %v235 = vpack.c.bf16 %v160, %v160
  %v236 = vpack.c.bf16 %v161, %v161
  %v237 = vld [vmem:[%s1] sm:$0xf]
  %v238 = vld [vmem:[%s1 + $0x4] sm:$0xf]
  %v239 = vld [vmem:[%s1 + $0x8] sm:$0xf]
  %v240 = vld [vmem:[%s1 + $0xc] sm:$0xf]
  %v241 = vld [vmem:[%s1 + $0x10] sm:$0xf]
  %v242 = vld [vmem:[%s1 + $0x14] sm:$0xf]
  %v243 = vld [vmem:[%s1 + $0x18] sm:$0xf]
  %v244 = vld [vmem:[%s1 + $0x1c] sm:$0xf]
  %v245 = vld [vmem:[%s1 + $0x20] sm:$0xf]
  %v246 = vld [vmem:[%s1 + $0x24] sm:$0xf]
  %v247 = vld [vmem:[%s1 + $0x28] sm:$0xf]
  %v248 = vld [vmem:[%s1 + $0x2c] sm:$0xf]
  %v249 = vld [vmem:[%s1 + $0x30] sm:$0xf]
  %v250 = vld [vmem:[%s1 + $0x34] sm:$0xf]
  %v251 = vld [vmem:[%s1 + $0x38] sm:$0xf]
  %v252 = vld [vmem:[%s1 + $0x3c] sm:$0xf]
  %v253 = vld [vmem:[%s1 + $0x40] sm:$0xf]
  %v254 = vld [vmem:[%s1 + $0x44] sm:$0xf]
  %v255 = vld [vmem:[%s1 + $0x48] sm:$0xf]
  %v256 = vld [vmem:[%s1 + $0x4c] sm:$0xf]
  %v257 = vld [vmem:[%s1 + $0x50] sm:$0xf]
  %v258 = vld [vmem:[%s1 + $0x54] sm:$0xf]
  %v259 = vld [vmem:[%s1 + $0x58] sm:$0xf]
  %v260 = vld [vmem:[%s1 + $0x5c] sm:$0xf]
  %v261 = vld [vmem:[%s1 + $0x60] sm:$0xf]
  %v262 = vld [vmem:[%s1 + $0x64] sm:$0xf]
  %v263 = vld [vmem:[%s1 + $0x68] sm:$0xf]
  %v264 = vld [vmem:[%s1 + $0x6c] sm:$0xf]
  %v265 = vld [vmem:[%s1 + $0x70] sm:$0xf]
  %v266 = vld [vmem:[%s1 + $0x74] sm:$0xf]
  %v267 = vld [vmem:[%s1 + $0x78] sm:$0xf]
  %v268 = vld [vmem:[%s1 + $0x7c] sm:$0xf]
  %v269 = vld [vmem:[%s1 + $0x80] sm:$0xf]
  %v270 = vld [vmem:[%s1 + $0x84] sm:$0xf]
  %v271 = vld [vmem:[%s1 + $0x88] sm:$0xf]
  %v272 = vld [vmem:[%s1 + $0x8c] sm:$0xf]
  %v273 = vld [vmem:[%s2] sm:$0x1]
  %v275 = vlaneseq
  %v276 = vshrl.u32 %v275, 7
  %v277 = vsub.s32 0, %v276
  %v278 = vrot.slane %v273, %v277
  %v316 = vunpack.c.l.b16 %v237
  %v317 = vunpack.c.l.b16 %v238
  %v318 = vunpack.c.l.b16 %v239
  %v319 = vunpack.c.l.b16 %v240
  %v320 = vunpack.c.l.b16 %v241
  %v321 = vunpack.c.l.b16 %v242
  %v322 = vunpack.c.l.b16 %v243
  %v323 = vunpack.c.l.b16 %v244
  %v324 = vunpack.c.l.b16 %v245
  %v325 = vunpack.c.l.b16 %v246
  %v326 = vunpack.c.l.b16 %v247
  %v327 = vunpack.c.l.b16 %v248
  %v328 = vunpack.c.l.b16 %v249
  %v329 = vunpack.c.l.b16 %v250
  %v330 = vunpack.c.l.b16 %v251
  %v331 = vunpack.c.l.b16 %v252
  %v332 = vunpack.c.l.b16 %v253
  %v333 = vunpack.c.l.b16 %v254
  %v334 = vunpack.c.l.b16 %v255
  %v335 = vunpack.c.l.b16 %v256
  %v336 = vunpack.c.l.b16 %v257
  %v337 = vunpack.c.l.b16 %v258
  %v338 = vunpack.c.l.b16 %v259
  %v339 = vunpack.c.l.b16 %v260
  %v340 = vunpack.c.l.b16 %v261
  %v341 = vunpack.c.l.b16 %v262
  %v342 = vunpack.c.l.b16 %v263
  %v343 = vunpack.c.l.b16 %v264
  %v344 = vunpack.c.l.b16 %v265
  %v345 = vunpack.c.l.b16 %v266
  %v346 = vunpack.c.l.b16 %v267
  %v347 = vunpack.c.l.b16 %v268
  %v348 = vunpack.c.l.b16 %v269
  %v349 = vunpack.c.l.b16 %v270
  %v350 = vunpack.c.l.b16 %v271
  %v351 = vunpack.c.l.b16 %v272
  %v352 = vpack.c.b16 %v317, %v316
  %v353 = vpack.c.b16 %v319, %v318
  %v354 = vpack.c.b16 %v321, %v320
  %v355 = vpack.c.b16 %v323, %v322
  %v356 = vpack.c.b16 %v325, %v324
  %v357 = vpack.c.b16 %v327, %v326
  %v358 = vpack.c.b16 %v329, %v328
  %v359 = vpack.c.b16 %v331, %v330
  %v360 = vpack.c.b16 %v333, %v332
  %v361 = vpack.c.b16 %v335, %v334
  %v362 = vpack.c.b16 %v337, %v336
  %v363 = vpack.c.b16 %v339, %v338
  %v364 = vpack.c.b16 %v341, %v340
  %v365 = vpack.c.b16 %v343, %v342
  %v366 = vpack.c.b16 %v345, %v344
  %v367 = vpack.c.b16 %v347, %v346
  %v368 = vpack.c.b16 %v349, %v348
  %v369 = vpack.c.b16 %v351, %v350
  %vm388 = vcmask 261120
  %v390 = vsel %vm388, %v164, 0
  %v393 = vsel %vm388, %v167, 0
  %v396 = vsel %vm388, %v170, 0
  %v399 = vsel %vm388, %v173, 0
  %v402 = vsel %vm388, %v176, 0
  %v405 = vsel %vm388, %v179, 0
  %v408 = vsel %vm388, %v182, 0
  %v411 = vsel %vm388, %v185, 0
  %v414 = vsel %vm388, %v188, 0
  %v417 = vsel %vm388, %v191, 0
  %v420 = vsel %vm388, %v194, 0
  %v423 = vsel %vm388, %v197, 0
  %v426 = vsel %vm388, %v200, 0
  %v429 = vsel %vm388, %v203, 0
  %v432 = vsel %vm388, %v206, 0
  %v435 = vsel %vm388, %v209, 0
  %v438 = vsel %vm388, %v212, 0
  %v441 = vsel %vm388, %v215, 0
  %v444 = vsel %vm388, %v218, 0
  %v447 = vsel %vm388, %v221, 0
  %v450 = vsel %vm388, %v224, 0
  %v453 = vsel %vm388, %v227, 0
  %v456 = vsel %vm388, %v230, 0
  %v459 = vsel %vm388, %v233, 0
  %v462 = vsel %vm388, %v236, 0
  %464 = vmatprep.subr.bf16.mxu0 0
  %465 = vmatpush1.bf16.msra.mxu0 %v352
  %466 = vmatprep.subr.bf16.mxu0 0
  %467 = vmatpush1.bf16.msra.mxu0 %v353
  %468 = vmatprep.subr.bf16.mxu0 0
  %469 = vmatpush1.bf16.msra.mxu0 %v354
  %470 = vmatprep.subr.bf16.mxu0 0
  %471 = vmatpush1.bf16.msra.mxu0 %v355
  %472 = vmatprep.subr.bf16.mxu0 0
  %473 = vmatpush1.bf16.msra.mxu0 %v356
  %474 = vmatprep.subr.bf16.mxu0 0
  %475 = vmatpush1.bf16.msra.mxu0 %v357
  %476 = vmatprep.subr.bf16.mxu0 0
  %477 = vmatpush1.bf16.msra.mxu0 %v358
  %478 = vmatprep.subr.bf16.mxu0 0
  %479 = vmatpush1.bf16.msra.mxu0 %v359
  %480 = vmatprep.subr.bf16.mxu0 0
  %481 = vmatpush1.bf16.msra.mxu0 %v360
  %482 = vmatprep.subr.bf16.mxu0 0
  %483 = vmatpush1.bf16.msra.mxu0 %v361
  %484 = vmatprep.subr.bf16.mxu0 0
  %485 = vmatpush1.bf16.msra.mxu0 %v362
  %486 = vmatprep.subr.bf16.mxu0 0
  %487 = vmatpush1.bf16.msra.mxu0 %v363
  %488 = vmatprep.subr.bf16.mxu0 0
  %489 = vmatpush1.bf16.msra.mxu0 %v364
  %490 = vmatprep.subr.bf16.mxu0 0
  %491 = vmatpush1.bf16.msra.mxu0 %v365
  %492 = vmatprep.subr.bf16.mxu0 0
  %493 = vmatpush1.bf16.msra.mxu0 %v366
  %494 = vmatprep.subr.bf16.mxu0 0
  %495 = vmatpush1.bf16.msra.mxu0 %v367
  %496 = vmatprep.mubr.bf16.mxu0 %v163
  %497 = vmatmul.mubr.bf16.gmra.mrb[0].mxu0 %v162
  %v498 = vpop.f32.mrb[0].mxu0
  %v499 = vadd.f32 %v278, %v498
  %v500 = vpop.f32.mrb[0].mxu0
  %v501 = vpop.f32.mrb[0].mxu0
  %v502 = vadd.f32 %v278, %v501
  %v503 = vpop.f32.mrb[0].mxu0
  %504 = vmatprep.mubr.bf16.mxu0 %v166
  %505 = vmatmul.mubr.bf16.gmra.mrb[0].mxu0 %v165
  %v506 = vpop.f32.mrb[0].mxu0
  %v507 = vadd.f32 %v278, %v506
  %v508 = vpop.f32.mrb[0].mxu0
  %v509 = vpop.f32.mrb[0].mxu0
  %v510 = vadd.f32 %v278, %v509
  %v511 = vpop.f32.mrb[0].mxu0
  %512 = vmatprep.mubr.bf16.mxu0 %v169
  %513 = vmatmul.mubr.bf16.gmra.mrb[0].mxu0 %v168
  %v514 = vpop.f32.mrb[0].mxu0
  %v515 = vadd.f32 %v278, %v514
  %v516 = vpop.f32.mrb[0].mxu0
  %v517 = vpop.f32.mrb[0].mxu0
  %v518 = vadd.f32 %v278, %v517
  %v519 = vpop.f32.mrb[0].mxu0
  %520 = vmatprep.mubr.bf16.mxu0 %v172
  %521 = vmatmul.mubr.bf16.gmra.mrb[0].mxu0 %v171
  %v522 = vpop.f32.mrb[0].mxu0
  %v523 = vadd.f32 %v278, %v522
  %v524 = vpop.f32.mrb[0].mxu0
  %v525 = vpop.f32.mrb[0].mxu0
  %v526 = vadd.f32 %v278, %v525
  %v527 = vpop.f32.mrb[0].mxu0
  %528 = vmatprep.mubr.bf16.mxu0 %v175
  %529 = vmatmul.mubr.bf16.gmra.mrb[0].mxu0 %v174
  %v530 = vpop.f32.mrb[0].mxu0
  %v531 = vadd.f32 %v278, %v530
  %v532 = vpop.f32.mrb[0].mxu0
  %v533 = vpop.f32.mrb[0].mxu0
  %v534 = vadd.f32 %v278, %v533
  %v535 = vpop.f32.mrb[0].mxu0
  %536 = vmatprep.mubr.bf16.mxu0 %v178
  %537 = vmatmul.mubr.bf16.gmra.mrb[0].mxu0 %v177
  %v538 = vpop.f32.mrb[0].mxu0
  %v539 = vadd.f32 %v278, %v538
  %v540 = vpop.f32.mrb[0].mxu0
  %v541 = vpop.f32.mrb[0].mxu0
  %v542 = vadd.f32 %v278, %v541
  %v543 = vpop.f32.mrb[0].mxu0
  %544 = vmatprep.mubr.bf16.mxu0 %v181
  %545 = vmatmul.mubr.bf16.gmra.mrb[0].mxu0 %v180
  %v546 = vpop.f32.mrb[0].mxu0
  %v547 = vadd.f32 %v278, %v546
  %v548 = vpop.f32.mrb[0].mxu0
  %v549 = vpop.f32.mrb[0].mxu0
  %v550 = vadd.f32 %v278, %v549
  %v551 = vpop.f32.mrb[0].mxu0
  %552 = vmatprep.mubr.bf16.mxu0 %v184
  %553 = vmatmul.mubr.bf16.gmra.mrb[0].mxu0 %v183
  %v554 = vpop.f32.mrb[0].mxu0
  %v555 = vadd.f32 %v278, %v554
  %v556 = vpop.f32.mrb[0].mxu0
  %v557 = vpop.f32.mrb[0].mxu0
  %v558 = vadd.f32 %v278, %v557
  %v559 = vpop.f32.mrb[0].mxu0
  %560 = vmatprep.mubr.bf16.mxu0 %v187
  %561 = vmatmul.mubr.bf16.gmra.mrb[0].mxu0 %v186
  %v562 = vpop.f32.mrb[0].mxu0
  %v563 = vadd.f32 %v278, %v562
  %v564 = vpop.f32.mrb[0].mxu0
  %v565 = vpop.f32.mrb[0].mxu0
  %v566 = vadd.f32 %v278, %v565
  %v567 = vpop.f32.mrb[0].mxu0
  %568 = vmatprep.mubr.bf16.mxu0 %v190
  %569 = vmatmul.mubr.bf16.gmra.mrb[0].mxu0 %v189
  %v570 = vpop.f32.mrb[0].mxu0
  %v571 = vadd.f32 %v278, %v570
  %v572 = vpop.f32.mrb[0].mxu0
  %v573 = vpop.f32.mrb[0].mxu0
  %v574 = vadd.f32 %v278, %v573
  %v575 = vpop.f32.mrb[0].mxu0
  %576 = vmatprep.mubr.bf16.mxu0 %v193
  %577 = vmatmul.mubr.bf16.gmra.mrb[0].mxu0 %v192
  %v578 = vpop.f32.mrb[0].mxu0
  %v579 = vadd.f32 %v278, %v578
  %v580 = vpop.f32.mrb[0].mxu0
  %v581 = vpop.f32.mrb[0].mxu0
  %v582 = vadd.f32 %v278, %v581
  %v583 = vpop.f32.mrb[0].mxu0
  %584 = vmatprep.mubr.bf16.mxu0 %v196
  %585 = vmatmul.mubr.bf16.gmra.mrb[0].mxu0 %v195
  %v586 = vpop.f32.mrb[0].mxu0
  %v587 = vadd.f32 %v278, %v586
  %v588 = vpop.f32.mrb[0].mxu0
  %v589 = vpop.f32.mrb[0].mxu0
  %v590 = vadd.f32 %v278, %v589
  %v591 = vpop.f32.mrb[0].mxu0
  %592 = vmatprep.mubr.bf16.mxu0 %v199
  %593 = vmatmul.mubr.bf16.gmra.mrb[0].mxu0 %v198
  %v594 = vpop.f32.mrb[0].mxu0
  %v595 = vadd.f32 %v278, %v594
  %v596 = vpop.f32.mrb[0].mxu0
  %v597 = vpop.f32.mrb[0].mxu0
  %v598 = vadd.f32 %v278, %v597
  %v599 = vpop.f32.mrb[0].mxu0
  %600 = vmatprep.mubr.bf16.mxu0 %v202
  %601 = vmatmul.mubr.bf16.gmra.mrb[0].mxu0 %v201
  %v602 = vpop.f32.mrb[0].mxu0
  %v603 = vadd.f32 %v278, %v602
  %v604 = vpop.f32.mrb[0].mxu0
  %v605 = vpop.f32.mrb[0].mxu0
  %v606 = vadd.f32 %v278, %v605
  %v607 = vpop.f32.mrb[0].mxu0
  %608 = vmatprep.mubr.bf16.mxu0 %v205
  %609 = vmatmul.mubr.bf16.gmra.mrb[0].mxu0 %v204
  %v610 = vpop.f32.mrb[0].mxu0
  %v611 = vadd.f32 %v278, %v610
  %v612 = vpop.f32.mrb[0].mxu0
  %v613 = vpop.f32.mrb[0].mxu0
  %v614 = vadd.f32 %v278, %v613
  %v615 = vpop.f32.mrb[0].mxu0
  %616 = vmatprep.mubr.bf16.mxu0 %v208
  %617 = vmatmul.mubr.bf16.gmra.mrb[0].mxu0 %v207
  %v618 = vpop.f32.mrb[0].mxu0
  %v619 = vadd.f32 %v278, %v618
  %v620 = vpop.f32.mrb[0].mxu0
  %v621 = vpop.f32.mrb[0].mxu0
  %v622 = vadd.f32 %v278, %v621
  %v623 = vpop.f32.mrb[0].mxu0
  %624 = vmatprep.mubr.bf16.mxu0 %v211
  %625 = vmatmul.mubr.bf16.gmra.mrb[0].mxu0 %v210
  %v626 = vpop.f32.mrb[0].mxu0
  %v627 = vadd.f32 %v278, %v626
  %v628 = vpop.f32.mrb[0].mxu0
  %v629 = vpop.f32.mrb[0].mxu0
  %v630 = vadd.f32 %v278, %v629
  %v631 = vpop.f32.mrb[0].mxu0
  %632 = vmatprep.mubr.bf16.mxu0 %v214
  %633 = vmatmul.mubr.bf16.gmra.mrb[0].mxu0 %v213
  %v634 = vpop.f32.mrb[0].mxu0
  %v635 = vadd.f32 %v278, %v634
  %v636 = vpop.f32.mrb[0].mxu0
  %v637 = vpop.f32.mrb[0].mxu0
  %v638 = vadd.f32 %v278, %v637
  %v639 = vpop.f32.mrb[0].mxu0
  %640 = vmatprep.mubr.bf16.mxu0 %v217
  %641 = vmatmul.mubr.bf16.gmra.mrb[0].mxu0 %v216
  %v642 = vpop.f32.mrb[0].mxu0
  %v643 = vadd.f32 %v278, %v642
  %v644 = vpop.f32.mrb[0].mxu0
  %v645 = vpop.f32.mrb[0].mxu0
  %v646 = vadd.f32 %v278, %v645
  %v647 = vpop.f32.mrb[0].mxu0
  %648 = vmatprep.mubr.bf16.mxu0 %v220
  %649 = vmatmul.mubr.bf16.gmra.mrb[0].mxu0 %v219
  %v650 = vpop.f32.mrb[0].mxu0
  %v651 = vadd.f32 %v278, %v650
  %v652 = vpop.f32.mrb[0].mxu0
  %v653 = vpop.f32.mrb[0].mxu0
  %v654 = vadd.f32 %v278, %v653
  %v655 = vpop.f32.mrb[0].mxu0
  %656 = vmatprep.mubr.bf16.mxu0 %v223
  %657 = vmatmul.mubr.bf16.gmra.mrb[0].mxu0 %v222
  %v658 = vpop.f32.mrb[0].mxu0
  %v659 = vadd.f32 %v278, %v658
  %v660 = vpop.f32.mrb[0].mxu0
  %v661 = vpop.f32.mrb[0].mxu0
  %v662 = vadd.f32 %v278, %v661
  %v663 = vpop.f32.mrb[0].mxu0
  %664 = vmatprep.mubr.bf16.mxu0 %v226
  %665 = vmatmul.mubr.bf16.gmra.mrb[0].mxu0 %v225
  %v666 = vpop.f32.mrb[0].mxu0
  %v667 = vadd.f32 %v278, %v666
  %v668 = vpop.f32.mrb[0].mxu0
  %v669 = vpop.f32.mrb[0].mxu0
  %v670 = vadd.f32 %v278, %v669
  %v671 = vpop.f32.mrb[0].mxu0
  %672 = vmatprep.mubr.bf16.mxu0 %v229
  %673 = vmatmul.mubr.bf16.gmra.mrb[0].mxu0 %v228
  %v674 = vpop.f32.mrb[0].mxu0
  %v675 = vadd.f32 %v278, %v674
  %v676 = vpop.f32.mrb[0].mxu0
  %v677 = vpop.f32.mrb[0].mxu0
  %v678 = vadd.f32 %v278, %v677
  %v679 = vpop.f32.mrb[0].mxu0
  %680 = vmatprep.mubr.bf16.mxu0 %v232
  %681 = vmatmul.mubr.bf16.gmra.mrb[0].mxu0 %v231
  %v682 = vpop.f32.mrb[0].mxu0
  %v683 = vadd.f32 %v278, %v682
  %v684 = vpop.f32.mrb[0].mxu0
  %v685 = vpop.f32.mrb[0].mxu0
  %v686 = vadd.f32 %v278, %v685
  %v687 = vpop.f32.mrb[0].mxu0
  %688 = vmatprep.mubr.bf16.mxu0 %v235
  %689 = vmatmul.mubr.bf16.gmra.mrb[0].mxu0 %v234
  %v690 = vpop.f32.mrb[0].mxu0
  %v691 = vadd.f32 %v278, %v690
  %v692 = vpop.f32.mrb[0].mxu0
  %v693 = vpop.f32.mrb[0].mxu0
  %v694 = vpop.f32.mrb[0].mxu0
  %695 = vdwg.mxu0
  %696 = vmatprep.subr.bf16.mxu0 0
  %697 = vmatpush1.bf16.msra.mxu0 %v368
  %698 = vmatprep.subr.bf16.mxu0 0
  %699 = vmatpush1.bf16.msra.mxu0 %v369
  %700 = vmatprep.subr.bf16.mxu0 0
  %701 = vmatpush1.bf16.msra.mxu0 0
  %702 = vmatprep.subr.bf16.mxu0 0
  %703 = vmatpush1.bf16.msra.mxu0 0
  %704 = vmatprep.subr.bf16.mxu0 0
  %705 = vmatpush1.bf16.msra.mxu0 0
  %706 = vmatprep.subr.bf16.mxu0 0
  %707 = vmatpush1.bf16.msra.mxu0 0
  %708 = vmatprep.subr.bf16.mxu0 0
  %709 = vmatpush1.bf16.msra.mxu0 0
  %710 = vmatprep.subr.bf16.mxu0 0
  %711 = vmatpush1.bf16.msra.mxu0 0
  %712 = vmatprep.subr.bf16.mxu0 0
  %713 = vmatpush1.bf16.msra.mxu0 0
  %714 = vmatprep.subr.bf16.mxu0 0
  %715 = vmatpush1.bf16.msra.mxu0 0
  %716 = vmatprep.subr.bf16.mxu0 0
  %717 = vmatpush1.bf16.msra.mxu0 0
  %718 = vmatprep.subr.bf16.mxu0 0
  %719 = vmatpush1.bf16.msra.mxu0 0
  %720 = vmatprep.subr.bf16.mxu0 0
  %721 = vmatpush1.bf16.msra.mxu0 0
  %722 = vmatprep.subr.bf16.mxu0 0
  %723 = vmatpush1.bf16.msra.mxu0 0
  %724 = vmatprep.subr.bf16.mxu0 0
  %725 = vmatpush1.bf16.msra.mxu0 0
  %726 = vmatprep.subr.bf16.mxu0 0
  %727 = vmatpush1.bf16.msra.mxu0 0
  %728 = vmatprep.mubr.bf16.mxu0 0
  %729 = vmatmul.mubr.bf16.gmra.mrb[0].mxu0 %v390
  %v730 = vpop.f32.mrb[0].mxu0
  %v731 = vadd.f32 %v499, %v730
  %v732 = vpop.f32.mrb[0].mxu0
  %v733 = vpop.f32.mrb[0].mxu0
  %v734 = vadd.f32 %v502, %v733
  %v735 = vpop.f32.mrb[0].mxu0
  %736 = vmatprep.mubr.bf16.mxu0 0
  %737 = vmatmul.mubr.bf16.gmra.mrb[0].mxu0 %v393
  %v738 = vpop.f32.mrb[0].mxu0
  %v739 = vadd.f32 %v507, %v738
  %v740 = vpop.f32.mrb[0].mxu0
  %v741 = vpop.f32.mrb[0].mxu0
  %v742 = vadd.f32 %v510, %v741
  %v743 = vpop.f32.mrb[0].mxu0
  %744 = vmatprep.mubr.bf16.mxu0 0
  %745 = vmatmul.mubr.bf16.gmra.mrb[0].mxu0 %v396
  %v746 = vpop.f32.mrb[0].mxu0
  %v747 = vadd.f32 %v515, %v746
  %v748 = vpop.f32.mrb[0].mxu0
  %v749 = vpop.f32.mrb[0].mxu0
  %v750 = vadd.f32 %v518, %v749
  %v751 = vpop.f32.mrb[0].mxu0
  %752 = vmatprep.mubr.bf16.mxu0 0
  %753 = vmatmul.mubr.bf16.gmra.mrb[0].mxu0 %v399
  %v754 = vpop.f32.mrb[0].mxu0
  %v755 = vadd.f32 %v523, %v754
  %v756 = vpop.f32.mrb[0].mxu0
  %v757 = vpop.f32.mrb[0].mxu0
  %v758 = vadd.f32 %v526, %v757
  %v759 = vpop.f32.mrb[0].mxu0
  %760 = vmatprep.mubr.bf16.mxu0 0
  %761 = vmatmul.mubr.bf16.gmra.mrb[0].mxu0 %v402
  %v762 = vpop.f32.mrb[0].mxu0
  %v763 = vadd.f32 %v531, %v762
  %v764 = vpop.f32.mrb[0].mxu0
  %v765 = vpop.f32.mrb[0].mxu0
  %v766 = vadd.f32 %v534, %v765
  %v767 = vpop.f32.mrb[0].mxu0
  %768 = vmatprep.mubr.bf16.mxu0 0
  %769 = vmatmul.mubr.bf16.gmra.mrb[0].mxu0 %v405
  %v770 = vpop.f32.mrb[0].mxu0
  %v771 = vadd.f32 %v539, %v770
  %v772 = vpop.f32.mrb[0].mxu0
  %v773 = vpop.f32.mrb[0].mxu0
  %v774 = vadd.f32 %v542, %v773
  %v775 = vpop.f32.mrb[0].mxu0
  %776 = vmatprep.mubr.bf16.mxu0 0
  %777 = vmatmul.mubr.bf16.gmra.mrb[0].mxu0 %v408
  %v778 = vpop.f32.mrb[0].mxu0
  %v779 = vadd.f32 %v547, %v778
  %v780 = vpop.f32.mrb[0].mxu0
  %v781 = vpop.f32.mrb[0].mxu0
  %v782 = vadd.f32 %v550, %v781
  %v783 = vpop.f32.mrb[0].mxu0
  %784 = vmatprep.mubr.bf16.mxu0 0
  %785 = vmatmul.mubr.bf16.gmra.mrb[0].mxu0 %v411
  %v786 = vpop.f32.mrb[0].mxu0
  %v787 = vadd.f32 %v555, %v786
  %v788 = vpop.f32.mrb[0].mxu0
  %v789 = vpop.f32.mrb[0].mxu0
  %v790 = vadd.f32 %v558, %v789
  %v791 = vpop.f32.mrb[0].mxu0
  %792 = vmatprep.mubr.bf16.mxu0 0
  %793 = vmatmul.mubr.bf16.gmra.mrb[0].mxu0 %v414
  %v794 = vpop.f32.mrb[0].mxu0
  %v795 = vadd.f32 %v563, %v794
  %v796 = vpop.f32.mrb[0].mxu0
  %v797 = vpop.f32.mrb[0].mxu0
  %v798 = vadd.f32 %v566, %v797
  %v799 = vpop.f32.mrb[0].mxu0
  %800 = vmatprep.mubr.bf16.mxu0 0
  %801 = vmatmul.mubr.bf16.gmra.mrb[0].mxu0 %v417
  %v802 = vpop.f32.mrb[0].mxu0
  %v803 = vadd.f32 %v571, %v802
  %v804 = vpop.f32.mrb[0].mxu0
  %v805 = vpop.f32.mrb[0].mxu0
  %v806 = vadd.f32 %v574, %v805
  %v807 = vpop.f32.mrb[0].mxu0
  %808 = vmatprep.mubr.bf16.mxu0 0
  %809 = vmatmul.mubr.bf16.gmra.mrb[0].mxu0 %v420
  %v810 = vpop.f32.mrb[0].mxu0
  %v811 = vadd.f32 %v579, %v810
  %v812 = vpop.f32.mrb[0].mxu0
  %v813 = vpop.f32.mrb[0].mxu0
  %v814 = vadd.f32 %v582, %v813
  %v815 = vpop.f32.mrb[0].mxu0
  %816 = vmatprep.mubr.bf16.mxu0 0
  %817 = vmatmul.mubr.bf16.gmra.mrb[0].mxu0 %v423
  %v818 = vpop.f32.mrb[0].mxu0
  %v819 = vadd.f32 %v587, %v818
  %v820 = vpop.f32.mrb[0].mxu0
  %v821 = vpop.f32.mrb[0].mxu0
  %v822 = vadd.f32 %v590, %v821
  %v823 = vpop.f32.mrb[0].mxu0
  %824 = vmatprep.mubr.bf16.mxu0 0
  %825 = vmatmul.mubr.bf16.gmra.mrb[0].mxu0 %v426
  %v826 = vpop.f32.mrb[0].mxu0
  %v827 = vadd.f32 %v595, %v826
  %v828 = vpop.f32.mrb[0].mxu0
  %v829 = vpop.f32.mrb[0].mxu0
  %v830 = vadd.f32 %v598, %v829
  %v831 = vpop.f32.mrb[0].mxu0
  %832 = vmatprep.mubr.bf16.mxu0 0
  %833 = vmatmul.mubr.bf16.gmra.mrb[0].mxu0 %v429
  %v834 = vpop.f32.mrb[0].mxu0
  %v835 = vadd.f32 %v603, %v834
  %v836 = vpop.f32.mrb[0].mxu0
  %v837 = vpop.f32.mrb[0].mxu0
  %v838 = vadd.f32 %v606, %v837
  %v839 = vpop.f32.mrb[0].mxu0
  %840 = vmatprep.mubr.bf16.mxu0 0
  %841 = vmatmul.mubr.bf16.gmra.mrb[0].mxu0 %v432
  %v842 = vpop.f32.mrb[0].mxu0
  %v843 = vadd.f32 %v611, %v842
  %v844 = vpop.f32.mrb[0].mxu0
  %v845 = vpop.f32.mrb[0].mxu0
  %v846 = vadd.f32 %v614, %v845
  %v847 = vpop.f32.mrb[0].mxu0
  %848 = vmatprep.mubr.bf16.mxu0 0
  %849 = vmatmul.mubr.bf16.gmra.mrb[0].mxu0 %v435
  %v850 = vpop.f32.mrb[0].mxu0
  %v851 = vadd.f32 %v619, %v850
  %v852 = vpop.f32.mrb[0].mxu0
  %v853 = vpop.f32.mrb[0].mxu0
  %v854 = vadd.f32 %v622, %v853
  %v855 = vpop.f32.mrb[0].mxu0
  %856 = vmatprep.mubr.bf16.mxu0 0
  %857 = vmatmul.mubr.bf16.gmra.mrb[0].mxu0 %v438
  %v858 = vpop.f32.mrb[0].mxu0
  %v859 = vadd.f32 %v627, %v858
  %v860 = vpop.f32.mrb[0].mxu0
  %v861 = vpop.f32.mrb[0].mxu0
  %v862 = vadd.f32 %v630, %v861
  %v863 = vpop.f32.mrb[0].mxu0
  %864 = vmatprep.mubr.bf16.mxu0 0
  %865 = vmatmul.mubr.bf16.gmra.mrb[0].mxu0 %v441
  %v866 = vpop.f32.mrb[0].mxu0
  %v867 = vadd.f32 %v635, %v866
  %v868 = vpop.f32.mrb[0].mxu0
  %v869 = vpop.f32.mrb[0].mxu0
  %v870 = vadd.f32 %v638, %v869
  %v871 = vpop.f32.mrb[0].mxu0
  %872 = vmatprep.mubr.bf16.mxu0 0
  %873 = vmatmul.mubr.bf16.gmra.mrb[0].mxu0 %v444
  %v874 = vpop.f32.mrb[0].mxu0
  %v875 = vadd.f32 %v643, %v874
  %v876 = vpop.f32.mrb[0].mxu0
  %v877 = vpop.f32.mrb[0].mxu0
  %v878 = vadd.f32 %v646, %v877
  %v879 = vpop.f32.mrb[0].mxu0
  %880 = vmatprep.mubr.bf16.mxu0 0
  %881 = vmatmul.mubr.bf16.gmra.mrb[0].mxu0 %v447
  %v882 = vpop.f32.mrb[0].mxu0
  %v883 = vadd.f32 %v651, %v882
  %v884 = vpop.f32.mrb[0].mxu0
  %v885 = vpop.f32.mrb[0].mxu0
  %v886 = vadd.f32 %v654, %v885
  %v887 = vpop.f32.mrb[0].mxu0
  %888 = vmatprep.mubr.bf16.mxu0 0
  %889 = vmatmul.mubr.bf16.gmra.mrb[0].mxu0 %v450
  %v890 = vpop.f32.mrb[0].mxu0
  %v891 = vadd.f32 %v659, %v890
  %v892 = vpop.f32.mrb[0].mxu0
  %v893 = vpop.f32.mrb[0].mxu0
  %v894 = vadd.f32 %v662, %v893
  %v895 = vpop.f32.mrb[0].mxu0
  %896 = vmatprep.mubr.bf16.mxu0 0
  %897 = vmatmul.mubr.bf16.gmra.mrb[0].mxu0 %v453
  %v898 = vpop.f32.mrb[0].mxu0
  %v899 = vadd.f32 %v667, %v898
  %v900 = vpop.f32.mrb[0].mxu0
  %v901 = vpop.f32.mrb[0].mxu0
  %v902 = vadd.f32 %v670, %v901
  %v903 = vpop.f32.mrb[0].mxu0
  %904 = vmatprep.mubr.bf16.mxu0 0
  %905 = vmatmul.mubr.bf16.gmra.mrb[0].mxu0 %v456
  %v906 = vpop.f32.mrb[0].mxu0
  %v907 = vadd.f32 %v675, %v906
  %v908 = vpop.f32.mrb[0].mxu0
  %v909 = vpop.f32.mrb[0].mxu0
  %v910 = vadd.f32 %v678, %v909
  %v911 = vpop.f32.mrb[0].mxu0
  %912 = vmatprep.mubr.bf16.mxu0 0
  %913 = vmatmul.mubr.bf16.gmra.mrb[0].mxu0 %v459
  %v914 = vpop.f32.mrb[0].mxu0
  %v915 = vadd.f32 %v683, %v914
  %v916 = vpop.f32.mrb[0].mxu0
  %v917 = vpop.f32.mrb[0].mxu0
  %v918 = vadd.f32 %v686, %v917
  %v919 = vpop.f32.mrb[0].mxu0
  %920 = vmatprep.mubr.bf16.mxu0 0
  %921 = vmatmul.mubr.bf16.gmra.mrb[0].mxu0 %v462
  %v922 = vpop.f32.mrb[0].mxu0
  %v923 = vadd.f32 %v691, %v922
  %v924 = vpop.f32.mrb[0].mxu0
  %v925 = vpop.f32.mrb[0].mxu0
  %v926 = vpop.f32.mrb[0].mxu0
  %927 = vdwg.mxu0
  %v928 = vxor.u32 %v731, 2147483648
  %v929 = vxor.u32 %v734, 2147483648
  %v930 = vxor.u32 %v739, 2147483648
  %v931 = vxor.u32 %v742, 2147483648
  %v932 = vxor.u32 %v747, 2147483648
  %v933 = vxor.u32 %v750, 2147483648
  %v934 = vxor.u32 %v755, 2147483648
  %v935 = vxor.u32 %v758, 2147483648
  %v936 = vxor.u32 %v763, 2147483648
  %v937 = vxor.u32 %v766, 2147483648
  %v938 = vxor.u32 %v771, 2147483648
  %v939 = vxor.u32 %v774, 2147483648
  %v940 = vxor.u32 %v779, 2147483648
  %v941 = vxor.u32 %v782, 2147483648
  %v942 = vxor.u32 %v787, 2147483648
  %v943 = vxor.u32 %v790, 2147483648
  %v944 = vxor.u32 %v795, 2147483648
  %v945 = vxor.u32 %v798, 2147483648
  %v946 = vxor.u32 %v803, 2147483648
  %v947 = vxor.u32 %v806, 2147483648
  %v948 = vxor.u32 %v811, 2147483648
  %v949 = vxor.u32 %v814, 2147483648
  %v950 = vxor.u32 %v819, 2147483648
  %v951 = vxor.u32 %v822, 2147483648
  %v952 = vxor.u32 %v827, 2147483648
  %v953 = vxor.u32 %v830, 2147483648
  %v954 = vxor.u32 %v835, 2147483648
  %v955 = vxor.u32 %v838, 2147483648
  %v956 = vxor.u32 %v843, 2147483648
  %v957 = vxor.u32 %v846, 2147483648
  %v958 = vxor.u32 %v851, 2147483648
  %v959 = vxor.u32 %v854, 2147483648
  %v960 = vxor.u32 %v859, 2147483648
  %v961 = vxor.u32 %v862, 2147483648
  %v962 = vxor.u32 %v867, 2147483648
  %v963 = vxor.u32 %v870, 2147483648
  %v964 = vxor.u32 %v875, 2147483648
  %v965 = vxor.u32 %v878, 2147483648
  %v966 = vxor.u32 %v883, 2147483648
  %v967 = vxor.u32 %v886, 2147483648
  %v968 = vxor.u32 %v891, 2147483648
  %v969 = vxor.u32 %v894, 2147483648
  %v970 = vxor.u32 %v899, 2147483648
  %v971 = vxor.u32 %v902, 2147483648
  %v972 = vxor.u32 %v907, 2147483648
  %v973 = vxor.u32 %v910, 2147483648
  %v974 = vxor.u32 %v915, 2147483648
  %v975 = vxor.u32 %v918, 2147483648
  %v976 = vxor.u32 %v923, 2147483648
  %v977 = vmul.f32 %v928, 1.442695
  %v978 = vpow.pop %v977
  %v979 = vmul.f32 %v929, 1.442695
  %v980 = vpow.pop %v979
  %v981 = vmul.f32 %v930, 1.442695
  %v982 = vpow.pop %v981
  %v983 = vmul.f32 %v931, 1.442695
  %v984 = vpow.pop %v983
  %v985 = vmul.f32 %v932, 1.442695
  %v986 = vpow.pop %v985
  %v987 = vmul.f32 %v933, 1.442695
  %v988 = vpow.pop %v987
  %v989 = vmul.f32 %v934, 1.442695
  %v990 = vpow.pop %v989
  %v991 = vmul.f32 %v935, 1.442695
  %v992 = vpow.pop %v991
  %v993 = vmul.f32 %v936, 1.442695
  %v994 = vpow.pop %v993
  %v995 = vmul.f32 %v937, 1.442695
  %v996 = vpow.pop %v995
  %v997 = vmul.f32 %v938, 1.442695
  %v998 = vpow.pop %v997
  %v999 = vmul.f32 %v939, 1.442695
  %v1000 = vpow.pop %v999
  %v1001 = vmul.f32 %v940, 1.442695
  %v1002 = vpow.pop %v1001
  %v1003 = vmul.f32 %v941, 1.442695
  %v1004 = vpow.pop %v1003
  %v1005 = vmul.f32 %v942, 1.442695
  %v1006 = vpow.pop %v1005
  %v1007 = vmul.f32 %v943, 1.442695
  %v1008 = vpow.pop %v1007
  %v1009 = vmul.f32 %v944, 1.442695
  %v1010 = vpow.pop %v1009
  %v1011 = vmul.f32 %v945, 1.442695
  %v1012 = vpow.pop %v1011
  %v1013 = vmul.f32 %v946, 1.442695
  %v1014 = vpow.pop %v1013
  %v1015 = vmul.f32 %v947, 1.442695
  %v1016 = vpow.pop %v1015
  %v1017 = vmul.f32 %v948, 1.442695
  %v1018 = vpow.pop %v1017
  %v1019 = vmul.f32 %v949, 1.442695
  %v1020 = vpow.pop %v1019
  %v1021 = vmul.f32 %v950, 1.442695
  %v1022 = vpow.pop %v1021
  %v1023 = vmul.f32 %v951, 1.442695
  %v1024 = vpow.pop %v1023
  %v1025 = vmul.f32 %v952, 1.442695
  %v1026 = vpow.pop %v1025
  %v1027 = vmul.f32 %v953, 1.442695
  %v1028 = vpow.pop %v1027
  %v1029 = vmul.f32 %v954, 1.442695
  %v1030 = vpow.pop %v1029
  %v1031 = vmul.f32 %v955, 1.442695
  %v1032 = vpow.pop %v1031
  %v1033 = vmul.f32 %v956, 1.442695
  %v1034 = vpow.pop %v1033
  %v1035 = vmul.f32 %v957, 1.442695
  %v1036 = vpow.pop %v1035
  %v1037 = vmul.f32 %v958, 1.442695
  %v1038 = vpow.pop %v1037
  %v1039 = vmul.f32 %v959, 1.442695
  %v1040 = vpow.pop %v1039
  %v1041 = vmul.f32 %v960, 1.442695
  %v1042 = vpow.pop %v1041
  %v1043 = vmul.f32 %v961, 1.442695
  %v1044 = vpow.pop %v1043
  %v1045 = vmul.f32 %v962, 1.442695
  %v1046 = vpow.pop %v1045
  %v1047 = vmul.f32 %v963, 1.442695
  %v1048 = vpow.pop %v1047
  %v1049 = vmul.f32 %v964, 1.442695
  %v1050 = vpow.pop %v1049
  %v1051 = vmul.f32 %v965, 1.442695
  %v1052 = vpow.pop %v1051
  %v1053 = vmul.f32 %v966, 1.442695
  %v1054 = vpow.pop %v1053
  %v1055 = vmul.f32 %v967, 1.442695
  %v1056 = vpow.pop %v1055
  %v1057 = vmul.f32 %v968, 1.442695
  %v1058 = vpow.pop %v1057
  %v1059 = vmul.f32 %v969, 1.442695
  %v1060 = vpow.pop %v1059
  %v1061 = vmul.f32 %v970, 1.442695
  %v1062 = vpow.pop %v1061
  %v1063 = vmul.f32 %v971, 1.442695
  %v1064 = vpow.pop %v1063
  %v1065 = vmul.f32 %v972, 1.442695
  %v1066 = vpow.pop %v1065
  %v1067 = vmul.f32 %v973, 1.442695
  %v1068 = vpow.pop %v1067
  %v1069 = vmul.f32 %v974, 1.442695
  %v1070 = vpow.pop %v1069
  %v1071 = vmul.f32 %v975, 1.442695
  %v1072 = vpow.pop %v1071
  %v1073 = vmul.f32 %v976, 1.442695
  %v1074 = vpow.pop %v1073
  %v1075 = vadd.f32 %v978, 1.0
  %v1076 = vadd.f32 %v980, 1.0
  %v1077 = vadd.f32 %v982, 1.0
  %v1078 = vadd.f32 %v984, 1.0
  %v1079 = vadd.f32 %v986, 1.0
  %v1080 = vadd.f32 %v988, 1.0
  %v1081 = vadd.f32 %v990, 1.0
  %v1082 = vadd.f32 %v992, 1.0
  %v1083 = vadd.f32 %v994, 1.0
  %v1084 = vadd.f32 %v996, 1.0
  %v1085 = vadd.f32 %v998, 1.0
  %v1086 = vadd.f32 %v1000, 1.0
  %v1087 = vadd.f32 %v1002, 1.0
  %v1088 = vadd.f32 %v1004, 1.0
  %v1089 = vadd.f32 %v1006, 1.0
  %v1090 = vadd.f32 %v1008, 1.0
  %v1091 = vadd.f32 %v1010, 1.0
  %v1092 = vadd.f32 %v1012, 1.0
  %v1093 = vadd.f32 %v1014, 1.0
  %v1094 = vadd.f32 %v1016, 1.0
  %v1095 = vadd.f32 %v1018, 1.0
  %v1096 = vadd.f32 %v1020, 1.0
  %v1097 = vadd.f32 %v1022, 1.0
  %v1098 = vadd.f32 %v1024, 1.0
  %v1099 = vadd.f32 %v1026, 1.0
  %v1100 = vadd.f32 %v1028, 1.0
  %v1101 = vadd.f32 %v1030, 1.0
  %v1102 = vadd.f32 %v1032, 1.0
  %v1103 = vadd.f32 %v1034, 1.0
  %v1104 = vadd.f32 %v1036, 1.0
  %v1105 = vadd.f32 %v1038, 1.0
  %v1106 = vadd.f32 %v1040, 1.0
  %v1107 = vadd.f32 %v1042, 1.0
  %v1108 = vadd.f32 %v1044, 1.0
  %v1109 = vadd.f32 %v1046, 1.0
  %v1110 = vadd.f32 %v1048, 1.0
  %v1111 = vadd.f32 %v1050, 1.0
  %v1112 = vadd.f32 %v1052, 1.0
  %v1113 = vadd.f32 %v1054, 1.0
  %v1114 = vadd.f32 %v1056, 1.0
  %v1115 = vadd.f32 %v1058, 1.0
  %v1116 = vadd.f32 %v1060, 1.0
  %v1117 = vadd.f32 %v1062, 1.0
  %v1118 = vadd.f32 %v1064, 1.0
  %v1119 = vadd.f32 %v1066, 1.0
  %v1120 = vadd.f32 %v1068, 1.0
  %v1121 = vadd.f32 %v1070, 1.0
  %v1122 = vadd.f32 %v1072, 1.0
  %v1123 = vadd.f32 %v1074, 1.0
  %v1124 = vrcp.pop %v1075
  %v1125 = vmul.f32 1.0, %v1124
  %v1126 = vrcp.pop %v1076
  %v1127 = vmul.f32 1.0, %v1126
  %v1128 = vrcp.pop %v1077
  %v1129 = vmul.f32 1.0, %v1128
  %v1130 = vrcp.pop %v1078
  %v1131 = vmul.f32 1.0, %v1130
  %v1132 = vrcp.pop %v1079
  %v1133 = vmul.f32 1.0, %v1132
  %v1134 = vrcp.pop %v1080
  %v1135 = vmul.f32 1.0, %v1134
  %v1136 = vrcp.pop %v1081
  %v1137 = vmul.f32 1.0, %v1136
  %v1138 = vrcp.pop %v1082
  %v1139 = vmul.f32 1.0, %v1138
  %v1140 = vrcp.pop %v1083
  %v1141 = vmul.f32 1.0, %v1140
  %v1142 = vrcp.pop %v1084
  %v1143 = vmul.f32 1.0, %v1142
  %v1144 = vrcp.pop %v1085
  %v1145 = vmul.f32 1.0, %v1144
  %v1146 = vrcp.pop %v1086
  %v1147 = vmul.f32 1.0, %v1146
  %v1148 = vrcp.pop %v1087
  %v1149 = vmul.f32 1.0, %v1148
  %v1150 = vrcp.pop %v1088
  %v1151 = vmul.f32 1.0, %v1150
  %v1152 = vrcp.pop %v1089
  %v1153 = vmul.f32 1.0, %v1152
  %v1154 = vrcp.pop %v1090
  %v1155 = vmul.f32 1.0, %v1154
  %v1156 = vrcp.pop %v1091
  %v1157 = vmul.f32 1.0, %v1156
  %v1158 = vrcp.pop %v1092
  %v1159 = vmul.f32 1.0, %v1158
  %v1160 = vrcp.pop %v1093
  %v1161 = vmul.f32 1.0, %v1160
  %v1162 = vrcp.pop %v1094
  %v1163 = vmul.f32 1.0, %v1162
  %v1164 = vrcp.pop %v1095
  %v1165 = vmul.f32 1.0, %v1164
  %v1166 = vrcp.pop %v1096
  %v1167 = vmul.f32 1.0, %v1166
  %v1168 = vrcp.pop %v1097
  %v1169 = vmul.f32 1.0, %v1168
  %v1170 = vrcp.pop %v1098
  %v1171 = vmul.f32 1.0, %v1170
  %v1172 = vrcp.pop %v1099
  %v1173 = vmul.f32 1.0, %v1172
  %v1174 = vrcp.pop %v1100
  %v1175 = vmul.f32 1.0, %v1174
  %v1176 = vrcp.pop %v1101
  %v1177 = vmul.f32 1.0, %v1176
  %v1178 = vrcp.pop %v1102
  %v1179 = vmul.f32 1.0, %v1178
  %v1180 = vrcp.pop %v1103
  %v1181 = vmul.f32 1.0, %v1180
  %v1182 = vrcp.pop %v1104
  %v1183 = vmul.f32 1.0, %v1182
  %v1184 = vrcp.pop %v1105
  %v1185 = vmul.f32 1.0, %v1184
  %v1186 = vrcp.pop %v1106
  %v1187 = vmul.f32 1.0, %v1186
  %v1188 = vrcp.pop %v1107
  %v1189 = vmul.f32 1.0, %v1188
  %v1190 = vrcp.pop %v1108
  %v1191 = vmul.f32 1.0, %v1190
  %v1192 = vrcp.pop %v1109
  %v1193 = vmul.f32 1.0, %v1192
  %v1194 = vrcp.pop %v1110
  %v1195 = vmul.f32 1.0, %v1194
  %v1196 = vrcp.pop %v1111
  %v1197 = vmul.f32 1.0, %v1196
  %v1198 = vrcp.pop %v1112
  %v1199 = vmul.f32 1.0, %v1198
  %v1200 = vrcp.pop %v1113
  %v1201 = vmul.f32 1.0, %v1200
  %v1202 = vrcp.pop %v1114
  %v1203 = vmul.f32 1.0, %v1202
  %v1204 = vrcp.pop %v1115
  %v1205 = vmul.f32 1.0, %v1204
  %v1206 = vrcp.pop %v1116
  %v1207 = vmul.f32 1.0, %v1206
  %v1208 = vrcp.pop %v1117
  %v1209 = vmul.f32 1.0, %v1208
  %v1210 = vrcp.pop %v1118
  %v1211 = vmul.f32 1.0, %v1210
  %v1212 = vrcp.pop %v1119
  %v1213 = vmul.f32 1.0, %v1212
  %v1214 = vrcp.pop %v1120
  %v1215 = vmul.f32 1.0, %v1214
  %v1216 = vrcp.pop %v1121
  %v1217 = vmul.f32 1.0, %v1216
  %v1218 = vrcp.pop %v1122
  %v1219 = vmul.f32 1.0, %v1218
  %v1220 = vrcp.pop %v1123
  %v1221 = vmul.f32 1.0, %v1220
  %vm1222 = vcmask 31744
  %1223 = vst.msk [vmem:[%s3] sm:$0xff] %vm1222, %v1125
  %1224 = vst.msk [vmem:[%s3 + $0x8] sm:$0xff] %vm1222, %v1127
  %1225 = vst.msk [vmem:[%s3 + $0x10] sm:$0xff] %vm1222, %v1129
  %1226 = vst.msk [vmem:[%s3 + $0x18] sm:$0xff] %vm1222, %v1131
  %1227 = vst.msk [vmem:[%s3 + $0x20] sm:$0xff] %vm1222, %v1133
  %1228 = vst.msk [vmem:[%s3 + $0x28] sm:$0xff] %vm1222, %v1135
  %1229 = vst.msk [vmem:[%s3 + $0x30] sm:$0xff] %vm1222, %v1137
  %1230 = vst.msk [vmem:[%s3 + $0x38] sm:$0xff] %vm1222, %v1139
  %1231 = vst.msk [vmem:[%s3 + $0x40] sm:$0xff] %vm1222, %v1141
  %1232 = vst.msk [vmem:[%s3 + $0x48] sm:$0xff] %vm1222, %v1143
  %1233 = vst.msk [vmem:[%s3 + $0x50] sm:$0xff] %vm1222, %v1145
  %1234 = vst.msk [vmem:[%s3 + $0x58] sm:$0xff] %vm1222, %v1147
  %1235 = vst.msk [vmem:[%s3 + $0x60] sm:$0xff] %vm1222, %v1149
  %1236 = vst.msk [vmem:[%s3 + $0x68] sm:$0xff] %vm1222, %v1151
  %1237 = vst.msk [vmem:[%s3 + $0x70] sm:$0xff] %vm1222, %v1153
  %1238 = vst.msk [vmem:[%s3 + $0x78] sm:$0xff] %vm1222, %v1155
  %1239 = vst.msk [vmem:[%s3 + $0x80] sm:$0xff] %vm1222, %v1157
  %1240 = vst.msk [vmem:[%s3 + $0x88] sm:$0xff] %vm1222, %v1159
  %1241 = vst.msk [vmem:[%s3 + $0x90] sm:$0xff] %vm1222, %v1161
  %1242 = vst.msk [vmem:[%s3 + $0x98] sm:$0xff] %vm1222, %v1163
  %1243 = vst.msk [vmem:[%s3 + $0xa0] sm:$0xff] %vm1222, %v1165
  %1244 = vst.msk [vmem:[%s3 + $0xa8] sm:$0xff] %vm1222, %v1167
  %1245 = vst.msk [vmem:[%s3 + $0xb0] sm:$0xff] %vm1222, %v1169
  %1246 = vst.msk [vmem:[%s3 + $0xb8] sm:$0xff] %vm1222, %v1171
  %1247 = vst.msk [vmem:[%s3 + $0xc0] sm:$0xff] %vm1222, %v1173
  %1248 = vst.msk [vmem:[%s3 + $0xc8] sm:$0xff] %vm1222, %v1175
  %1249 = vst.msk [vmem:[%s3 + $0xd0] sm:$0xff] %vm1222, %v1177
  %1250 = vst.msk [vmem:[%s3 + $0xd8] sm:$0xff] %vm1222, %v1179
  %1251 = vst.msk [vmem:[%s3 + $0xe0] sm:$0xff] %vm1222, %v1181
  %1252 = vst.msk [vmem:[%s3 + $0xe8] sm:$0xff] %vm1222, %v1183
  %1253 = vst.msk [vmem:[%s3 + $0xf0] sm:$0xff] %vm1222, %v1185
  %1254 = vst.msk [vmem:[%s3 + $0xf8] sm:$0xff] %vm1222, %v1187
  %1255 = vst.msk [vmem:[%s3 + $0x100] sm:$0xff] %vm1222, %v1189
  %1256 = vst.msk [vmem:[%s3 + $0x108] sm:$0xff] %vm1222, %v1191
  %1257 = vst.msk [vmem:[%s3 + $0x110] sm:$0xff] %vm1222, %v1193
  %1258 = vst.msk [vmem:[%s3 + $0x118] sm:$0xff] %vm1222, %v1195
  %1259 = vst.msk [vmem:[%s3 + $0x120] sm:$0xff] %vm1222, %v1197
  %1260 = vst.msk [vmem:[%s3 + $0x128] sm:$0xff] %vm1222, %v1199
  %1261 = vst.msk [vmem:[%s3 + $0x130] sm:$0xff] %vm1222, %v1201
  %1262 = vst.msk [vmem:[%s3 + $0x138] sm:$0xff] %vm1222, %v1203
  %1263 = vst.msk [vmem:[%s3 + $0x140] sm:$0xff] %vm1222, %v1205
  %1264 = vst.msk [vmem:[%s3 + $0x148] sm:$0xff] %vm1222, %v1207
  %1265 = vst.msk [vmem:[%s3 + $0x150] sm:$0xff] %vm1222, %v1209
  %1266 = vst.msk [vmem:[%s3 + $0x158] sm:$0xff] %vm1222, %v1211
  %1267 = vst.msk [vmem:[%s3 + $0x160] sm:$0xff] %vm1222, %v1213
  %1268 = vst.msk [vmem:[%s3 + $0x168] sm:$0xff] %vm1222, %v1215
  %1269 = vst.msk [vmem:[%s3 + $0x170] sm:$0xff] %vm1222, %v1217
  %1270 = vst.msk [vmem:[%s3 + $0x178] sm:$0xff] %vm1222, %v1219
  %1271 = vst.msk [vmem:[%s3 + $0x180] sm:$0xff] %vm1222, %v1221
  // Predicated region
  $region14: #{vae_forward.11} parent=0 // pred_check
    _
  $region15: #{vae_forward.11} parent=0 // pred_check_branch
    %1273 = sbr.rel (0) target = $region17
  $region16: #{vae_forward.11} parent=0 // pred_region
    _
  $region17: #{vae_forward.11} parent=0 // pred_fallthru
    _
  // Predicated region
  $region18: #{vae_forward.11} parent=0 // pred_check
    _
  $region19: #{vae_forward.11} parent=0 // pred_check_branch
    %1275 = sbr.rel (0) target = $region21
  $region20: #{vae_forward.11} parent=0 // pred_region
    _
  $region21: #{vae_forward.11} parent=0 // pred_fallthru
    _

</llo_original>
